<compile_context>
chip_gen: v7x
topology: tpu7x:2x2x1
jax: 0.10.0
libtpu: 0.0.40
codegen_flags: <defaults>
</compile_context>

<pallas_src>
import functools

import jax
import jax.numpy as jnp
from jax import lax
from jax.experimental import pallas as pl
from jax.experimental.pallas import tpu as pltpu

EPS = 1e-5          # torch BatchNorm2d default eps
LEAKY_SLOPE = 0.2   # torch LeakyReLU(0.2)
LANE = 128


def _round_up(x, m):
    return (x + m - 1) // m * m


# ----------------------------- Pallas kernel -----------------------------

def _bn_lrelu(y, mask, gamma, beta, inv_m):
    """Training-mode BatchNorm (masked batch stats) + LeakyReLU, channel-major.

    y: (out_c, J), mask: (1, J) with 1.0 at valid output pixels, gamma/beta:
    (out_c, 1).  Stats use only valid columns; normalisation is applied to all
    columns (garbage columns are sliced away by the wrapper).
    """
    ym = y * mask
    mu = jnp.sum(ym, axis=1, keepdims=True) * inv_m
    d = (y - mu) * mask
    var = jnp.sum(d * d, axis=1, keepdims=True) * inv_m        # biased batch var
    yhat = (y - mu) * (gamma * lax.rsqrt(var + EPS)) + beta
    return jnp.where(yhat >= 0.0, yhat, LEAKY_SLOPE * yhat)


def fused_decoder_kernel(xm_ref, wpack_ref, consts_ref, o_ref, *,
                         c_in, out_c, k, wp, off, jout, inv_m, has_conv2):
    """bn1-scale -> in-VMEM tap expansion -> conv1 GEMM -> BN+LReLU
       [-> 1x1 conv2 GEMM -> BN+LReLU], all channel-major / lane-dense."""
    x = xm_ref[:c_in, :]                      # (C, WTOT) padded upsampled slab
    mfull = xm_ref[c_in:c_in + 1, :]          # (1, WTOT) validity mask row

    cst = consts_ref[...]                     # (cmax, 5) packed BN vectors
    g1 = cst[:c_in, 0:1]                      # bn1 gamma
    g2 = cst[:out_c, 1:2]                     # conv1 BN gamma
    b2 = cst[:out_c, 2:3]                     # conv1 BN beta

    # decoder bn1 (training-mode batch stats over valid pixels).  Only its
    # scale is applied; bn1's shift and both conv biases are per-channel
    # constants exactly removed by the following training-mode BatchNorms.
    xv = x * mfull
    mu1 = jnp.sum(xv, axis=1, keepdims=True) * inv_m
    d1 = (x - mu1) * mfull
    var1 = jnp.sum(d1 * d1, axis=1, keepdims=True) * inv_m
    xs = x * (g1 * lax.rsqrt(var1 + EPS))     # scale the small slab ONCE

    # conv1: reflect-pad KxK conv as k*k statically shifted flat views of the
    # padded slab ("im2col" built in VMEM), feeding one channel-major GEMM.
    p = (k - 1) // 2
    taps = []
    for dy in range(k):
        for dx in range(k):
            d = (dy - p) * wp + (dx - p)
            taps.append(xs[:, off + d:off + d + jout])          # (C, Jout)
    patches = taps[0] if len(taps) == 1 else jnp.concatenate(taps, axis=0)
    mask = mfull[:, off:off + jout]                              # (1, Jout)

    w1 = wpack_ref[:, :k * k * c_in]                             # (out_c, k*k*C)
    y = jnp.dot(w1, patches, preferred_element_type=jnp.float32)  # (out_c, Jout)
    y = _bn_lrelu(y, mask, g2, b2, inv_m)

    if has_conv2:
        g3 = cst[:out_c, 3:4]
        b3 = cst[:out_c, 4:5]
        w3 = wpack_ref[:, k * k * c_in:k * k * c_in + out_c]     # (out_c, out_c)
        y = jnp.dot(w3, y, preferred_element_type=jnp.float32)
        y = _bn_lrelu(y, mask, g3, b3, inv_m)

    o_ref[...] = y                            # lane-dense, unmasked stores


# ----------------------------- JAX glue -----------------------------

def bilinear_upsample2(x_nchw):
    """nn.Upsample(scale_factor=2, mode='bilinear', align_corners=False)."""
    N, C, H, W = x_nchw.shape

    def idx_frac(size):
        src = (jnp.arange(2 * size, dtype=jnp.float32) + 0.5) / 2.0 - 0.5
        src = jnp.maximum(src, 0.0)            # torch clamps the source below 0
        i0 = jnp.floor(src).astype(jnp.int32)
        i0 = jnp.clip(i0, 0, size - 1)
        i1 = jnp.minimum(i0 + 1, size - 1)
        return i0, i1, src - i0.astype(jnp.float32)

    h0, h1, fh = idx_frac(H)
    w0, w1, fw = idx_frac(W)
    fh = fh[:, None]
    xh0 = x_nchw[:, :, h0, :]
    xh1 = x_nchw[:, :, h1, :]
    top = xh0[:, :, :, w0] * (1.0 - fw) + xh0[:, :, :, w1] * fw
    bot = xh1[:, :, :, w0] * (1.0 - fw) + xh1[:, :, :, w1] * fw
    return top * (1.0 - fh) + bot * fh


def decoder_block_forward(params, inputs_nchw, skip_nchw, filter_size_up=3,
                          need1x1_up=True):
    k = filter_size_up
    assert k % 2 == 1, "reflect 'same' conv fusion assumes an odd kernel"
    # NOTE: dropping bn1's shift and the conv biases inside the kernel is only
    # valid because every conv is immediately followed by a *training-mode*
    # (batch-statistics) BatchNorm that subtracts those per-channel constants
    # exactly.  Eval-mode / running-stats BN would silently break this.

    x = jnp.concatenate([inputs_nchw, skip_nchw], axis=1)     # NCHW concat
    x = bilinear_upsample2(x)                                  # (N, C, H, W)
    N, C, H, W = x.shape
    p = (k - 1) // 2
    xp = jnp.pad(x, ((0, 0), (0, 0), (p, p), (p, p)), mode="reflect") if p else x
    Hp, Wp = H + 2 * p, W + 2 * p

    # Channel-major flat layout:  j = n*Hp*Wp + yp*Wp + xp  lives on lanes.
    J = N * Hp * Wp
    Jout = _round_up(J, LANE)                  # lane-dense kernel output width
    max_d = p * Wp + p                         # largest tap offset magnitude
    OFF = _round_up(max_d, 8)                  # left margin for negative taps
    WTOT = _round_up(OFF + Jout + max_d, LANE)

    flat = jnp.transpose(xp, (1, 0, 2, 3)).reshape(C, J)
    # Validity mask of real output pixels, shipped as one extra "channel" row
    # so the whole activation input is a single DMA.
    yy, xx = jnp.meshgrid(jnp.arange(Hp), jnp.arange(Wp), indexing="ij")
    valid = (yy >= p) & (yy < p + H) & (xx >= p) & (xx < p + W)
    maskJ = jnp.tile(valid.reshape(-1).astype(jnp.float32), (N,))
    xm = jnp.concatenate([flat, maskJ[None, :]], axis=0)       # (C+1, J)
    xm = jnp.pad(xm, ((0, 0), (OFF, WTOT - OFF - J)))          # zero margins

    out_c = params["conv1"]["w"].shape[0]
    # conv1 weight as (out_c, k*k*C) GEMM matrix, tap-major then channel.
    w1 = jnp.transpose(params["conv1"]["w"], (0, 2, 3, 1)).reshape(out_c, k * k * C)
    if need1x1_up:
        w3 = params["conv2"]["w"].reshape(out_c, out_c)
        wpack = jnp.concatenate([w1, w3], axis=1)              # one weight DMA
    else:
        wpack = w1

    # All per-channel BN vectors packed into one tiny (cmax, 5) array: one DMA.
    cmax = max(C, out_c)

    def _col(v):
        v = v.astype(jnp.float32)
        return jnp.pad(v, (0, cmax - v.shape[0]))[:, None]

    cols = [_col(params["bn1"]["gamma"]),
            _col(params["conv1"]["bn"]["gamma"]),
            _col(params["conv1"]["bn"]["beta"])]
    if need1x1_up:
        cols += [_col(params["conv2"]["bn"]["gamma"]),
                 _col(params["conv2"]["bn"]["beta"])]
    else:
        cols += [jnp.zeros((cmax, 1), jnp.float32)] * 2
    consts = jnp.concatenate(cols, axis=1)                     # (cmax, 5)

    kern = functools.partial(
        fused_decoder_kernel, c_in=C, out_c=out_c, k=k, wp=Wp,
        off=OFF, jout=Jout, inv_m=1.0 / (N * H * W), has_conv2=need1x1_up)

    flops = 2 * Jout * (k * k * C) * out_c
    if need1x1_up:
        flops += 2 * Jout * out_c * out_c
    out_wide = pl.pallas_call(
        kern,
        out_shape=jax.ShapeDtypeStruct((out_c, Jout), jnp.float32),
        in_specs=[pl.BlockSpec(memory_space=pltpu.MemorySpace.VMEM)] * 3,
        out_specs=pl.BlockSpec(memory_space=pltpu.MemorySpace.VMEM),
        cost_estimate=pl.CostEstimate(
            flops=flops,
            transcendentals=0,
            bytes_accessed=4 * ((C + 1) * WTOT + wpack.size + consts.size
                                + out_c * Jout)),
    )(xm, wpack, consts)

    y = out_wide[:, :J].reshape(out_c, N, Hp, Wp)[:, :, p:p + H, p:p + W]
    return jnp.transpose(y, (1, 0, 2, 3))                      # (N, out_c, H, W)


# ------------------------ pure-JAX reference (for checking) ------------------------

def _bn_train_ref(x, gamma, beta):
    mu = jnp.mean(x, axis=(0, 2, 3), keepdims=True)
    var = jnp.mean(jnp.square(x - mu), axis=(0, 2, 3), keepdims=True)
    xhat = (x - mu) * lax.rsqrt(var + EPS)
    return xhat * gamma.reshape(1, -1, 1, 1) + beta.reshape(1, -1, 1, 1)


def _conv_block_ref(x, conv, k):
    p = (k - 1) // 2
    xp = jnp.pad(x, ((0, 0), (0, 0), (p, p), (p, p)), mode="reflect") if p else x
    y = lax.conv_general_dilated(
        xp, conv["w"], (1, 1), "VALID",
        dimension_numbers=("NCHW", "OIHW", "NCHW"),
        precision=lax.Precision.HIGHEST)
    y = y + conv["b"].reshape(1, -1, 1, 1)
    y = _bn_train_ref(y, conv["bn"]["gamma"], conv["bn"]["beta"])
    return jnp.where(y >= 0.0, y, LEAKY_SLOPE * y)


def decoder_block_reference(params, inputs, skip, filter_size_up=3,
                            need1x1_up=True):
    x = jnp.concatenate([inputs, skip], axis=1)
    x = bilinear_upsample2(x)
    x = _bn_train_ref(x, params["bn1"]["gamma"], params["bn1"]["beta"])
    x = _conv_block_ref(x, params["conv1"], filter_size_up)
    if need1x1_up:
        x = _conv_block_ref(x, params["conv2"], 1)
    return x


# ----------------------------- parameter init -----------------------------

def init_conv(key, in_c, out_c, k):
    kw, kb = jax.random.split(key)
    w = jax.random.normal(kw, (out_c, in_c, k, k), jnp.float32)
    w = w * (1.0 / (in_c * k * k) ** 0.5)
    b = 0.1 * jax.random.normal(kb, (out_c,), jnp.float32)
    return {"w": w, "b": b}


def init_bn(key, c):
    kg, kb = jax.random.split(key)
    return {"gamma": 1.0 + 0.1 * jax.random.normal(kg, (c,), jnp.float32),
            "beta": 0.1 * jax.random.normal(kb, (c,), jnp.float32)}


# ----------------------------- main -----------------------------

if __name__ == "__main__":
    key = jax.random.PRNGKey(0)
    k_in, k_skip, k_c1, k_c2, k_bn1, k_bnc1, k_bnc2 = jax.random.split(key, 7)

    N, C_each, H0, W0 = 2, 4, 16, 16          # inputs & skip: 4 channels each
    in_c = 2 * C_each                          # channels after concat = 8
    out_c = 8
    filter_size_up = 3

    inputs = jax.random.normal(k_in, (N, C_each, H0, W0), jnp.float32)
    skip = jax.random.normal(k_skip, (N, C_each, H0, W0), jnp.float32)

    params = {
        "bn1": init_bn(k_bn1, in_c),
        "conv1": {**init_conv(k_c1, in_c, out_c, filter_size_up),
                  "bn": init_bn(k_bnc1, out_c)},
        "conv2": {**init_conv(k_c2, out_c, out_c, 1),
                  "bn": init_bn(k_bnc2, out_c)},
    }

    fwd = jax.jit(functools.partial(decoder_block_forward,
                                    filter_size_up=filter_size_up,
                                    need1x1_up=True))
    out = jax.block_until_ready(fwd(params, inputs, skip))

    assert out.shape == (N, out_c, 2 * H0, 2 * W0), out.shape
    assert bool(jnp.all(jnp.isfinite(out)))

    ref = jax.jit(functools.partial(decoder_block_reference,
                                    filter_size_up=filter_size_up,
                                    need1x1_up=True))(params, inputs, skip)
    ref = jax.block_until_ready(ref)
    max_err = float(jnp.max(jnp.abs(out - ref)))
    assert max_err < 5e-2, f"kernel/reference mismatch: max_err={max_err}"

    print("KERNEL_OK")
</pallas_src>

<mosaic_0001>
module attributes {stable_mosaic.version = 11 : i64} {
  func.func @fused_decoder_kernel(%arg0: memref<9x2560xf32, #tpu.memory_space<vmem>>, %arg1: memref<8x80xf32, #tpu.memory_space<vmem>>, %arg2: memref<8x5xf32, #tpu.memory_space<vmem>>, %arg3: memref<8x2432xf32, #tpu.memory_space<vmem>>) attributes {dimension_semantics = [], scalar_prefetch = 0 : i64, scratch_operands = 0 : i64, tpu.core_type = #tpu.core_type<tc>} {
    %c0 = arith.constant 0 : index
    %c0_0 = arith.constant 0 : index
    %0 = vector.load %arg0[%c0, %c0_0] : memref<9x2560xf32, #tpu.memory_space<vmem>>, vector<8x2560xf32>
    %c8 = arith.constant 8 : index
    %c0_1 = arith.constant 0 : index
    %1 = vector.load %arg0[%c8, %c0_1] : memref<9x2560xf32, #tpu.memory_space<vmem>>, vector<1x2560xf32>
    %c0_2 = arith.constant 0 : index
    %c0_3 = arith.constant 0 : index
    %2 = vector.load %arg2[%c0_2, %c0_3] : memref<8x5xf32, #tpu.memory_space<vmem>>, vector<8x5xf32>
    %3 = vector.extract_strided_slice %2 {offsets = [0, 0], sizes = [8, 1], strides = [1, 1]} : vector<8x5xf32> to vector<8x1xf32>
    %4 = vector.extract_strided_slice %2 {offsets = [0, 1], sizes = [8, 1], strides = [1, 1]} : vector<8x5xf32> to vector<8x1xf32>
    %5 = vector.extract_strided_slice %2 {offsets = [0, 2], sizes = [8, 1], strides = [1, 1]} : vector<8x5xf32> to vector<8x1xf32>
    %6 = vector.broadcast %1 : vector<1x2560xf32> to vector<8x2560xf32>
    %7 = arith.mulf %0, %6 : vector<8x2560xf32>
    %cst = arith.constant dense<0.000000e+00> : vector<8xf32>
    %8 = vector.multi_reduction <add>, %7, %cst [1] : vector<8x2560xf32> to vector<8xf32>
    %9 = vector.shape_cast %8 : vector<8xf32> to vector<8x1xf32>
    %cst_4 = arith.constant 4.8828125E-4 : f32
    %10 = vector.broadcast %cst_4 : f32 to vector<8x1xf32>
    %11 = arith.mulf %9, %10 : vector<8x1xf32>
    %12 = vector.broadcast %11 : vector<8x1xf32> to vector<8x2560xf32>
    %13 = arith.subf %0, %12 : vector<8x2560xf32>
    %14 = vector.broadcast %1 : vector<1x2560xf32> to vector<8x2560xf32>
    %15 = arith.mulf %13, %14 : vector<8x2560xf32>
    %16 = arith.mulf %15, %15 : vector<8x2560xf32>
    %cst_5 = arith.constant dense<0.000000e+00> : vector<8xf32>
    %17 = vector.multi_reduction <add>, %16, %cst_5 [1] : vector<8x2560xf32> to vector<8xf32>
    %18 = vector.shape_cast %17 : vector<8xf32> to vector<8x1xf32>
    %cst_6 = arith.constant 4.8828125E-4 : f32
    %19 = vector.broadcast %cst_6 : f32 to vector<8x1xf32>
    %20 = arith.mulf %18, %19 : vector<8x1xf32>
    %cst_7 = arith.constant 9.99999974E-6 : f32
    %21 = vector.broadcast %cst_7 : f32 to vector<8x1xf32>
    %22 = arith.addf %20, %21 : vector<8x1xf32>
    %23 = math.rsqrt %22 : vector<8x1xf32>
    %24 = arith.mulf %3, %23 : vector<8x1xf32>
    %25 = vector.broadcast %24 : vector<8x1xf32> to vector<8x2560xf32>
    %26 = arith.mulf %0, %25 : vector<8x2560xf32>
    %27 = vector.extract_strided_slice %26 {offsets = [0, 5], sizes = [8, 2432], strides = [1, 1]} : vector<8x2560xf32> to vector<8x2432xf32>
    %28 = vector.extract_strided_slice %26 {offsets = [0, 6], sizes = [8, 2432], strides = [1, 1]} : vector<8x2560xf32> to vector<8x2432xf32>
    %29 = vector.extract_strided_slice %26 {offsets = [0, 7], sizes = [8, 2432], strides = [1, 1]} : vector<8x2560xf32> to vector<8x2432xf32>
    %30 = vector.extract_strided_slice %26 {offsets = [0, 39], sizes = [8, 2432], strides = [1, 1]} : vector<8x2560xf32> to vector<8x2432xf32>
    %31 = vector.extract_strided_slice %26 {offsets = [0, 40], sizes = [8, 2432], strides = [1, 1]} : vector<8x2560xf32> to vector<8x2432xf32>
    %32 = vector.extract_strided_slice %26 {offsets = [0, 41], sizes = [8, 2432], strides = [1, 1]} : vector<8x2560xf32> to vector<8x2432xf32>
    %33 = vector.extract_strided_slice %26 {offsets = [0, 73], sizes = [8, 2432], strides = [1, 1]} : vector<8x2560xf32> to vector<8x2432xf32>
    %34 = vector.extract_strided_slice %26 {offsets = [0, 74], sizes = [8, 2432], strides = [1, 1]} : vector<8x2560xf32> to vector<8x2432xf32>
    %35 = vector.extract_strided_slice %26 {offsets = [0, 75], sizes = [8, 2432], strides = [1, 1]} : vector<8x2560xf32> to vector<8x2432xf32>
    %36 = tpu.concatenate %27, %28, %29, %30, %31, %32, %33, %34, %35 in 0 : vector<8x2432xf32>, vector<8x2432xf32>, vector<8x2432xf32>, vector<8x2432xf32>, vector<8x2432xf32>, vector<8x2432xf32>, vector<8x2432xf32>, vector<8x2432xf32>, vector<8x2432xf32> -> vector<72x2432xf32>
    %37 = vector.extract_strided_slice %1 {offsets = [0, 40], sizes = [1, 2432], strides = [1, 1]} : vector<1x2560xf32> to vector<1x2432xf32>
    %c0_8 = arith.constant 0 : index
    %c0_9 = arith.constant 0 : index
    %38 = vector.load %arg1[%c0_8, %c0_9] : memref<8x80xf32, #tpu.memory_space<vmem>>, vector<8x72xf32>
    %cst_10 = arith.constant dense<0.000000e+00> : vector<8x2432xf32>
    %39 = tpu.matmul %38, %36, %cst_10 {dimension_numbers = #tpu.dot_dimension_numbers<[1], [0], [0], [1], [0, 0, 1, 1], [], []>} : vector<8x72xf32>, vector<72x2432xf32>, vector<8x2432xf32> -> vector<8x2432xf32>
    %40 = vector.broadcast %37 : vector<1x2432xf32> to vector<8x2432xf32>
    %41 = arith.mulf %39, %40 : vector<8x2432xf32>
    %cst_11 = arith.constant dense<0.000000e+00> : vector<8xf32>
    %42 = vector.multi_reduction <add>, %41, %cst_11 [1] : vector<8x2432xf32> to vector<8xf32>
    %43 = vector.shape_cast %42 : vector<8xf32> to vector<8x1xf32>
    %cst_12 = arith.constant 4.8828125E-4 : f32
    %44 = vector.broadcast %cst_12 : f32 to vector<8x1xf32>
    %45 = arith.mulf %43, %44 : vector<8x1xf32>
    %46 = vector.broadcast %45 : vector<8x1xf32> to vector<8x2432xf32>
    %47 = arith.subf %39, %46 : vector<8x2432xf32>
    %48 = vector.broadcast %37 : vector<1x2432xf32> to vector<8x2432xf32>
    %49 = arith.mulf %47, %48 : vector<8x2432xf32>
    %50 = arith.mulf %49, %49 : vector<8x2432xf32>
    %cst_13 = arith.constant dense<0.000000e+00> : vector<8xf32>
    %51 = vector.multi_reduction <add>, %50, %cst_13 [1] : vector<8x2432xf32> to vector<8xf32>
    %52 = vector.shape_cast %51 : vector<8xf32> to vector<8x1xf32>
    %cst_14 = arith.constant 4.8828125E-4 : f32
    %53 = vector.broadcast %cst_14 : f32 to vector<8x1xf32>
    %54 = arith.mulf %52, %53 : vector<8x1xf32>
    %55 = vector.broadcast %45 : vector<8x1xf32> to vector<8x2432xf32>
    %56 = arith.subf %39, %55 : vector<8x2432xf32>
    %cst_15 = arith.constant 9.99999974E-6 : f32
    %57 = vector.broadcast %cst_15 : f32 to vector<8x1xf32>
    %58 = arith.addf %54, %57 : vector<8x1xf32>
    %59 = math.rsqrt %58 : vector<8x1xf32>
    %60 = arith.mulf %4, %59 : vector<8x1xf32>
    %61 = vector.broadcast %60 : vector<8x1xf32> to vector<8x2432xf32>
    %62 = arith.mulf %56, %61 : vector<8x2432xf32>
    %63 = vector.broadcast %5 : vector<8x1xf32> to vector<8x2432xf32>
    %64 = arith.addf %62, %63 : vector<8x2432xf32>
    %cst_16 = arith.constant 0.000000e+00 : f32
    %65 = vector.broadcast %cst_16 : f32 to vector<8x2432xf32>
    %66 = arith.cmpf oge, %64, %65 : vector<8x2432xf32>
    %cst_17 = arith.constant 2.000000e-01 : f32
    %67 = vector.broadcast %cst_17 : f32 to vector<8x2432xf32>
    %68 = arith.mulf %67, %64 : vector<8x2432xf32>
    %69 = arith.select %66, %64, %68 : vector<8x2432xi1>, vector<8x2432xf32>
    %70 = vector.extract_strided_slice %2 {offsets = [0, 3], sizes = [8, 1], strides = [1, 1]} : vector<8x5xf32> to vector<8x1xf32>
    %71 = vector.extract_strided_slice %2 {offsets = [0, 4], sizes = [8, 1], strides = [1, 1]} : vector<8x5xf32> to vector<8x1xf32>
    %c0_18 = arith.constant 0 : index
    %c72 = arith.constant 72 : index
    %72 = vector.load %arg1[%c0_18, %c72] : memref<8x80xf32, #tpu.memory_space<vmem>>, vector<8x8xf32>
    %cst_19 = arith.constant dense<0.000000e+00> : vector<8x2432xf32>
    %73 = tpu.matmul %72, %69, %cst_19 {dimension_numbers = #tpu.dot_dimension_numbers<[1], [0], [0], [1], [0, 0, 1, 1], [], []>} : vector<8x8xf32>, vector<8x2432xf32>, vector<8x2432xf32> -> vector<8x2432xf32>
    %74 = vector.broadcast %37 : vector<1x2432xf32> to vector<8x2432xf32>
    %75 = arith.mulf %73, %74 : vector<8x2432xf32>
    %cst_20 = arith.constant dense<0.000000e+00> : vector<8xf32>
    %76 = vector.multi_reduction <add>, %75, %cst_20 [1] : vector<8x2432xf32> to vector<8xf32>
    %77 = vector.shape_cast %76 : vector<8xf32> to vector<8x1xf32>
    %cst_21 = arith.constant 4.8828125E-4 : f32
    %78 = vector.broadcast %cst_21 : f32 to vector<8x1xf32>
    %79 = arith.mulf %77, %78 : vector<8x1xf32>
    %80 = vector.broadcast %79 : vector<8x1xf32> to vector<8x2432xf32>
    %81 = arith.subf %73, %80 : vector<8x2432xf32>
    %82 = vector.broadcast %37 : vector<1x2432xf32> to vector<8x2432xf32>
    %83 = arith.mulf %81, %82 : vector<8x2432xf32>
    %84 = arith.mulf %83, %83 : vector<8x2432xf32>
    %cst_22 = arith.constant dense<0.000000e+00> : vector<8xf32>
    %85 = vector.multi_reduction <add>, %84, %cst_22 [1] : vector<8x2432xf32> to vector<8xf32>
    %86 = vector.shape_cast %85 : vector<8xf32> to vector<8x1xf32>
    %cst_23 = arith.constant 4.8828125E-4 : f32
    %87 = vector.broadcast %cst_23 : f32 to vector<8x1xf32>
    %88 = arith.mulf %86, %87 : vector<8x1xf32>
    %89 = vector.broadcast %79 : vector<8x1xf32> to vector<8x2432xf32>
    %90 = arith.subf %73, %89 : vector<8x2432xf32>
    %cst_24 = arith.constant 9.99999974E-6 : f32
    %91 = vector.broadcast %cst_24 : f32 to vector<8x1xf32>
    %92 = arith.addf %88, %91 : vector<8x1xf32>
    %93 = math.rsqrt %92 : vector<8x1xf32>
    %94 = arith.mulf %70, %93 : vector<8x1xf32>
    %95 = vector.broadcast %94 : vector<8x1xf32> to vector<8x2432xf32>
    %96 = arith.mulf %90, %95 : vector<8x2432xf32>
    %97 = vector.broadcast %71 : vector<8x1xf32> to vector<8x2432xf32>
    %98 = arith.addf %96, %97 : vector<8x2432xf32>
    %cst_25 = arith.constant 0.000000e+00 : f32
    %99 = vector.broadcast %cst_25 : f32 to vector<8x2432xf32>
    %100 = arith.cmpf oge, %98, %99 : vector<8x2432xf32>
    %cst_26 = arith.constant 2.000000e-01 : f32
    %101 = vector.broadcast %cst_26 : f32 to vector<8x2432xf32>
    %102 = arith.mulf %101, %98 : vector<8x2432xf32>
    %103 = arith.select %100, %98, %102 : vector<8x2432xi1>, vector<8x2432xf32>
    %c0_27 = arith.constant 0 : index
    %c0_28 = arith.constant 0 : index
    %104 = vector.load %arg3[%c0_27, %c0_28] : memref<8x2432xf32, #tpu.memory_space<vmem>>, vector<8x2432xf32>
    tpu.vector_store %arg3[%c0_27, %c0_28], %103 {strides = array<i32>} : memref<8x2432xf32, #tpu.memory_space<vmem>>, vector<8x2432xf32>,
    return
  }
}

</mosaic_0001>

<llo_original>
// kernel: tile.8
$region0: #{tile.8}
  #allocation0 [shape = 's32[1]{0}', space=sflag, size = 0x4, scoped, tag = 'scoped memory for tile.8']
  %s0 = inlined_call_operand.vmem [shape: f32[1156], index: 0, kind: input, shape index: {}]
  %s1 = inlined_call_operand.vmem [shape: f32[2,1156], index: 1, kind: output, shape index: {}]
  // Predicated region
  $region2: #{tile.8} parent=0 // pred_check
    _
  $region3: #{tile.8} parent=0 // pred_check_branch
    %3 = sbr.rel (0) target = $region5
  $region4: #{tile.8} parent=0 // pred_region
    _
  $region5: #{tile.8} parent=0 // pred_fallthru
    _
  %v4 = vld [vmem:[%s0] ss:$0 sm:$0xff]
  %5 = vst [vmem:[%s1] sm:$0x3] %v4
  %s6 = scalar_lea.vmem %s0, 1
  %v7 = vld [vmem:[%s6] ss:$0 sm:$0xff]
  %s8 = scalar_lea.vmem %s1, 2
  %9 = vst [vmem:[%s8] sm:$0x3] %v7
  %s10 = scalar_lea.vmem %s0, 2
  %v11 = vld [vmem:[%s10] ss:$0 sm:$0xff]
  %s12 = scalar_lea.vmem %s1, 4
  %13 = vst [vmem:[%s12] sm:$0x3] %v11
  %s14 = scalar_lea.vmem %s0, 3
  %v15 = vld [vmem:[%s14] ss:$0 sm:$0xff]
  %s16 = scalar_lea.vmem %s1, 6
  %17 = vst [vmem:[%s16] sm:$0x3] %v15
  %s18 = scalar_lea.vmem %s0, 4
  %v19 = vld [vmem:[%s18] ss:$0 sm:$0xff]
  %s20 = scalar_lea.vmem %s1, 8
  %21 = vst [vmem:[%s20] sm:$0x3] %v19
  %s22 = scalar_lea.vmem %s0, 5
  %v23 = vld [vmem:[%s22] ss:$0 sm:$0xff]
  %s24 = scalar_lea.vmem %s1, 10
  %25 = vst [vmem:[%s24] sm:$0x3] %v23
  %s26 = scalar_lea.vmem %s0, 6
  %v27 = vld [vmem:[%s26] ss:$0 sm:$0xff]
  %s28 = scalar_lea.vmem %s1, 12
  %29 = vst [vmem:[%s28] sm:$0x3] %v27
  %s30 = scalar_lea.vmem %s0, 7
  %v31 = vld [vmem:[%s30] ss:$0 sm:$0xff]
  %s32 = scalar_lea.vmem %s1, 14
  %33 = vst [vmem:[%s32] sm:$0x3] %v31
  %s34 = scalar_lea.vmem %s0, 8
  %v35 = vld [vmem:[%s34] ss:$0 sm:$0xff]
  %s36 = scalar_lea.vmem %s1, 16
  %37 = vst [vmem:[%s36] sm:$0x3] %v35
  %s38 = scalar_lea.vmem %s0, 8
  %s39 = scalar_lea.vmem %s38, 1
  %v40 = vld [vmem:[%s39] ss:$0 sm:$0xff]
  %s41 = scalar_lea.vmem %s1, 18
  %42 = vst [vmem:[%s41] sm:$0x3] %v40

// kernel: tile.9
$region0: #{tile.9}
  %s0 = inlined_call_operand.vmem [shape: f32[2,1156], index: 0, kind: input, shape index: {}]
  %s1 = inlined_call_operand.vmem [shape: f32[1,2312], index: 1, kind: output, shape index: {}]
  $region1: #{tile.9} parent=0
    #allocation0 [shape = 'u8[77824]{0}', space=vmem, size = 0x13000, scoped, tag = 'scoped mem for output reshape']
    #allocation1 [shape = 'u8[40960]{0}', space=vmem, size = 0xa000, scoped, tag = 'scoped mem for input reshape']
    %s3 = sshllo.u32 0, 2
    %s4 = smul.addr 2, 9
    %s5 = scalar_lea.vmem %s0, %s4
    %v6 = vld [vmem:[%s5] sm:%s3]
    %s7 = scalar_lea.vmem [#allocation1], 72
    %8 = vst [vmem:[%s7] sm:%s3] %v6
    %s9 = smul.addr 2, 8
    %s10 = scalar_lea.vmem %s0, %s9
    %v11 = vld [vmem:[%s10] sm:%s3]
    %s12 = scalar_lea.vmem [#allocation1], 64
    %13 = vst [vmem:[%s12] sm:%s3] %v11
    %s14 = smul.addr 2, 7
    %s15 = scalar_lea.vmem %s0, %s14
    %v16 = vld [vmem:[%s15] sm:%s3]
    %s17 = scalar_lea.vmem [#allocation1], 56
    %18 = vst [vmem:[%s17] sm:%s3] %v16
    %s19 = smul.addr 2, 6
    %s20 = scalar_lea.vmem %s0, %s19
    %v21 = vld [vmem:[%s20] sm:%s3]
    %s22 = scalar_lea.vmem [#allocation1], 48
    %23 = vst [vmem:[%s22] sm:%s3] %v21
    %s24 = smul.addr 2, 5
    %s25 = scalar_lea.vmem %s0, %s24
    %v26 = vld [vmem:[%s25] sm:%s3]
    %s27 = scalar_lea.vmem [#allocation1], 40
    %28 = vst [vmem:[%s27] sm:%s3] %v26
    %s29 = smul.addr 2, 4
    %s30 = scalar_lea.vmem %s0, %s29
    %v31 = vld [vmem:[%s30] sm:%s3]
    %s32 = scalar_lea.vmem [#allocation1], 32
    %33 = vst [vmem:[%s32] sm:%s3] %v31
    %s34 = smul.addr 2, 3
    %s35 = scalar_lea.vmem %s0, %s34
    %v36 = vld [vmem:[%s35] sm:%s3]
    %s37 = scalar_lea.vmem [#allocation1], 24
    %38 = vst [vmem:[%s37] sm:%s3] %v36
    %s39 = smul.addr 2, 2
    %s40 = scalar_lea.vmem %s0, %s39
    %v41 = vld [vmem:[%s40] sm:%s3]
    %s42 = scalar_lea.vmem [#allocation1], 16
    %43 = vst [vmem:[%s42] sm:%s3] %v41
    %s44 = scalar_lea.vmem %s0, 2
    %v45 = vld [vmem:[%s44] sm:%s3]
    %s46 = scalar_lea.vmem [#allocation1], 8
    %47 = vst [vmem:[%s46] sm:%s3] %v45
    %v48 = vld [vmem:[%s0] sm:%s3]
    %49 = vst [vmem:[#allocation1] sm:%s3] %v48
    %s50 = scalar_lea.vmem [#allocation1], 72
    %v51 = vld [vmem:[%s50] sm:$0x1]
    %vm52 = vcmask 31744
    %s53 = scalar_lea.vmem [#allocation0], 72
    %54 = vst.msk [vmem:[%s53] sm:$0x1] %vm52, %v51
    %v55 = vld [vmem:[#allocation1] ss:$8 sm:$0xf]
    %v56 = vld [vmem:[#allocation1] ss:$8 sm:$0xf0]
    %vm57 = vcmask 1047556
    %v58 = vsel %vm57, %v56, %v55
    %59 = vst [vmem:[#allocation0] ss:$8 sm:$0xf] %v58
    %60 = vst [vmem:[#allocation0] ss:$8 sm:$0xf0] %v58
    %s61 = scalar_lea.vmem [#allocation1], 64
    %v62 = vld [vmem:[%s61] sm:$0x1]
    %s63 = scalar_lea.vmem [#allocation0], 64
    %64 = vst [vmem:[%s63] sm:$0x1] %v62
    %s65 = scalar_lea.vmem [#allocation1], 17
    %s66 = smov 3
    %v67 = vld [vmem:[%s65] ss:$8 sm:%s66]
    %s68 = scalar_lea.vmem [#allocation1], 4294967281
    %s69 = smov 12
    %v70 = vld [vmem:[%s68] ss:$8 sm:%s69]
    %vm71 = vcmask 1043458
    %v72 = vsel %vm71, %v70, %v67
    %s73 = scalar_lea.vmem [#allocation1], 17
    %s74 = smov 48
    %v75 = vld [vmem:[%s73] ss:$8 sm:%s74]
    %vm76 = vcmask 1045508
    %v77 = vsel %vm76, %v75, %v72
    %s78 = scalar_lea.vmem [#allocation1], 4294967281
    %s79 = smov 192
    %v80 = vld [vmem:[%s78] ss:$8 sm:%s79]
    %vm81 = vcmask 1047558
    %v82 = vsel %vm81, %v80, %v77
    %s83 = scalar_lea.vmem [#allocation1], 73
    %v84 = vld [vmem:[%s83] sm:$0x1]
    %vm85 = vcmask 1014784
    %v86 = vsel %vm85, %v84, %v82
    %87 = vrot.lane.b32.xlu0 %v86, 4
    %v88 = vpop.permute.xlu0 %87
    %vm89 = vcmask 31744
    %s90 = scalar_lea.vmem [#allocation0], 96
    %91 = vst.msk [vmem:[%s90] ss:$8 sm:$0x3] %vm89, %v88
    %s92 = scalar_lea.vmem [#allocation0], 64
    %93 = vst.msk [vmem:[%s92] ss:$8 sm:$0xc] %vm89, %v88
    %s94 = scalar_lea.vmem [#allocation0], 96
    %95 = vst.msk [vmem:[%s94] ss:$8 sm:$0x30] %vm89, %v88
    %s96 = scalar_lea.vmem [#allocation0], 64
    %97 = vst.msk [vmem:[%s96] ss:$8 sm:$0xc0] %vm89, %v88
    %vm98 = vcmask 64544
    %s99 = scalar_lea.vmem [#allocation0], 144
    %100 = vst.msk [vmem:[%s99] sm:$0x1] %vm98, %v88
    %s101 = scalar_lea.vmem [#allocation1], 65
    %v102 = vld [vmem:[%s101] sm:$0x1]
    %s103 = scalar_lea.vmem [#allocation1], 25
    %s104 = smov 3
    %v105 = vld [vmem:[%s103] ss:$-24 sm:%s104]
    %s106 = scalar_lea.vmem [#allocation1], 4294967289
    %s107 = smov 12
    %v108 = vld [vmem:[%s106] ss:$8 sm:%s107]
    %vm109 = vcmask 1043458
    %v110 = vsel %vm109, %v108, %v105
    %s111 = scalar_lea.vmem [#allocation1], 153
    %s112 = smov 48
    %v113 = vld [vmem:[%s111] ss:$-24 sm:%s112]
    %vm114 = vcmask 1045508
    %v115 = vsel %vm114, %v113, %v110
    %s116 = scalar_lea.vmem [#allocation1], 4294967289
    %s117 = smov 192
    %v118 = vld [vmem:[%s116] ss:$8 sm:%s117]
    %vm119 = vcmask 1047558
    %v120 = vsel %vm119, %v118, %v115
    %vm121 = vcmask 1014784
    %v122 = vsel %vm121, %v120, %v102
    %123 = vrot.lane.b32.xlu0 %v122, 4
    %v124 = vpop.permute.xlu0 %123
    %vm125 = vcmask 31744
    %s126 = scalar_lea.vmem [#allocation0], 144
    %127 = vst.msk [vmem:[%s126] sm:$0x1] %vm125, %v124
    %vm128 = vcmask 1047584
    %s129 = scalar_lea.vmem [#allocation0], 96
    %130 = vst.msk [vmem:[%s129] ss:$-24 sm:$0x3] %vm128, %v124
    %s131 = scalar_lea.vmem [#allocation0], 64
    %132 = vst.msk [vmem:[%s131] ss:$8 sm:$0xc] %vm128, %v124
    %s133 = scalar_lea.vmem [#allocation0], 224
    %134 = vst.msk [vmem:[%s133] ss:$-24 sm:$0x30] %vm128, %v124
    %s135 = scalar_lea.vmem [#allocation0], 64
    %136 = vst.msk [vmem:[%s135] ss:$8 sm:$0xc0] %vm128, %v124
    %s137 = scalar_lea.vmem [#allocation1], 65
    %v138 = vld [vmem:[%s137] sm:$0x1]
    %139 = vrot.lane.b32.xlu0 %v138, 4
    %v140 = vpop.permute.xlu0 %139
    %vm141 = vcmask 1047584
    %s142 = scalar_lea.vmem [#allocation0], 136
    %143 = vst.msk [vmem:[%s142] sm:$0x1] %vm141, %v140
    %s145 = sshllo.u32 0, 1
    %v147 = vld [vmem:[#allocation0] sm:%s145]
    %s148 = sshllo.u32 0, 1
    %149 = vst [vmem:[%s1] sm:%s148] %v147
    %s150 = scalar_lea.vmem [#allocation0], 8
    %v151 = vld [vmem:[%s150] sm:%s145]
    %s152 = sshllo.u32 0, 1
    %s153 = scalar_lea.vmem %s1, 1
    %154 = vst [vmem:[%s153] sm:%s152] %v151
    %s155 = scalar_lea.vmem [#allocation0], 16
    %v156 = vld [vmem:[%s155] sm:%s145]
    %s157 = sshllo.u32 0, 1
    %s158 = smul.addr 1, 2
    %s159 = scalar_lea.vmem %s1, %s158
    %160 = vst [vmem:[%s159] sm:%s157] %v156
    %s161 = scalar_lea.vmem [#allocation0], 24
    %v162 = vld [vmem:[%s161] sm:%s145]
    %s163 = sshllo.u32 0, 1
    %s164 = smul.addr 1, 3
    %s165 = scalar_lea.vmem %s1, %s164
    %166 = vst [vmem:[%s165] sm:%s163] %v162
    %s167 = scalar_lea.vmem [#allocation0], 32
    %v168 = vld [vmem:[%s167] sm:%s145]
    %s169 = sshllo.u32 0, 1
    %s170 = smul.addr 1, 4
    %s171 = scalar_lea.vmem %s1, %s170
    %172 = vst [vmem:[%s171] sm:%s169] %v168
    %s173 = scalar_lea.vmem [#allocation0], 40
    %v174 = vld [vmem:[%s173] sm:%s145]
    %s175 = sshllo.u32 0, 1
    %s176 = smul.addr 1, 5
    %s177 = scalar_lea.vmem %s1, %s176
    %178 = vst [vmem:[%s177] sm:%s175] %v174
    %s179 = scalar_lea.vmem [#allocation0], 48
    %v180 = vld [vmem:[%s179] sm:%s145]
    %s181 = sshllo.u32 0, 1
    %s182 = smul.addr 1, 6
    %s183 = scalar_lea.vmem %s1, %s182
    %184 = vst [vmem:[%s183] sm:%s181] %v180
    %s185 = scalar_lea.vmem [#allocation0], 56
    %v186 = vld [vmem:[%s185] sm:%s145]
    %s187 = sshllo.u32 0, 1
    %s188 = smul.addr 1, 7
    %s189 = scalar_lea.vmem %s1, %s188
    %190 = vst [vmem:[%s189] sm:%s187] %v186
    %s191 = scalar_lea.vmem [#allocation0], 64
    %v192 = vld [vmem:[%s191] sm:%s145]
    %s193 = sshllo.u32 0, 1
    %s194 = smul.addr 1, 8
    %s195 = scalar_lea.vmem %s1, %s194
    %196 = vst [vmem:[%s195] sm:%s193] %v192
    %s197 = scalar_lea.vmem [#allocation0], 72
    %v198 = vld [vmem:[%s197] sm:%s145]
    %s199 = sshllo.u32 0, 1
    %s200 = smul.addr 1, 9
    %s201 = scalar_lea.vmem %s1, %s200
    %202 = vst [vmem:[%s201] sm:%s199] %v198
    %s203 = scalar_lea.vmem [#allocation0], 80
    %v204 = vld [vmem:[%s203] sm:%s145]
    %s205 = sshllo.u32 0, 1
    %s206 = smul.addr 1, 10
    %s207 = scalar_lea.vmem %s1, %s206
    %208 = vst [vmem:[%s207] sm:%s205] %v204
    %s209 = scalar_lea.vmem [#allocation0], 88
    %v210 = vld [vmem:[%s209] sm:%s145]
    %s211 = sshllo.u32 0, 1
    %s212 = smul.addr 1, 11
    %s213 = scalar_lea.vmem %s1, %s212
    %214 = vst [vmem:[%s213] sm:%s211] %v210
    %s215 = scalar_lea.vmem [#allocation0], 96
    %v216 = vld [vmem:[%s215] sm:%s145]
    %s217 = sshllo.u32 0, 1
    %s218 = smul.addr 1, 12
    %s219 = scalar_lea.vmem %s1, %s218
    %220 = vst [vmem:[%s219] sm:%s217] %v216
    %s221 = scalar_lea.vmem [#allocation0], 104
    %v222 = vld [vmem:[%s221] sm:%s145]
    %s223 = sshllo.u32 0, 1
    %s224 = smul.addr 1, 13
    %s225 = scalar_lea.vmem %s1, %s224
    %226 = vst [vmem:[%s225] sm:%s223] %v222
    %s227 = scalar_lea.vmem [#allocation0], 112
    %v228 = vld [vmem:[%s227] sm:%s145]
    %s229 = sshllo.u32 0, 1
    %s230 = smul.addr 1, 14
    %s231 = scalar_lea.vmem %s1, %s230
    %232 = vst [vmem:[%s231] sm:%s229] %v228
    %s233 = scalar_lea.vmem [#allocation0], 120
    %v234 = vld [vmem:[%s233] sm:%s145]
    %s235 = sshllo.u32 0, 1
    %s236 = smul.addr 1, 15
    %s237 = scalar_lea.vmem %s1, %s236
    %238 = vst [vmem:[%s237] sm:%s235] %v234
    %s239 = scalar_lea.vmem [#allocation0], 128
    %v240 = vld [vmem:[%s239] sm:%s145]
    %s241 = sshllo.u32 0, 1
    %s242 = smul.addr 1, 16
    %s243 = scalar_lea.vmem %s1, %s242
    %244 = vst [vmem:[%s243] sm:%s241] %v240
    %s245 = scalar_lea.vmem [#allocation0], 136
    %v246 = vld [vmem:[%s245] sm:%s145]
    %s247 = sshllo.u32 0, 1
    %s248 = smul.addr 1, 17
    %s249 = scalar_lea.vmem %s1, %s248
    %250 = vst [vmem:[%s249] sm:%s247] %v246
    %s251 = scalar_lea.vmem [#allocation0], 144
    %v252 = vld [vmem:[%s251] sm:%s145]
    %s253 = sshllo.u32 0, 1
    %s254 = smul.addr 1, 18
    %s255 = scalar_lea.vmem %s1, %s254
    %256 = vst [vmem:[%s255] sm:%s253] %v252

// kernel: decoder_block_forward.1
$region0: #{decoder_block_forward.1}
  #allocation0 [shape = 'u32[]', space=smem, size = 0x4, offset = 0x4, fixed_abs, tag = 'smem constant byte address 0x4 - core index']
  #allocation1 [shape = 'u32[144,128]{1,0:T(1,128)}', space=vmem, size = 0x12000, scoped, tag = 'internal scratch']
  %s0 = inlined_call_operand.vmem [shape: f32[9,2560], index: 0, kind: input, shape index: {}]
  %s1 = inlined_call_operand.vmem [shape: f32[8,80], index: 1, kind: input, shape index: {}]
  %s2 = inlined_call_operand.vmem [shape: f32[8,5], index: 2, kind: input, shape index: {}]
  %s3 = inlined_call_operand.vmem [shape: f32[8,2432], index: 3, kind: output, shape index: {}]
  %s4 = sld [smem:[#allocation0]]
  $region22: #{decoder_block_forward.1} parent=0
    _
  %s6 = ssub.s32 1, %s4
  %s7 = scalar_select 0, %s6, %s4
  // Predicated region
  $region2: #{decoder_block_forward.1} parent=0 // pred_check
    _
  $region3: #{decoder_block_forward.1} parent=0 // pred_check_branch
    %9 = sbr.rel (0) target = $region5
  $region4: #{decoder_block_forward.1} parent=0 // pred_region
    _
  $region5: #{decoder_block_forward.1} parent=0 // pred_fallthru
    _
  // Predicated region
  $region6: #{decoder_block_forward.1} parent=0 // pred_check
    _
  $region7: #{decoder_block_forward.1} parent=0 // pred_check_branch
    %11 = sbr.rel (0) target = $region9
  $region8: #{decoder_block_forward.1} parent=0 // pred_region
    _
  $region9: #{decoder_block_forward.1} parent=0 // pred_fallthru
    _
  // Predicated region
  $region10: #{decoder_block_forward.1} parent=0 // pred_check
    _
  $region11: #{decoder_block_forward.1} parent=0 // pred_check_branch
    %13 = sbr.rel (0) target = $region13
  $region12: #{decoder_block_forward.1} parent=0 // pred_region
    _
  $region13: #{decoder_block_forward.1} parent=0 // pred_fallthru
    _
  %v14 = vld [vmem:[%s0] sm:$0xff]
  %v15 = vld [vmem:[%s0 + $0x8] sm:$0xff]
  %v16 = vld [vmem:[%s0 + $0x10] sm:$0xff]
  %v17 = vld [vmem:[%s0 + $0x18] sm:$0xff]
  %v18 = vld [vmem:[%s0 + $0x20] sm:$0xff]
  %v19 = vld [vmem:[%s0 + $0x28] sm:$0xff]
  %v20 = vld [vmem:[%s0 + $0x30] sm:$0xff]
  %v21 = vld [vmem:[%s0 + $0x38] sm:$0xff]
  %v22 = vld [vmem:[%s0 + $0x40] sm:$0xff]
  %v23 = vld [vmem:[%s0 + $0x48] sm:$0xff]
  %v24 = vld [vmem:[%s0 + $0x50] sm:$0xff]
  %v25 = vld [vmem:[%s0 + $0x58] sm:$0xff]
  %v26 = vld [vmem:[%s0 + $0x60] sm:$0xff]
  %v27 = vld [vmem:[%s0 + $0x68] sm:$0xff]
  %v28 = vld [vmem:[%s0 + $0x70] sm:$0xff]
  %v29 = vld [vmem:[%s0 + $0x78] sm:$0xff]
  %v30 = vld [vmem:[%s0 + $0x80] sm:$0xff]
  %v31 = vld [vmem:[%s0 + $0x88] sm:$0xff]
  %v32 = vld [vmem:[%s0 + $0x90] sm:$0xff]
  %v33 = vld [vmem:[%s0 + $0x98] sm:$0xff]
  %s34 = scalar_lea.vmem %s0, 160
  %v35 = vld [vmem:[%s34] ss:$8 sm:$0xf]
  %v36 = vld [vmem:[%s34] ss:$8 sm:$0xf0]
  %v37 = vor.u32 %v35, %v36
  %s38 = scalar_lea.vmem %s0, 224
  %v39 = vld [vmem:[%s38] ss:$8 sm:$0xf]
  %v40 = vld [vmem:[%s38] ss:$8 sm:$0xf0]
  %v41 = vor.u32 %v39, %v40
  %s42 = scalar_lea.vmem %s0, 288
  %v43 = vld [vmem:[%s42] ss:$8 sm:$0xf]
  %v44 = vld [vmem:[%s2] sm:$0xff]
  %v48 = vlaneseq
  %v49 = vshrl.u32 %v48, 7
  %v50 = vsub.s32 0, %v49
  %v51 = vrot.slane %v37, %v50
  %v52 = vlaneseq
  %v53 = vshrl.u32 %v52, 7
  %v54 = vsub.s32 1, %v53
  %v55 = vrot.slane %v37, %v54
  %v56 = vlaneseq
  %v57 = vshrl.u32 %v56, 7
  %v58 = vsub.s32 2, %v57
  %v59 = vrot.slane %v37, %v58
  %v60 = vlaneseq
  %v61 = vshrl.u32 %v60, 7
  %v62 = vsub.s32 3, %v61
  %v63 = vrot.slane %v37, %v62
  %v64 = vlaneseq
  %v65 = vshrl.u32 %v64, 7
  %v66 = vsub.s32 4, %v65
  %v67 = vrot.slane %v37, %v66
  %v68 = vlaneseq
  %v69 = vshrl.u32 %v68, 7
  %v70 = vsub.s32 5, %v69
  %v71 = vrot.slane %v37, %v70
  %v72 = vlaneseq
  %v73 = vshrl.u32 %v72, 7
  %v74 = vsub.s32 6, %v73
  %v75 = vrot.slane %v37, %v74
  %v76 = vlaneseq
  %v77 = vshrl.u32 %v76, 7
  %v78 = vsub.s32 7, %v77
  %v79 = vrot.slane %v37, %v78
  %v80 = vlaneseq
  %v81 = vshrl.u32 %v80, 7
  %v82 = vsub.s32 0, %v81
  %v83 = vrot.slane %v41, %v82
  %v84 = vlaneseq
  %v85 = vshrl.u32 %v84, 7
  %v86 = vsub.s32 1, %v85
  %v87 = vrot.slane %v41, %v86
  %v88 = vlaneseq
  %v89 = vshrl.u32 %v88, 7
  %v90 = vsub.s32 2, %v89
  %v91 = vrot.slane %v41, %v90
  %v92 = vlaneseq
  %v93 = vshrl.u32 %v92, 7
  %v94 = vsub.s32 3, %v93
  %v95 = vrot.slane %v41, %v94
  %v96 = vlaneseq
  %v97 = vshrl.u32 %v96, 7
  %v98 = vsub.s32 4, %v97
  %v99 = vrot.slane %v41, %v98
  %v100 = vlaneseq
  %v101 = vshrl.u32 %v100, 7
  %v102 = vsub.s32 5, %v101
  %v103 = vrot.slane %v41, %v102
  %v104 = vlaneseq
  %v105 = vshrl.u32 %v104, 7
  %v106 = vsub.s32 6, %v105
  %v107 = vrot.slane %v41, %v106
  %v108 = vlaneseq
  %v109 = vshrl.u32 %v108, 7
  %v110 = vsub.s32 7, %v109
  %v111 = vrot.slane %v41, %v110
  %v112 = vlaneseq
  %v113 = vshrl.u32 %v112, 7
  %v114 = vsub.s32 0, %v113
  %v115 = vrot.slane %v43, %v114
  %v116 = vlaneseq
  %v117 = vshrl.u32 %v116, 7
  %v118 = vsub.s32 1, %v117
  %v119 = vrot.slane %v43, %v118
  %v120 = vlaneseq
  %v121 = vshrl.u32 %v120, 7
  %v122 = vsub.s32 2, %v121
  %v123 = vrot.slane %v43, %v122
  %v124 = vlaneseq
  %v125 = vshrl.u32 %v124, 7
  %v126 = vsub.s32 3, %v125
  %v127 = vrot.slane %v43, %v126
  %v148 = vmul.f32 %v14, %v51
  %v149 = vmul.f32 %v15, %v55
  %v150 = vmul.f32 %v16, %v59
  %v151 = vmul.f32 %v17, %v63
  %v152 = vmul.f32 %v18, %v67
  %v153 = vmul.f32 %v19, %v71
  %v154 = vmul.f32 %v20, %v75
  %v155 = vmul.f32 %v21, %v79
  %v156 = vmul.f32 %v22, %v83
  %v157 = vmul.f32 %v23, %v87
  %v158 = vmul.f32 %v24, %v91
  %v159 = vmul.f32 %v25, %v95
  %v160 = vmul.f32 %v26, %v99
  %v161 = vmul.f32 %v27, %v103
  %v162 = vmul.f32 %v28, %v107
  %v163 = vmul.f32 %v29, %v111
  %v164 = vmul.f32 %v30, %v115
  %v165 = vmul.f32 %v31, %v119
  %v166 = vmul.f32 %v32, %v123
  %v167 = vmul.f32 %v33, %v127
  %v168 = vadd.f32 %v148, %v149
  %v169 = vadd.f32 %v168, %v150
  %v170 = vadd.f32 %v169, %v151
  %v171 = vadd.f32 %v170, %v152
  %v172 = vadd.f32 %v171, %v153
  %v173 = vadd.f32 %v172, %v154
  %v174 = vadd.f32 %v173, %v155
  %v175 = vadd.f32 %v174, %v156
  %v176 = vadd.f32 %v175, %v157
  %v177 = vadd.f32 %v176, %v158
  %v178 = vadd.f32 %v177, %v159
  %v179 = vadd.f32 %v178, %v160
  %v180 = vadd.f32 %v179, %v161
  %v181 = vadd.f32 %v180, %v162
  %v182 = vadd.f32 %v181, %v163
  %v183 = vadd.f32 %v182, %v164
  %v184 = vadd.f32 %v183, %v165
  %v185 = vadd.f32 %v184, %v166
  %v186 = vadd.f32 %v185, %v167
  %187 = vadd.xlane.f32.xlu0 %v186
  %v188 = vpop.xlane.xlu0 %187
  %v189 = vmul.f32 %v188, 0.00048828125
  %v190 = vsub.f32 %v14, %v189
  %v191 = vsub.f32 %v15, %v189
  %v192 = vsub.f32 %v16, %v189
  %v193 = vsub.f32 %v17, %v189
  %v194 = vsub.f32 %v18, %v189
  %v195 = vsub.f32 %v19, %v189
  %v196 = vsub.f32 %v20, %v189
  %v197 = vsub.f32 %v21, %v189
  %v198 = vsub.f32 %v22, %v189
  %v199 = vsub.f32 %v23, %v189
  %v200 = vsub.f32 %v24, %v189
  %v201 = vsub.f32 %v25, %v189
  %v202 = vsub.f32 %v26, %v189
  %v203 = vsub.f32 %v27, %v189
  %v204 = vsub.f32 %v28, %v189
  %v205 = vsub.f32 %v29, %v189
  %v206 = vsub.f32 %v30, %v189
  %v207 = vsub.f32 %v31, %v189
  %v208 = vsub.f32 %v32, %v189
  %v209 = vsub.f32 %v33, %v189
  %v210 = vmul.f32 %v190, %v51
  %v211 = vmul.f32 %v191, %v55
  %v212 = vmul.f32 %v192, %v59
  %v213 = vmul.f32 %v193, %v63
  %v214 = vmul.f32 %v194, %v67
  %v215 = vmul.f32 %v195, %v71
  %v216 = vmul.f32 %v196, %v75
  %v217 = vmul.f32 %v197, %v79
  %v218 = vmul.f32 %v198, %v83
  %v219 = vmul.f32 %v199, %v87
  %v220 = vmul.f32 %v200, %v91
  %v221 = vmul.f32 %v201, %v95
  %v222 = vmul.f32 %v202, %v99
  %v223 = vmul.f32 %v203, %v103
  %v224 = vmul.f32 %v204, %v107
  %v225 = vmul.f32 %v205, %v111
  %v226 = vmul.f32 %v206, %v115
  %v227 = vmul.f32 %v207, %v119
  %v228 = vmul.f32 %v208, %v123
  %v229 = vmul.f32 %v209, %v127
  %v230 = vmul.f32 %v210, %v210
  %v231 = vmul.f32 %v211, %v211
  %v232 = vmul.f32 %v212, %v212
  %v233 = vmul.f32 %v213, %v213
  %v234 = vmul.f32 %v214, %v214
  %v235 = vmul.f32 %v215, %v215
  %v236 = vmul.f32 %v216, %v216
  %v237 = vmul.f32 %v217, %v217
  %v238 = vmul.f32 %v218, %v218
  %v239 = vmul.f32 %v219, %v219
  %v240 = vmul.f32 %v220, %v220
  %v241 = vmul.f32 %v221, %v221
  %v242 = vmul.f32 %v222, %v222
  %v243 = vmul.f32 %v223, %v223
  %v244 = vmul.f32 %v224, %v224
  %v245 = vmul.f32 %v225, %v225
  %v246 = vmul.f32 %v226, %v226
  %v247 = vmul.f32 %v227, %v227
  %v248 = vmul.f32 %v228, %v228
  %v249 = vmul.f32 %v229, %v229
  %v250 = vadd.f32 %v230, %v231
  %v251 = vadd.f32 %v250, %v232
  %v252 = vadd.f32 %v251, %v233
  %v253 = vadd.f32 %v252, %v234
  %v254 = vadd.f32 %v253, %v235
  %v255 = vadd.f32 %v254, %v236
  %v256 = vadd.f32 %v255, %v237
  %v257 = vadd.f32 %v256, %v238
  %v258 = vadd.f32 %v257, %v239
  %v259 = vadd.f32 %v258, %v240
  %v260 = vadd.f32 %v259, %v241
  %v261 = vadd.f32 %v260, %v242
  %v262 = vadd.f32 %v261, %v243
  %v263 = vadd.f32 %v262, %v244
  %v264 = vadd.f32 %v263, %v245
  %v265 = vadd.f32 %v264, %v246
  %v266 = vadd.f32 %v265, %v247
  %v267 = vadd.f32 %v266, %v248
  %v268 = vadd.f32 %v267, %v249
  %269 = vadd.xlane.f32.xlu0 %v268
  %v270 = vpop.xlane.xlu0 %269
  %v271 = vmul.f32 %v270, 0.00048828125
  %v272 = vadd.f32 %v271, 1e-05
  %v273 = vrsqrt.pop %v272
  %v274 = vmul.f32 %v44, %v273
  %276 = vset.pattern.permute.xlu0 0
  %277 = vperm.xlu0 %276, %v274
  %v278 = vpop.permute.xlu0 %277
  %v280 = vmul.f32 %v14, %v278
  %v281 = vmul.f32 %v15, %v278
  %v282 = vmul.f32 %v16, %v278
  %v283 = vmul.f32 %v17, %v278
  %v284 = vmul.f32 %v18, %v278
  %v285 = vmul.f32 %v19, %v278
  %v286 = vmul.f32 %v20, %v278
  %v287 = vmul.f32 %v21, %v278
  %v288 = vmul.f32 %v22, %v278
  %v289 = vmul.f32 %v23, %v278
  %v290 = vmul.f32 %v24, %v278
  %v291 = vmul.f32 %v25, %v278
  %v292 = vmul.f32 %v26, %v278
  %v293 = vmul.f32 %v27, %v278
  %v294 = vmul.f32 %v28, %v278
  %v295 = vmul.f32 %v29, %v278
  %v296 = vmul.f32 %v30, %v278
  %v297 = vmul.f32 %v31, %v278
  %v298 = vmul.f32 %v32, %v278
  %v299 = vmul.f32 %v33, %v278
  %320 = vrot.lane.b32.xlu0 %v280, 127
  %v321 = vpop.permute.xlu0 %320
  %322 = vrot.lane.b32.xlu0 %v281, 127
  %v323 = vpop.permute.xlu0 %322
  %324 = vrot.lane.b32.xlu0 %v282, 127
  %v325 = vpop.permute.xlu0 %324
  %326 = vrot.lane.b32.xlu0 %v283, 127
  %v327 = vpop.permute.xlu0 %326
  %328 = vrot.lane.b32.xlu0 %v284, 127
  %v329 = vpop.permute.xlu0 %328
  %330 = vrot.lane.b32.xlu0 %v285, 127
  %v331 = vpop.permute.xlu0 %330
  %332 = vrot.lane.b32.xlu0 %v286, 127
  %v333 = vpop.permute.xlu0 %332
  %334 = vrot.lane.b32.xlu0 %v287, 127
  %v335 = vpop.permute.xlu0 %334
  %336 = vrot.lane.b32.xlu0 %v288, 127
  %v337 = vpop.permute.xlu0 %336
  %338 = vrot.lane.b32.xlu0 %v289, 127
  %v339 = vpop.permute.xlu0 %338
  %340 = vrot.lane.b32.xlu0 %v290, 127
  %v341 = vpop.permute.xlu0 %340
  %342 = vrot.lane.b32.xlu0 %v291, 127
  %v343 = vpop.permute.xlu0 %342
  %344 = vrot.lane.b32.xlu0 %v292, 127
  %v345 = vpop.permute.xlu0 %344
  %346 = vrot.lane.b32.xlu0 %v293, 127
  %v347 = vpop.permute.xlu0 %346
  %348 = vrot.lane.b32.xlu0 %v294, 127
  %v349 = vpop.permute.xlu0 %348
  %350 = vrot.lane.b32.xlu0 %v295, 127
  %v351 = vpop.permute.xlu0 %350
  %352 = vrot.lane.b32.xlu0 %v296, 127
  %v353 = vpop.permute.xlu0 %352
  %354 = vrot.lane.b32.xlu0 %v297, 127
  %v355 = vpop.permute.xlu0 %354
  %356 = vrot.lane.b32.xlu0 %v298, 127
  %v357 = vpop.permute.xlu0 %356
  %358 = vrot.lane.b32.xlu0 %v299, 127
  %v359 = vpop.permute.xlu0 %358
  %vm360 = vcmask 1039360
  %v361 = vsel %vm360, %v321, %v323
  %v362 = vsel %vm360, %v323, %v325
  %v363 = vsel %vm360, %v325, %v327
  %v364 = vsel %vm360, %v327, %v329
  %v365 = vsel %vm360, %v329, %v331
  %v366 = vsel %vm360, %v331, %v333
  %v367 = vsel %vm360, %v333, %v335
  %v368 = vsel %vm360, %v335, %v337
  %v369 = vsel %vm360, %v337, %v339
  %v370 = vsel %vm360, %v339, %v341
  %v371 = vsel %vm360, %v341, %v343
  %v372 = vsel %vm360, %v343, %v345
  %v373 = vsel %vm360, %v345, %v347
  %v374 = vsel %vm360, %v347, %v349
  %v375 = vsel %vm360, %v349, %v351
  %v376 = vsel %vm360, %v351, %v353
  %v377 = vsel %vm360, %v353, %v355
  %v378 = vsel %vm360, %v355, %v357
  %v379 = vsel %vm360, %v357, %v359
  %380 = vrot.lane.b32.xlu0 %v280, 126
  %v381 = vpop.permute.xlu0 %380
  %382 = vrot.lane.b32.xlu0 %v281, 126
  %v383 = vpop.permute.xlu0 %382
  %384 = vrot.lane.b32.xlu0 %v282, 126
  %v385 = vpop.permute.xlu0 %384
  %386 = vrot.lane.b32.xlu0 %v283, 126
  %v387 = vpop.permute.xlu0 %386
  %388 = vrot.lane.b32.xlu0 %v284, 126
  %v389 = vpop.permute.xlu0 %388
  %390 = vrot.lane.b32.xlu0 %v285, 126
  %v391 = vpop.permute.xlu0 %390
  %392 = vrot.lane.b32.xlu0 %v286, 126
  %v393 = vpop.permute.xlu0 %392
  %394 = vrot.lane.b32.xlu0 %v287, 126
  %v395 = vpop.permute.xlu0 %394
  %396 = vrot.lane.b32.xlu0 %v288, 126
  %v397 = vpop.permute.xlu0 %396
  %398 = vrot.lane.b32.xlu0 %v289, 126
  %v399 = vpop.permute.xlu0 %398
  %400 = vrot.lane.b32.xlu0 %v290, 126
  %v401 = vpop.permute.xlu0 %400
  %402 = vrot.lane.b32.xlu0 %v291, 126
  %v403 = vpop.permute.xlu0 %402
  %404 = vrot.lane.b32.xlu0 %v292, 126
  %v405 = vpop.permute.xlu0 %404
  %406 = vrot.lane.b32.xlu0 %v293, 126
  %v407 = vpop.permute.xlu0 %406
  %408 = vrot.lane.b32.xlu0 %v294, 126
  %v409 = vpop.permute.xlu0 %408
  %410 = vrot.lane.b32.xlu0 %v295, 126
  %v411 = vpop.permute.xlu0 %410
  %412 = vrot.lane.b32.xlu0 %v296, 126
  %v413 = vpop.permute.xlu0 %412
  %414 = vrot.lane.b32.xlu0 %v297, 126
  %v415 = vpop.permute.xlu0 %414
  %416 = vrot.lane.b32.xlu0 %v298, 126
  %v417 = vpop.permute.xlu0 %416
  %418 = vrot.lane.b32.xlu0 %v299, 126
  %v419 = vpop.permute.xlu0 %418
  %vm420 = vcmask 1031168
  %v421 = vsel %vm420, %v381, %v383
  %v422 = vsel %vm420, %v383, %v385
  %v423 = vsel %vm420, %v385, %v387
  %v424 = vsel %vm420, %v387, %v389
  %v425 = vsel %vm420, %v389, %v391
  %v426 = vsel %vm420, %v391, %v393
  %v427 = vsel %vm420, %v393, %v395
  %v428 = vsel %vm420, %v395, %v397
  %v429 = vsel %vm420, %v397, %v399
  %v430 = vsel %vm420, %v399, %v401
  %v431 = vsel %vm420, %v401, %v403
  %v432 = vsel %vm420, %v403, %v405
  %v433 = vsel %vm420, %v405, %v407
  %v434 = vsel %vm420, %v407, %v409
  %v435 = vsel %vm420, %v409, %v411
  %v436 = vsel %vm420, %v411, %v413
  %v437 = vsel %vm420, %v413, %v415
  %v438 = vsel %vm420, %v415, %v417
  %v439 = vsel %vm420, %v417, %v419
  %440 = vrot.lane.b32.xlu0 %v280, 94
  %v441 = vpop.permute.xlu0 %440
  %442 = vrot.lane.b32.xlu0 %v281, 94
  %v443 = vpop.permute.xlu0 %442
  %444 = vrot.lane.b32.xlu0 %v282, 94
  %v445 = vpop.permute.xlu0 %444
  %446 = vrot.lane.b32.xlu0 %v283, 94
  %v447 = vpop.permute.xlu0 %446
  %448 = vrot.lane.b32.xlu0 %v284, 94
  %v449 = vpop.permute.xlu0 %448
  %450 = vrot.lane.b32.xlu0 %v285, 94
  %v451 = vpop.permute.xlu0 %450
  %452 = vrot.lane.b32.xlu0 %v286, 94
  %v453 = vpop.permute.xlu0 %452
  %454 = vrot.lane.b32.xlu0 %v287, 94
  %v455 = vpop.permute.xlu0 %454
  %456 = vrot.lane.b32.xlu0 %v288, 94
  %v457 = vpop.permute.xlu0 %456
  %458 = vrot.lane.b32.xlu0 %v289, 94
  %v459 = vpop.permute.xlu0 %458
  %460 = vrot.lane.b32.xlu0 %v290, 94
  %v461 = vpop.permute.xlu0 %460
  %462 = vrot.lane.b32.xlu0 %v291, 94
  %v463 = vpop.permute.xlu0 %462
  %464 = vrot.lane.b32.xlu0 %v292, 94
  %v465 = vpop.permute.xlu0 %464
  %466 = vrot.lane.b32.xlu0 %v293, 94
  %v467 = vpop.permute.xlu0 %466
  %468 = vrot.lane.b32.xlu0 %v294, 94
  %v469 = vpop.permute.xlu0 %468
  %470 = vrot.lane.b32.xlu0 %v295, 94
  %v471 = vpop.permute.xlu0 %470
  %472 = vrot.lane.b32.xlu0 %v296, 94
  %v473 = vpop.permute.xlu0 %472
  %474 = vrot.lane.b32.xlu0 %v297, 94
  %v475 = vpop.permute.xlu0 %474
  %476 = vrot.lane.b32.xlu0 %v298, 94
  %v477 = vpop.permute.xlu0 %476
  %478 = vrot.lane.b32.xlu0 %v299, 94
  %v479 = vpop.permute.xlu0 %478
  %vm480 = vcmask 769024
  %v481 = vsel %vm480, %v441, %v443
  %v482 = vsel %vm480, %v443, %v445
  %v483 = vsel %vm480, %v445, %v447
  %v484 = vsel %vm480, %v447, %v449
  %v485 = vsel %vm480, %v449, %v451
  %v486 = vsel %vm480, %v451, %v453
  %v487 = vsel %vm480, %v453, %v455
  %v488 = vsel %vm480, %v455, %v457
  %v489 = vsel %vm480, %v457, %v459
  %v490 = vsel %vm480, %v459, %v461
  %v491 = vsel %vm480, %v461, %v463
  %v492 = vsel %vm480, %v463, %v465
  %v493 = vsel %vm480, %v465, %v467
  %v494 = vsel %vm480, %v467, %v469
  %v495 = vsel %vm480, %v469, %v471
  %v496 = vsel %vm480, %v471, %v473
  %v497 = vsel %vm480, %v473, %v475
  %v498 = vsel %vm480, %v475, %v477
  %v499 = vsel %vm480, %v477, %v479
  %500 = vrot.lane.b32.xlu0 %v280, 93
  %v501 = vpop.permute.xlu0 %500
  %502 = vrot.lane.b32.xlu0 %v281, 93
  %v503 = vpop.permute.xlu0 %502
  %504 = vrot.lane.b32.xlu0 %v282, 93
  %v505 = vpop.permute.xlu0 %504
  %506 = vrot.lane.b32.xlu0 %v283, 93
  %v507 = vpop.permute.xlu0 %506
  %508 = vrot.lane.b32.xlu0 %v284, 93
  %v509 = vpop.permute.xlu0 %508
  %510 = vrot.lane.b32.xlu0 %v285, 93
  %v511 = vpop.permute.xlu0 %510
  %512 = vrot.lane.b32.xlu0 %v286, 93
  %v513 = vpop.permute.xlu0 %512
  %514 = vrot.lane.b32.xlu0 %v287, 93
  %v515 = vpop.permute.xlu0 %514
  %516 = vrot.lane.b32.xlu0 %v288, 93
  %v517 = vpop.permute.xlu0 %516
  %518 = vrot.lane.b32.xlu0 %v289, 93
  %v519 = vpop.permute.xlu0 %518
  %520 = vrot.lane.b32.xlu0 %v290, 93
  %v521 = vpop.permute.xlu0 %520
  %522 = vrot.lane.b32.xlu0 %v291, 93
  %v523 = vpop.permute.xlu0 %522
  %524 = vrot.lane.b32.xlu0 %v292, 93
  %v525 = vpop.permute.xlu0 %524
  %526 = vrot.lane.b32.xlu0 %v293, 93
  %v527 = vpop.permute.xlu0 %526
  %528 = vrot.lane.b32.xlu0 %v294, 93
  %v529 = vpop.permute.xlu0 %528
  %530 = vrot.lane.b32.xlu0 %v295, 93
  %v531 = vpop.permute.xlu0 %530
  %532 = vrot.lane.b32.xlu0 %v296, 93
  %v533 = vpop.permute.xlu0 %532
  %534 = vrot.lane.b32.xlu0 %v297, 93
  %v535 = vpop.permute.xlu0 %534
  %536 = vrot.lane.b32.xlu0 %v298, 93
  %v537 = vpop.permute.xlu0 %536
  %538 = vrot.lane.b32.xlu0 %v299, 93
  %v539 = vpop.permute.xlu0 %538
  %vm540 = vcmask 760832
  %v541 = vsel %vm540, %v501, %v503
  %v542 = vsel %vm540, %v503, %v505
  %v543 = vsel %vm540, %v505, %v507
  %v544 = vsel %vm540, %v507, %v509
  %v545 = vsel %vm540, %v509, %v511
  %v546 = vsel %vm540, %v511, %v513
  %v547 = vsel %vm540, %v513, %v515
  %v548 = vsel %vm540, %v515, %v517
  %v549 = vsel %vm540, %v517, %v519
  %v550 = vsel %vm540, %v519, %v521
  %v551 = vsel %vm540, %v521, %v523
  %v552 = vsel %vm540, %v523, %v525
  %v553 = vsel %vm540, %v525, %v527
  %v554 = vsel %vm540, %v527, %v529
  %v555 = vsel %vm540, %v529, %v531
  %v556 = vsel %vm540, %v531, %v533
  %v557 = vsel %vm540, %v533, %v535
  %v558 = vsel %vm540, %v535, %v537
  %v559 = vsel %vm540, %v537, %v539
  %560 = vrot.lane.b32.xlu0 %v280, 92
  %v561 = vpop.permute.xlu0 %560
  %562 = vrot.lane.b32.xlu0 %v281, 92
  %v563 = vpop.permute.xlu0 %562
  %564 = vrot.lane.b32.xlu0 %v282, 92
  %v565 = vpop.permute.xlu0 %564
  %566 = vrot.lane.b32.xlu0 %v283, 92
  %v567 = vpop.permute.xlu0 %566
  %568 = vrot.lane.b32.xlu0 %v284, 92
  %v569 = vpop.permute.xlu0 %568
  %570 = vrot.lane.b32.xlu0 %v285, 92
  %v571 = vpop.permute.xlu0 %570
  %572 = vrot.lane.b32.xlu0 %v286, 92
  %v573 = vpop.permute.xlu0 %572
  %574 = vrot.lane.b32.xlu0 %v287, 92
  %v575 = vpop.permute.xlu0 %574
  %576 = vrot.lane.b32.xlu0 %v288, 92
  %v577 = vpop.permute.xlu0 %576
  %578 = vrot.lane.b32.xlu0 %v289, 92
  %v579 = vpop.permute.xlu0 %578
  %580 = vrot.lane.b32.xlu0 %v290, 92
  %v581 = vpop.permute.xlu0 %580
  %582 = vrot.lane.b32.xlu0 %v291, 92
  %v583 = vpop.permute.xlu0 %582
  %584 = vrot.lane.b32.xlu0 %v292, 92
  %v585 = vpop.permute.xlu0 %584
  %586 = vrot.lane.b32.xlu0 %v293, 92
  %v587 = vpop.permute.xlu0 %586
  %588 = vrot.lane.b32.xlu0 %v294, 92
  %v589 = vpop.permute.xlu0 %588
  %590 = vrot.lane.b32.xlu0 %v295, 92
  %v591 = vpop.permute.xlu0 %590
  %592 = vrot.lane.b32.xlu0 %v296, 92
  %v593 = vpop.permute.xlu0 %592
  %594 = vrot.lane.b32.xlu0 %v297, 92
  %v595 = vpop.permute.xlu0 %594
  %596 = vrot.lane.b32.xlu0 %v298, 92
  %v597 = vpop.permute.xlu0 %596
  %598 = vrot.lane.b32.xlu0 %v299, 92
  %v599 = vpop.permute.xlu0 %598
  %vm600 = vcmask 752640
  %v601 = vsel %vm600, %v561, %v563
  %v602 = vsel %vm600, %v563, %v565
  %v603 = vsel %vm600, %v565, %v567
  %v604 = vsel %vm600, %v567, %v569
  %v605 = vsel %vm600, %v569, %v571
  %v606 = vsel %vm600, %v571, %v573
  %v607 = vsel %vm600, %v573, %v575
  %v608 = vsel %vm600, %v575, %v577
  %v609 = vsel %vm600, %v577, %v579
  %v610 = vsel %vm600, %v579, %v581
  %v611 = vsel %vm600, %v581, %v583
  %v612 = vsel %vm600, %v583, %v585
  %v613 = vsel %vm600, %v585, %v587
  %v614 = vsel %vm600, %v587, %v589
  %v615 = vsel %vm600, %v589, %v591
  %v616 = vsel %vm600, %v591, %v593
  %v617 = vsel %vm600, %v593, %v595
  %v618 = vsel %vm600, %v595, %v597
  %v619 = vsel %vm600, %v597, %v599
  %620 = vrot.lane.b32.xlu0 %v280, 60
  %v621 = vpop.permute.xlu0 %620
  %622 = vrot.lane.b32.xlu0 %v281, 60
  %v623 = vpop.permute.xlu0 %622
  %624 = vrot.lane.b32.xlu0 %v282, 60
  %v625 = vpop.permute.xlu0 %624
  %626 = vrot.lane.b32.xlu0 %v283, 60
  %v627 = vpop.permute.xlu0 %626
  %628 = vrot.lane.b32.xlu0 %v284, 60
  %v629 = vpop.permute.xlu0 %628
  %630 = vrot.lane.b32.xlu0 %v285, 60
  %v631 = vpop.permute.xlu0 %630
  %632 = vrot.lane.b32.xlu0 %v286, 60
  %v633 = vpop.permute.xlu0 %632
  %634 = vrot.lane.b32.xlu0 %v287, 60
  %v635 = vpop.permute.xlu0 %634
  %636 = vrot.lane.b32.xlu0 %v288, 60
  %v637 = vpop.permute.xlu0 %636
  %638 = vrot.lane.b32.xlu0 %v289, 60
  %v639 = vpop.permute.xlu0 %638
  %640 = vrot.lane.b32.xlu0 %v290, 60
  %v641 = vpop.permute.xlu0 %640
  %642 = vrot.lane.b32.xlu0 %v291, 60
  %v643 = vpop.permute.xlu0 %642
  %644 = vrot.lane.b32.xlu0 %v292, 60
  %v645 = vpop.permute.xlu0 %644
  %646 = vrot.lane.b32.xlu0 %v293, 60
  %v647 = vpop.permute.xlu0 %646
  %648 = vrot.lane.b32.xlu0 %v294, 60
  %v649 = vpop.permute.xlu0 %648
  %650 = vrot.lane.b32.xlu0 %v295, 60
  %v651 = vpop.permute.xlu0 %650
  %652 = vrot.lane.b32.xlu0 %v296, 60
  %v653 = vpop.permute.xlu0 %652
  %654 = vrot.lane.b32.xlu0 %v297, 60
  %v655 = vpop.permute.xlu0 %654
  %656 = vrot.lane.b32.xlu0 %v298, 60
  %v657 = vpop.permute.xlu0 %656
  %658 = vrot.lane.b32.xlu0 %v299, 60
  %v659 = vpop.permute.xlu0 %658
  %vm660 = vcmask 490496
  %v661 = vsel %vm660, %v621, %v623
  %v662 = vsel %vm660, %v623, %v625
  %v663 = vsel %vm660, %v625, %v627
  %v664 = vsel %vm660, %v627, %v629
  %v665 = vsel %vm660, %v629, %v631
  %v666 = vsel %vm660, %v631, %v633
  %v667 = vsel %vm660, %v633, %v635
  %v668 = vsel %vm660, %v635, %v637
  %v669 = vsel %vm660, %v637, %v639
  %v670 = vsel %vm660, %v639, %v641
  %v671 = vsel %vm660, %v641, %v643
  %v672 = vsel %vm660, %v643, %v645
  %v673 = vsel %vm660, %v645, %v647
  %v674 = vsel %vm660, %v647, %v649
  %v675 = vsel %vm660, %v649, %v651
  %v676 = vsel %vm660, %v651, %v653
  %v677 = vsel %vm660, %v653, %v655
  %v678 = vsel %vm660, %v655, %v657
  %v679 = vsel %vm660, %v657, %v659
  %680 = vrot.lane.b32.xlu0 %v280, 59
  %v681 = vpop.permute.xlu0 %680
  %682 = vrot.lane.b32.xlu0 %v281, 59
  %v683 = vpop.permute.xlu0 %682
  %684 = vrot.lane.b32.xlu0 %v282, 59
  %v685 = vpop.permute.xlu0 %684
  %686 = vrot.lane.b32.xlu0 %v283, 59
  %v687 = vpop.permute.xlu0 %686
  %688 = vrot.lane.b32.xlu0 %v284, 59
  %v689 = vpop.permute.xlu0 %688
  %690 = vrot.lane.b32.xlu0 %v285, 59
  %v691 = vpop.permute.xlu0 %690
  %692 = vrot.lane.b32.xlu0 %v286, 59
  %v693 = vpop.permute.xlu0 %692
  %694 = vrot.lane.b32.xlu0 %v287, 59
  %v695 = vpop.permute.xlu0 %694
  %696 = vrot.lane.b32.xlu0 %v288, 59
  %v697 = vpop.permute.xlu0 %696
  %698 = vrot.lane.b32.xlu0 %v289, 59
  %v699 = vpop.permute.xlu0 %698
  %700 = vrot.lane.b32.xlu0 %v290, 59
  %v701 = vpop.permute.xlu0 %700
  %702 = vrot.lane.b32.xlu0 %v291, 59
  %v703 = vpop.permute.xlu0 %702
  %704 = vrot.lane.b32.xlu0 %v292, 59
  %v705 = vpop.permute.xlu0 %704
  %706 = vrot.lane.b32.xlu0 %v293, 59
  %v707 = vpop.permute.xlu0 %706
  %708 = vrot.lane.b32.xlu0 %v294, 59
  %v709 = vpop.permute.xlu0 %708
  %710 = vrot.lane.b32.xlu0 %v295, 59
  %v711 = vpop.permute.xlu0 %710
  %712 = vrot.lane.b32.xlu0 %v296, 59
  %v713 = vpop.permute.xlu0 %712
  %714 = vrot.lane.b32.xlu0 %v297, 59
  %v715 = vpop.permute.xlu0 %714
  %716 = vrot.lane.b32.xlu0 %v298, 59
  %v717 = vpop.permute.xlu0 %716
  %718 = vrot.lane.b32.xlu0 %v299, 59
  %v719 = vpop.permute.xlu0 %718
  %vm720 = vcmask 482304
  %v721 = vsel %vm720, %v681, %v683
  %v722 = vsel %vm720, %v683, %v685
  %v723 = vsel %vm720, %v685, %v687
  %v724 = vsel %vm720, %v687, %v689
  %v725 = vsel %vm720, %v689, %v691
  %v726 = vsel %vm720, %v691, %v693
  %v727 = vsel %vm720, %v693, %v695
  %v728 = vsel %vm720, %v695, %v697
  %v729 = vsel %vm720, %v697, %v699
  %v730 = vsel %vm720, %v699, %v701
  %v731 = vsel %vm720, %v701, %v703
  %v732 = vsel %vm720, %v703, %v705
  %v733 = vsel %vm720, %v705, %v707
  %v734 = vsel %vm720, %v707, %v709
  %v735 = vsel %vm720, %v709, %v711
  %v736 = vsel %vm720, %v711, %v713
  %v737 = vsel %vm720, %v713, %v715
  %v738 = vsel %vm720, %v715, %v717
  %v739 = vsel %vm720, %v717, %v719
  %740 = vrot.lane.b32.xlu0 %v280, 58
  %v741 = vpop.permute.xlu0 %740
  %742 = vrot.lane.b32.xlu0 %v281, 58
  %v743 = vpop.permute.xlu0 %742
  %744 = vrot.lane.b32.xlu0 %v282, 58
  %v745 = vpop.permute.xlu0 %744
  %746 = vrot.lane.b32.xlu0 %v283, 58
  %v747 = vpop.permute.xlu0 %746
  %748 = vrot.lane.b32.xlu0 %v284, 58
  %v749 = vpop.permute.xlu0 %748
  %750 = vrot.lane.b32.xlu0 %v285, 58
  %v751 = vpop.permute.xlu0 %750
  %752 = vrot.lane.b32.xlu0 %v286, 58
  %v753 = vpop.permute.xlu0 %752
  %754 = vrot.lane.b32.xlu0 %v287, 58
  %v755 = vpop.permute.xlu0 %754
  %756 = vrot.lane.b32.xlu0 %v288, 58
  %v757 = vpop.permute.xlu0 %756
  %758 = vrot.lane.b32.xlu0 %v289, 58
  %v759 = vpop.permute.xlu0 %758
  %760 = vrot.lane.b32.xlu0 %v290, 58
  %v761 = vpop.permute.xlu0 %760
  %762 = vrot.lane.b32.xlu0 %v291, 58
  %v763 = vpop.permute.xlu0 %762
  %764 = vrot.lane.b32.xlu0 %v292, 58
  %v765 = vpop.permute.xlu0 %764
  %766 = vrot.lane.b32.xlu0 %v293, 58
  %v767 = vpop.permute.xlu0 %766
  %768 = vrot.lane.b32.xlu0 %v294, 58
  %v769 = vpop.permute.xlu0 %768
  %770 = vrot.lane.b32.xlu0 %v295, 58
  %v771 = vpop.permute.xlu0 %770
  %772 = vrot.lane.b32.xlu0 %v296, 58
  %v773 = vpop.permute.xlu0 %772
  %774 = vrot.lane.b32.xlu0 %v297, 58
  %v775 = vpop.permute.xlu0 %774
  %776 = vrot.lane.b32.xlu0 %v298, 58
  %v777 = vpop.permute.xlu0 %776
  %778 = vrot.lane.b32.xlu0 %v299, 58
  %v779 = vpop.permute.xlu0 %778
  %vm780 = vcmask 474112
  %v781 = vsel %vm780, %v741, %v743
  %v782 = vsel %vm780, %v743, %v745
  %v783 = vsel %vm780, %v745, %v747
  %v784 = vsel %vm780, %v747, %v749
  %v785 = vsel %vm780, %v749, %v751
  %v786 = vsel %vm780, %v751, %v753
  %v787 = vsel %vm780, %v753, %v755
  %v788 = vsel %vm780, %v755, %v757
  %v789 = vsel %vm780, %v757, %v759
  %v790 = vsel %vm780, %v759, %v761
  %v791 = vsel %vm780, %v761, %v763
  %v792 = vsel %vm780, %v763, %v765
  %v793 = vsel %vm780, %v765, %v767
  %v794 = vsel %vm780, %v767, %v769
  %v795 = vsel %vm780, %v769, %v771
  %v796 = vsel %vm780, %v771, %v773
  %v797 = vsel %vm780, %v773, %v775
  %v798 = vsel %vm780, %v775, %v777
  %v799 = vsel %vm780, %v777, %v779
  %v800 = vld [vmem:[%s1] sm:$0xff]
  %801 = vrot.lane.b32.xlu0 %v280, 123
  %v802 = vpop.permute.xlu0 %801
  %803 = vrot.lane.b32.xlu0 %v281, 123
  %v804 = vpop.permute.xlu0 %803
  %805 = vrot.lane.b32.xlu0 %v282, 123
  %v806 = vpop.permute.xlu0 %805
  %807 = vrot.lane.b32.xlu0 %v283, 123
  %v808 = vpop.permute.xlu0 %807
  %809 = vrot.lane.b32.xlu0 %v284, 123
  %v810 = vpop.permute.xlu0 %809
  %811 = vrot.lane.b32.xlu0 %v285, 123
  %v812 = vpop.permute.xlu0 %811
  %813 = vrot.lane.b32.xlu0 %v286, 123
  %v814 = vpop.permute.xlu0 %813
  %815 = vrot.lane.b32.xlu0 %v287, 123
  %v816 = vpop.permute.xlu0 %815
  %817 = vrot.lane.b32.xlu0 %v288, 123
  %v818 = vpop.permute.xlu0 %817
  %819 = vrot.lane.b32.xlu0 %v289, 123
  %v820 = vpop.permute.xlu0 %819
  %821 = vrot.lane.b32.xlu0 %v290, 123
  %v822 = vpop.permute.xlu0 %821
  %823 = vrot.lane.b32.xlu0 %v291, 123
  %v824 = vpop.permute.xlu0 %823
  %825 = vrot.lane.b32.xlu0 %v292, 123
  %v826 = vpop.permute.xlu0 %825
  %827 = vrot.lane.b32.xlu0 %v293, 123
  %v828 = vpop.permute.xlu0 %827
  %829 = vrot.lane.b32.xlu0 %v294, 123
  %v830 = vpop.permute.xlu0 %829
  %831 = vrot.lane.b32.xlu0 %v295, 123
  %v832 = vpop.permute.xlu0 %831
  %833 = vrot.lane.b32.xlu0 %v296, 123
  %v834 = vpop.permute.xlu0 %833
  %835 = vrot.lane.b32.xlu0 %v297, 123
  %v836 = vpop.permute.xlu0 %835
  %837 = vrot.lane.b32.xlu0 %v298, 123
  %v838 = vpop.permute.xlu0 %837
  %839 = vrot.lane.b32.xlu0 %v299, 123
  %v840 = vpop.permute.xlu0 %839
  %841 = vrot.lane.b32.xlu0 %v361, 123
  %v842 = vpop.permute.xlu0 %841
  %843 = vrot.lane.b32.xlu0 %v362, 123
  %v844 = vpop.permute.xlu0 %843
  %845 = vrot.lane.b32.xlu0 %v363, 123
  %v846 = vpop.permute.xlu0 %845
  %847 = vrot.lane.b32.xlu0 %v364, 123
  %v848 = vpop.permute.xlu0 %847
  %849 = vrot.lane.b32.xlu0 %v365, 123
  %v850 = vpop.permute.xlu0 %849
  %851 = vrot.lane.b32.xlu0 %v366, 123
  %v852 = vpop.permute.xlu0 %851
  %853 = vrot.lane.b32.xlu0 %v367, 123
  %v854 = vpop.permute.xlu0 %853
  %855 = vrot.lane.b32.xlu0 %v368, 123
  %v856 = vpop.permute.xlu0 %855
  %857 = vrot.lane.b32.xlu0 %v369, 123
  %v858 = vpop.permute.xlu0 %857
  %859 = vrot.lane.b32.xlu0 %v370, 123
  %v860 = vpop.permute.xlu0 %859
  %861 = vrot.lane.b32.xlu0 %v371, 123
  %v862 = vpop.permute.xlu0 %861
  %863 = vrot.lane.b32.xlu0 %v372, 123
  %v864 = vpop.permute.xlu0 %863
  %865 = vrot.lane.b32.xlu0 %v373, 123
  %v866 = vpop.permute.xlu0 %865
  %867 = vrot.lane.b32.xlu0 %v374, 123
  %v868 = vpop.permute.xlu0 %867
  %869 = vrot.lane.b32.xlu0 %v375, 123
  %v870 = vpop.permute.xlu0 %869
  %871 = vrot.lane.b32.xlu0 %v376, 123
  %v872 = vpop.permute.xlu0 %871
  %873 = vrot.lane.b32.xlu0 %v377, 123
  %v874 = vpop.permute.xlu0 %873
  %875 = vrot.lane.b32.xlu0 %v378, 123
  %v876 = vpop.permute.xlu0 %875
  %877 = vrot.lane.b32.xlu0 %v379, 123
  %v878 = vpop.permute.xlu0 %877
  %879 = vrot.lane.b32.xlu0 %v359, 123
  %v880 = vpop.permute.xlu0 %879
  %881 = vrot.lane.b32.xlu0 %v421, 123
  %v882 = vpop.permute.xlu0 %881
  %883 = vrot.lane.b32.xlu0 %v422, 123
  %v884 = vpop.permute.xlu0 %883
  %885 = vrot.lane.b32.xlu0 %v423, 123
  %v886 = vpop.permute.xlu0 %885
  %887 = vrot.lane.b32.xlu0 %v424, 123
  %v888 = vpop.permute.xlu0 %887
  %889 = vrot.lane.b32.xlu0 %v425, 123
  %v890 = vpop.permute.xlu0 %889
  %891 = vrot.lane.b32.xlu0 %v426, 123
  %v892 = vpop.permute.xlu0 %891
  %893 = vrot.lane.b32.xlu0 %v427, 123
  %v894 = vpop.permute.xlu0 %893
  %895 = vrot.lane.b32.xlu0 %v428, 123
  %v896 = vpop.permute.xlu0 %895
  %897 = vrot.lane.b32.xlu0 %v429, 123
  %v898 = vpop.permute.xlu0 %897
  %899 = vrot.lane.b32.xlu0 %v430, 123
  %v900 = vpop.permute.xlu0 %899
  %901 = vrot.lane.b32.xlu0 %v431, 123
  %v902 = vpop.permute.xlu0 %901
  %903 = vrot.lane.b32.xlu0 %v432, 123
  %v904 = vpop.permute.xlu0 %903
  %905 = vrot.lane.b32.xlu0 %v433, 123
  %v906 = vpop.permute.xlu0 %905
  %907 = vrot.lane.b32.xlu0 %v434, 123
  %v908 = vpop.permute.xlu0 %907
  %909 = vrot.lane.b32.xlu0 %v435, 123
  %v910 = vpop.permute.xlu0 %909
  %911 = vrot.lane.b32.xlu0 %v436, 123
  %v912 = vpop.permute.xlu0 %911
  %913 = vrot.lane.b32.xlu0 %v437, 123
  %v914 = vpop.permute.xlu0 %913
  %915 = vrot.lane.b32.xlu0 %v438, 123
  %v916 = vpop.permute.xlu0 %915
  %917 = vrot.lane.b32.xlu0 %v439, 123
  %v918 = vpop.permute.xlu0 %917
  %919 = vrot.lane.b32.xlu0 %v419, 123
  %v920 = vpop.permute.xlu0 %919
  %921 = vrot.lane.b32.xlu0 %v481, 123
  %v922 = vpop.permute.xlu0 %921
  %923 = vrot.lane.b32.xlu0 %v482, 123
  %v924 = vpop.permute.xlu0 %923
  %925 = vrot.lane.b32.xlu0 %v483, 123
  %v926 = vpop.permute.xlu0 %925
  %927 = vrot.lane.b32.xlu0 %v484, 123
  %v928 = vpop.permute.xlu0 %927
  %929 = vrot.lane.b32.xlu0 %v485, 123
  %v930 = vpop.permute.xlu0 %929
  %931 = vrot.lane.b32.xlu0 %v486, 123
  %v932 = vpop.permute.xlu0 %931
  %933 = vrot.lane.b32.xlu0 %v487, 123
  %v934 = vpop.permute.xlu0 %933
  %935 = vrot.lane.b32.xlu0 %v488, 123
  %v936 = vpop.permute.xlu0 %935
  %937 = vrot.lane.b32.xlu0 %v489, 123
  %v938 = vpop.permute.xlu0 %937
  %939 = vrot.lane.b32.xlu0 %v490, 123
  %v940 = vpop.permute.xlu0 %939
  %941 = vrot.lane.b32.xlu0 %v491, 123
  %v942 = vpop.permute.xlu0 %941
  %943 = vrot.lane.b32.xlu0 %v492, 123
  %v944 = vpop.permute.xlu0 %943
  %945 = vrot.lane.b32.xlu0 %v493, 123
  %v946 = vpop.permute.xlu0 %945
  %947 = vrot.lane.b32.xlu0 %v494, 123
  %v948 = vpop.permute.xlu0 %947
  %949 = vrot.lane.b32.xlu0 %v495, 123
  %v950 = vpop.permute.xlu0 %949
  %951 = vrot.lane.b32.xlu0 %v496, 123
  %v952 = vpop.permute.xlu0 %951
  %953 = vrot.lane.b32.xlu0 %v497, 123
  %v954 = vpop.permute.xlu0 %953
  %955 = vrot.lane.b32.xlu0 %v498, 123
  %v956 = vpop.permute.xlu0 %955
  %957 = vrot.lane.b32.xlu0 %v499, 123
  %v958 = vpop.permute.xlu0 %957
  %959 = vrot.lane.b32.xlu0 %v479, 123
  %v960 = vpop.permute.xlu0 %959
  %961 = vrot.lane.b32.xlu0 %v541, 123
  %v962 = vpop.permute.xlu0 %961
  %963 = vrot.lane.b32.xlu0 %v542, 123
  %v964 = vpop.permute.xlu0 %963
  %965 = vrot.lane.b32.xlu0 %v543, 123
  %v966 = vpop.permute.xlu0 %965
  %967 = vrot.lane.b32.xlu0 %v544, 123
  %v968 = vpop.permute.xlu0 %967
  %969 = vrot.lane.b32.xlu0 %v545, 123
  %v970 = vpop.permute.xlu0 %969
  %971 = vrot.lane.b32.xlu0 %v546, 123
  %v972 = vpop.permute.xlu0 %971
  %973 = vrot.lane.b32.xlu0 %v547, 123
  %v974 = vpop.permute.xlu0 %973
  %975 = vrot.lane.b32.xlu0 %v548, 123
  %v976 = vpop.permute.xlu0 %975
  %977 = vrot.lane.b32.xlu0 %v549, 123
  %v978 = vpop.permute.xlu0 %977
  %979 = vrot.lane.b32.xlu0 %v550, 123
  %v980 = vpop.permute.xlu0 %979
  %981 = vrot.lane.b32.xlu0 %v551, 123
  %v982 = vpop.permute.xlu0 %981
  %983 = vrot.lane.b32.xlu0 %v552, 123
  %v984 = vpop.permute.xlu0 %983
  %985 = vrot.lane.b32.xlu0 %v553, 123
  %v986 = vpop.permute.xlu0 %985
  %987 = vrot.lane.b32.xlu0 %v554, 123
  %v988 = vpop.permute.xlu0 %987
  %989 = vrot.lane.b32.xlu0 %v555, 123
  %v990 = vpop.permute.xlu0 %989
  %991 = vrot.lane.b32.xlu0 %v556, 123
  %v992 = vpop.permute.xlu0 %991
  %993 = vrot.lane.b32.xlu0 %v557, 123
  %v994 = vpop.permute.xlu0 %993
  %995 = vrot.lane.b32.xlu0 %v558, 123
  %v996 = vpop.permute.xlu0 %995
  %997 = vrot.lane.b32.xlu0 %v559, 123
  %v998 = vpop.permute.xlu0 %997
  %999 = vrot.lane.b32.xlu0 %v539, 123
  %v1000 = vpop.permute.xlu0 %999
  %1001 = vrot.lane.b32.xlu0 %v601, 123
  %v1002 = vpop.permute.xlu0 %1001
  %1003 = vrot.lane.b32.xlu0 %v602, 123
  %v1004 = vpop.permute.xlu0 %1003
  %1005 = vrot.lane.b32.xlu0 %v603, 123
  %v1006 = vpop.permute.xlu0 %1005
  %1007 = vrot.lane.b32.xlu0 %v604, 123
  %v1008 = vpop.permute.xlu0 %1007
  %1009 = vrot.lane.b32.xlu0 %v605, 123
  %v1010 = vpop.permute.xlu0 %1009
  %1011 = vrot.lane.b32.xlu0 %v606, 123
  %v1012 = vpop.permute.xlu0 %1011
  %1013 = vrot.lane.b32.xlu0 %v607, 123
  %v1014 = vpop.permute.xlu0 %1013
  %1015 = vrot.lane.b32.xlu0 %v608, 123
  %v1016 = vpop.permute.xlu0 %1015
  %1017 = vrot.lane.b32.xlu0 %v609, 123
  %v1018 = vpop.permute.xlu0 %1017
  %1019 = vrot.lane.b32.xlu0 %v610, 123
  %v1020 = vpop.permute.xlu0 %1019
  %1021 = vrot.lane.b32.xlu0 %v611, 123
  %v1022 = vpop.permute.xlu0 %1021
  %1023 = vrot.lane.b32.xlu0 %v612, 123
  %v1024 = vpop.permute.xlu0 %1023
  %1025 = vrot.lane.b32.xlu0 %v613, 123
  %v1026 = vpop.permute.xlu0 %1025
  %1027 = vrot.lane.b32.xlu0 %v614, 123
  %v1028 = vpop.permute.xlu0 %1027
  %1029 = vrot.lane.b32.xlu0 %v615, 123
  %v1030 = vpop.permute.xlu0 %1029
  %1031 = vrot.lane.b32.xlu0 %v616, 123
  %v1032 = vpop.permute.xlu0 %1031
  %1033 = vrot.lane.b32.xlu0 %v617, 123
  %v1034 = vpop.permute.xlu0 %1033
  %1035 = vrot.lane.b32.xlu0 %v618, 123
  %v1036 = vpop.permute.xlu0 %1035
  %1037 = vrot.lane.b32.xlu0 %v619, 123
  %v1038 = vpop.permute.xlu0 %1037
  %1039 = vrot.lane.b32.xlu0 %v599, 123
  %v1040 = vpop.permute.xlu0 %1039
  %1041 = vrot.lane.b32.xlu0 %v661, 123
  %v1042 = vpop.permute.xlu0 %1041
  %1043 = vrot.lane.b32.xlu0 %v662, 123
  %v1044 = vpop.permute.xlu0 %1043
  %1045 = vrot.lane.b32.xlu0 %v663, 123
  %v1046 = vpop.permute.xlu0 %1045
  %1047 = vrot.lane.b32.xlu0 %v664, 123
  %v1048 = vpop.permute.xlu0 %1047
  %1049 = vrot.lane.b32.xlu0 %v665, 123
  %v1050 = vpop.permute.xlu0 %1049
  %1051 = vrot.lane.b32.xlu0 %v666, 123
  %v1052 = vpop.permute.xlu0 %1051
  %1053 = vrot.lane.b32.xlu0 %v667, 123
  %v1054 = vpop.permute.xlu0 %1053
  %1055 = vrot.lane.b32.xlu0 %v668, 123
  %v1056 = vpop.permute.xlu0 %1055
  %1057 = vrot.lane.b32.xlu0 %v669, 123
  %v1058 = vpop.permute.xlu0 %1057
  %1059 = vrot.lane.b32.xlu0 %v670, 123
  %v1060 = vpop.permute.xlu0 %1059
  %1061 = vrot.lane.b32.xlu0 %v671, 123
  %v1062 = vpop.permute.xlu0 %1061
  %1063 = vrot.lane.b32.xlu0 %v672, 123
  %v1064 = vpop.permute.xlu0 %1063
  %1065 = vrot.lane.b32.xlu0 %v673, 123
  %v1066 = vpop.permute.xlu0 %1065
  %1067 = vrot.lane.b32.xlu0 %v674, 123
  %v1068 = vpop.permute.xlu0 %1067
  %1069 = vrot.lane.b32.xlu0 %v675, 123
  %v1070 = vpop.permute.xlu0 %1069
  %1071 = vrot.lane.b32.xlu0 %v676, 123
  %v1072 = vpop.permute.xlu0 %1071
  %1073 = vrot.lane.b32.xlu0 %v677, 123
  %v1074 = vpop.permute.xlu0 %1073
  %1075 = vrot.lane.b32.xlu0 %v678, 123
  %v1076 = vpop.permute.xlu0 %1075
  %1077 = vrot.lane.b32.xlu0 %v679, 123
  %v1078 = vpop.permute.xlu0 %1077
  %1079 = vrot.lane.b32.xlu0 %v659, 123
  %v1080 = vpop.permute.xlu0 %1079
  %1081 = vrot.lane.b32.xlu0 %v721, 123
  %v1082 = vpop.permute.xlu0 %1081
  %1083 = vrot.lane.b32.xlu0 %v722, 123
  %v1084 = vpop.permute.xlu0 %1083
  %1085 = vrot.lane.b32.xlu0 %v723, 123
  %v1086 = vpop.permute.xlu0 %1085
  %1087 = vrot.lane.b32.xlu0 %v724, 123
  %v1088 = vpop.permute.xlu0 %1087
  %1089 = vrot.lane.b32.xlu0 %v725, 123
  %v1090 = vpop.permute.xlu0 %1089
  %1091 = vrot.lane.b32.xlu0 %v726, 123
  %v1092 = vpop.permute.xlu0 %1091
  %1093 = vrot.lane.b32.xlu0 %v727, 123
  %v1094 = vpop.permute.xlu0 %1093
  %1095 = vrot.lane.b32.xlu0 %v728, 123
  %v1096 = vpop.permute.xlu0 %1095
  %1097 = vrot.lane.b32.xlu0 %v729, 123
  %v1098 = vpop.permute.xlu0 %1097
  %1099 = vrot.lane.b32.xlu0 %v730, 123
  %v1100 = vpop.permute.xlu0 %1099
  %1101 = vrot.lane.b32.xlu0 %v731, 123
  %v1102 = vpop.permute.xlu0 %1101
  %1103 = vrot.lane.b32.xlu0 %v732, 123
  %v1104 = vpop.permute.xlu0 %1103
  %1105 = vrot.lane.b32.xlu0 %v733, 123
  %v1106 = vpop.permute.xlu0 %1105
  %1107 = vrot.lane.b32.xlu0 %v734, 123
  %v1108 = vpop.permute.xlu0 %1107
  %1109 = vrot.lane.b32.xlu0 %v735, 123
  %v1110 = vpop.permute.xlu0 %1109
  %1111 = vrot.lane.b32.xlu0 %v736, 123
  %v1112 = vpop.permute.xlu0 %1111
  %1113 = vrot.lane.b32.xlu0 %v737, 123
  %v1114 = vpop.permute.xlu0 %1113
  %1115 = vrot.lane.b32.xlu0 %v738, 123
  %v1116 = vpop.permute.xlu0 %1115
  %1117 = vrot.lane.b32.xlu0 %v739, 123
  %v1118 = vpop.permute.xlu0 %1117
  %1119 = vrot.lane.b32.xlu0 %v719, 123
  %v1120 = vpop.permute.xlu0 %1119
  %1121 = vrot.lane.b32.xlu0 %v781, 123
  %v1122 = vpop.permute.xlu0 %1121
  %1123 = vrot.lane.b32.xlu0 %v782, 123
  %v1124 = vpop.permute.xlu0 %1123
  %1125 = vrot.lane.b32.xlu0 %v783, 123
  %v1126 = vpop.permute.xlu0 %1125
  %1127 = vrot.lane.b32.xlu0 %v784, 123
  %v1128 = vpop.permute.xlu0 %1127
  %1129 = vrot.lane.b32.xlu0 %v785, 123
  %v1130 = vpop.permute.xlu0 %1129
  %1131 = vrot.lane.b32.xlu0 %v786, 123
  %v1132 = vpop.permute.xlu0 %1131
  %1133 = vrot.lane.b32.xlu0 %v787, 123
  %v1134 = vpop.permute.xlu0 %1133
  %1135 = vrot.lane.b32.xlu0 %v788, 123
  %v1136 = vpop.permute.xlu0 %1135
  %1137 = vrot.lane.b32.xlu0 %v789, 123
  %v1138 = vpop.permute.xlu0 %1137
  %1139 = vrot.lane.b32.xlu0 %v790, 123
  %v1140 = vpop.permute.xlu0 %1139
  %1141 = vrot.lane.b32.xlu0 %v791, 123
  %v1142 = vpop.permute.xlu0 %1141
  %1143 = vrot.lane.b32.xlu0 %v792, 123
  %v1144 = vpop.permute.xlu0 %1143
  %1145 = vrot.lane.b32.xlu0 %v793, 123
  %v1146 = vpop.permute.xlu0 %1145
  %1147 = vrot.lane.b32.xlu0 %v794, 123
  %v1148 = vpop.permute.xlu0 %1147
  %1149 = vrot.lane.b32.xlu0 %v795, 123
  %v1150 = vpop.permute.xlu0 %1149
  %1151 = vrot.lane.b32.xlu0 %v796, 123
  %v1152 = vpop.permute.xlu0 %1151
  %1153 = vrot.lane.b32.xlu0 %v797, 123
  %v1154 = vpop.permute.xlu0 %1153
  %1155 = vrot.lane.b32.xlu0 %v798, 123
  %v1156 = vpop.permute.xlu0 %1155
  %1157 = vrot.lane.b32.xlu0 %v799, 123
  %v1158 = vpop.permute.xlu0 %1157
  %1159 = vrot.lane.b32.xlu0 %v779, 123
  %v1160 = vpop.permute.xlu0 %1159
  %vm1161 = vcmask 1006592
  %v1162 = vsel %vm1161, %v802, %v804
  %v1163 = vsel %vm1161, %v804, %v806
  %v1164 = vsel %vm1161, %v806, %v808
  %v1165 = vsel %vm1161, %v808, %v810
  %v1166 = vsel %vm1161, %v810, %v812
  %v1167 = vsel %vm1161, %v812, %v814
  %v1168 = vsel %vm1161, %v814, %v816
  %v1169 = vsel %vm1161, %v816, %v818
  %v1170 = vsel %vm1161, %v818, %v820
  %v1171 = vsel %vm1161, %v820, %v822
  %v1172 = vsel %vm1161, %v822, %v824
  %v1173 = vsel %vm1161, %v824, %v826
  %v1174 = vsel %vm1161, %v826, %v828
  %v1175 = vsel %vm1161, %v828, %v830
  %v1176 = vsel %vm1161, %v830, %v832
  %v1177 = vsel %vm1161, %v832, %v834
  %v1178 = vsel %vm1161, %v834, %v836
  %v1179 = vsel %vm1161, %v836, %v838
  %v1180 = vsel %vm1161, %v838, %v840
  %v1181 = vsel %vm1161, %v842, %v844
  %v1182 = vsel %vm1161, %v844, %v846
  %v1183 = vsel %vm1161, %v846, %v848
  %v1184 = vsel %vm1161, %v848, %v850
  %v1185 = vsel %vm1161, %v850, %v852
  %v1186 = vsel %vm1161, %v852, %v854
  %v1187 = vsel %vm1161, %v854, %v856
  %v1188 = vsel %vm1161, %v856, %v858
  %v1189 = vsel %vm1161, %v858, %v860
  %v1190 = vsel %vm1161, %v860, %v862
  %v1191 = vsel %vm1161, %v862, %v864
  %v1192 = vsel %vm1161, %v864, %v866
  %v1193 = vsel %vm1161, %v866, %v868
  %v1194 = vsel %vm1161, %v868, %v870
  %v1195 = vsel %vm1161, %v870, %v872
  %v1196 = vsel %vm1161, %v872, %v874
  %v1197 = vsel %vm1161, %v874, %v876
  %v1198 = vsel %vm1161, %v876, %v878
  %v1199 = vsel %vm1161, %v878, %v880
  %v1200 = vsel %vm1161, %v882, %v884
  %v1201 = vsel %vm1161, %v884, %v886
  %v1202 = vsel %vm1161, %v886, %v888
  %v1203 = vsel %vm1161, %v888, %v890
  %v1204 = vsel %vm1161, %v890, %v892
  %v1205 = vsel %vm1161, %v892, %v894
  %v1206 = vsel %vm1161, %v894, %v896
  %v1207 = vsel %vm1161, %v896, %v898
  %v1208 = vsel %vm1161, %v898, %v900
  %v1209 = vsel %vm1161, %v900, %v902
  %v1210 = vsel %vm1161, %v902, %v904
  %v1211 = vsel %vm1161, %v904, %v906
  %v1212 = vsel %vm1161, %v906, %v908
  %v1213 = vsel %vm1161, %v908, %v910
  %v1214 = vsel %vm1161, %v910, %v912
  %v1215 = vsel %vm1161, %v912, %v914
  %v1216 = vsel %vm1161, %v914, %v916
  %v1217 = vsel %vm1161, %v916, %v918
  %v1218 = vsel %vm1161, %v918, %v920
  %v1219 = vsel %vm1161, %v922, %v924
  %v1220 = vsel %vm1161, %v924, %v926
  %v1221 = vsel %vm1161, %v926, %v928
  %v1222 = vsel %vm1161, %v928, %v930
  %v1223 = vsel %vm1161, %v930, %v932
  %v1224 = vsel %vm1161, %v932, %v934
  %v1225 = vsel %vm1161, %v934, %v936
  %v1226 = vsel %vm1161, %v936, %v938
  %v1227 = vsel %vm1161, %v938, %v940
  %v1228 = vsel %vm1161, %v940, %v942
  %v1229 = vsel %vm1161, %v942, %v944
  %v1230 = vsel %vm1161, %v944, %v946
  %v1231 = vsel %vm1161, %v946, %v948
  %v1232 = vsel %vm1161, %v948, %v950
  %v1233 = vsel %vm1161, %v950, %v952
  %v1234 = vsel %vm1161, %v952, %v954
  %v1235 = vsel %vm1161, %v954, %v956
  %v1236 = vsel %vm1161, %v956, %v958
  %v1237 = vsel %vm1161, %v958, %v960
  %v1238 = vsel %vm1161, %v962, %v964
  %v1239 = vsel %vm1161, %v964, %v966
  %v1240 = vsel %vm1161, %v966, %v968
  %v1241 = vsel %vm1161, %v968, %v970
  %v1242 = vsel %vm1161, %v970, %v972
  %v1243 = vsel %vm1161, %v972, %v974
  %v1244 = vsel %vm1161, %v974, %v976
  %v1245 = vsel %vm1161, %v976, %v978
  %v1246 = vsel %vm1161, %v978, %v980
  %v1247 = vsel %vm1161, %v980, %v982
  %v1248 = vsel %vm1161, %v982, %v984
  %v1249 = vsel %vm1161, %v984, %v986
  %v1250 = vsel %vm1161, %v986, %v988
  %v1251 = vsel %vm1161, %v988, %v990
  %v1252 = vsel %vm1161, %v990, %v992
  %v1253 = vsel %vm1161, %v992, %v994
  %v1254 = vsel %vm1161, %v994, %v996
  %v1255 = vsel %vm1161, %v996, %v998
  %v1256 = vsel %vm1161, %v998, %v1000
  %v1257 = vsel %vm1161, %v1002, %v1004
  %v1258 = vsel %vm1161, %v1004, %v1006
  %v1259 = vsel %vm1161, %v1006, %v1008
  %v1260 = vsel %vm1161, %v1008, %v1010
  %v1261 = vsel %vm1161, %v1010, %v1012
  %v1262 = vsel %vm1161, %v1012, %v1014
  %v1263 = vsel %vm1161, %v1014, %v1016
  %v1264 = vsel %vm1161, %v1016, %v1018
  %v1265 = vsel %vm1161, %v1018, %v1020
  %v1266 = vsel %vm1161, %v1020, %v1022
  %v1267 = vsel %vm1161, %v1022, %v1024
  %v1268 = vsel %vm1161, %v1024, %v1026
  %v1269 = vsel %vm1161, %v1026, %v1028
  %v1270 = vsel %vm1161, %v1028, %v1030
  %v1271 = vsel %vm1161, %v1030, %v1032
  %v1272 = vsel %vm1161, %v1032, %v1034
  %v1273 = vsel %vm1161, %v1034, %v1036
  %v1274 = vsel %vm1161, %v1036, %v1038
  %v1275 = vsel %vm1161, %v1038, %v1040
  %v1276 = vsel %vm1161, %v1042, %v1044
  %v1277 = vsel %vm1161, %v1044, %v1046
  %v1278 = vsel %vm1161, %v1046, %v1048
  %v1279 = vsel %vm1161, %v1048, %v1050
  %v1280 = vsel %vm1161, %v1050, %v1052
  %v1281 = vsel %vm1161, %v1052, %v1054
  %v1282 = vsel %vm1161, %v1054, %v1056
  %v1283 = vsel %vm1161, %v1056, %v1058
  %v1284 = vsel %vm1161, %v1058, %v1060
  %v1285 = vsel %vm1161, %v1060, %v1062
  %v1286 = vsel %vm1161, %v1062, %v1064
  %v1287 = vsel %vm1161, %v1064, %v1066
  %v1288 = vsel %vm1161, %v1066, %v1068
  %v1289 = vsel %vm1161, %v1068, %v1070
  %v1290 = vsel %vm1161, %v1070, %v1072
  %v1291 = vsel %vm1161, %v1072, %v1074
  %v1292 = vsel %vm1161, %v1074, %v1076
  %v1293 = vsel %vm1161, %v1076, %v1078
  %v1294 = vsel %vm1161, %v1078, %v1080
  %v1295 = vsel %vm1161, %v1082, %v1084
  %v1296 = vsel %vm1161, %v1084, %v1086
  %v1297 = vsel %vm1161, %v1086, %v1088
  %v1298 = vsel %vm1161, %v1088, %v1090
  %v1299 = vsel %vm1161, %v1090, %v1092
  %v1300 = vsel %vm1161, %v1092, %v1094
  %v1301 = vsel %vm1161, %v1094, %v1096
  %v1302 = vsel %vm1161, %v1096, %v1098
  %v1303 = vsel %vm1161, %v1098, %v1100
  %v1304 = vsel %vm1161, %v1100, %v1102
  %v1305 = vsel %vm1161, %v1102, %v1104
  %v1306 = vsel %vm1161, %v1104, %v1106
  %v1307 = vsel %vm1161, %v1106, %v1108
  %v1308 = vsel %vm1161, %v1108, %v1110
  %v1309 = vsel %vm1161, %v1110, %v1112
  %v1310 = vsel %vm1161, %v1112, %v1114
  %v1311 = vsel %vm1161, %v1114, %v1116
  %v1312 = vsel %vm1161, %v1116, %v1118
  %v1313 = vsel %vm1161, %v1118, %v1120
  %v1314 = vsel %vm1161, %v1122, %v1124
  %v1315 = vsel %vm1161, %v1124, %v1126
  %v1316 = vsel %vm1161, %v1126, %v1128
  %v1317 = vsel %vm1161, %v1128, %v1130
  %v1318 = vsel %vm1161, %v1130, %v1132
  %v1319 = vsel %vm1161, %v1132, %v1134
  %v1320 = vsel %vm1161, %v1134, %v1136
  %v1321 = vsel %vm1161, %v1136, %v1138
  %v1322 = vsel %vm1161, %v1138, %v1140
  %v1323 = vsel %vm1161, %v1140, %v1142
  %v1324 = vsel %vm1161, %v1142, %v1144
  %v1325 = vsel %vm1161, %v1144, %v1146
  %v1326 = vsel %vm1161, %v1146, %v1148
  %v1327 = vsel %vm1161, %v1148, %v1150
  %v1328 = vsel %vm1161, %v1150, %v1152
  %v1329 = vsel %vm1161, %v1152, %v1154
  %v1330 = vsel %vm1161, %v1154, %v1156
  %v1331 = vsel %vm1161, %v1156, %v1158
  %v1332 = vsel %vm1161, %v1158, %v1160
  %vm1504 = vcmask 588800
  %v1506 = vsel %vm1504, %v800, 0
  %1508 = vmatprep.subr.mxu0 %v1163
  %1509 = vmatpush1.msra.mxu0 %v1162
  %1510 = vmatprep.subr.mxu0 %v1182
  %1511 = vmatpush1.msra.mxu0 %v1181
  %1512 = vmatprep.subr.mxu0 %v1201
  %1513 = vmatpush1.msra.mxu0 %v1200
  %1514 = vmatprep.subr.mxu0 %v1220
  %1515 = vmatpush1.msra.mxu0 %v1219
  %1516 = vmatprep.subr.mxu0 %v1239
  %1517 = vmatpush1.msra.mxu0 %v1238
  %1518 = vmatprep.subr.mxu0 %v1258
  %1519 = vmatpush1.msra.mxu0 %v1257
  %1520 = vmatprep.subr.mxu0 %v1277
  %1521 = vmatpush1.msra.mxu0 %v1276
  %1522 = vmatprep.subr.mxu0 %v1296
  %1523 = vmatpush1.msra.mxu0 %v1295
  %1524 = vmatprep.subr.mxu0 %v1315
  %1525 = vmatpush1.msra.mxu0 %v1314
  %1526 = vmatprep.subr.mxu0 0.0
  %1527 = vmatpush1.msra.mxu0 0.0
  %1528 = vmatprep.subr.mxu0 0.0
  %1529 = vmatpush1.msra.mxu0 0.0
  %1530 = vmatprep.subr.mxu0 0.0
  %1531 = vmatpush1.msra.mxu0 0.0
  %1532 = vmatprep.subr.mxu0 0.0
  %1533 = vmatpush1.msra.mxu0 0.0
  %1534 = vmatprep.subr.mxu0 0.0
  %1535 = vmatpush1.msra.mxu0 0.0
  %1536 = vmatprep.subr.mxu0 0.0
  %1537 = vmatpush1.msra.mxu0 0.0
  %1538 = vmatprep.subr.mxu0 0.0
  %1539 = vmatpush1.msra.mxu0 0.0
  %1540 = vmatprep.subr.mxu0 0.0
  %1541 = vmatpush1.msra.mxu0 0.0
  %1542 = vmatprep.subr.mxu0 0.0
  %1543 = vmatpush1.msra.mxu0 0.0
  %1544 = vmatprep.subr.mxu0 0.0
  %1545 = vmatpush1.msra.mxu0 0.0
  %1546 = vmatprep.subr.mxu0 0.0
  %1547 = vmatpush1.msra.mxu0 0.0
  %1548 = vmatprep.subr.mxu0 0.0
  %1549 = vmatpush1.msra.mxu0 0.0
  %1550 = vmatprep.subr.mxu0 0.0
  %1551 = vmatpush1.msra.mxu0 0.0
  %1552 = vmatprep.subr.mxu0 0.0
  %1553 = vmatpush1.msra.mxu0 0.0
  %1554 = vmatprep.subr.mxu0 0.0
  %1555 = vmatpush1.msra.mxu0 0.0
  %1556 = vmatprep.subr.mxu0 0.0
  %1557 = vmatpush1.msra.mxu0 0.0
  %1558 = vmatprep.subr.mxu0 0.0
  %1559 = vmatpush1.msra.mxu0 0.0
  %1560 = vmatprep.subr.mxu0 0.0
  %1561 = vmatpush1.msra.mxu0 0.0
  %1562 = vmatprep.subr.mxu0 0.0
  %1563 = vmatpush1.msra.mxu0 0.0
  %1564 = vmatprep.subr.mxu0 0.0
  %1565 = vmatpush1.msra.mxu0 0.0
  %1566 = vmatprep.subr.mxu0 0.0
  %1567 = vmatpush1.msra.mxu0 0.0
  %1568 = vmatprep.subr.mxu0 0.0
  %1569 = vmatpush1.msra.mxu0 0.0
  %1570 = vmatprep.subr.mxu0 0.0
  %1571 = vmatpush1.msra.mxu0 0.0
  %1572 = vmatprep.mubr.f32.mxu0 0.0
  %1573 = vmatmul.mubr.f32.gmra.mrb[0].mxu0 %v1506
  %v1574 = vpop.f32.mrb[0].mxu0
  %v1575 = vadd.f32 0.0, %v1574
  %v1576 = vpop.f32.mrb[0].mxu0
  %v1577 = vadd.f32 0.0, %v1576
  %1578 = vdwg.mxu0
  %1579 = vmatprep.subr.mxu0 %v1165
  %1580 = vmatpush1.msra.mxu0 %v1164
  %1581 = vmatprep.subr.mxu0 %v1184
  %1582 = vmatpush1.msra.mxu0 %v1183
  %1583 = vmatprep.subr.mxu0 %v1203
  %1584 = vmatpush1.msra.mxu0 %v1202
  %1585 = vmatprep.subr.mxu0 %v1222
  %1586 = vmatpush1.msra.mxu0 %v1221
  %1587 = vmatprep.subr.mxu0 %v1241
  %1588 = vmatpush1.msra.mxu0 %v1240
  %1589 = vmatprep.subr.mxu0 %v1260
  %1590 = vmatpush1.msra.mxu0 %v1259
  %1591 = vmatprep.subr.mxu0 %v1279
  %1592 = vmatpush1.msra.mxu0 %v1278
  %1593 = vmatprep.subr.mxu0 %v1298
  %1594 = vmatpush1.msra.mxu0 %v1297
  %1595 = vmatprep.subr.mxu0 %v1317
  %1596 = vmatpush1.msra.mxu0 %v1316
  %1597 = vmatprep.subr.mxu0 0.0
  %1598 = vmatpush1.msra.mxu0 0.0
  %1599 = vmatprep.subr.mxu0 0.0
  %1600 = vmatpush1.msra.mxu0 0.0
  %1601 = vmatprep.subr.mxu0 0.0
  %1602 = vmatpush1.msra.mxu0 0.0
  %1603 = vmatprep.subr.mxu0 0.0
  %1604 = vmatpush1.msra.mxu0 0.0
  %1605 = vmatprep.subr.mxu0 0.0
  %1606 = vmatpush1.msra.mxu0 0.0
  %1607 = vmatprep.subr.mxu0 0.0
  %1608 = vmatpush1.msra.mxu0 0.0
  %1609 = vmatprep.subr.mxu0 0.0
  %1610 = vmatpush1.msra.mxu0 0.0
  %1611 = vmatprep.subr.mxu0 0.0
  %1612 = vmatpush1.msra.mxu0 0.0
  %1613 = vmatprep.subr.mxu0 0.0
  %1614 = vmatpush1.msra.mxu0 0.0
  %1615 = vmatprep.subr.mxu0 0.0
  %1616 = vmatpush1.msra.mxu0 0.0
  %1617 = vmatprep.subr.mxu0 0.0
  %1618 = vmatpush1.msra.mxu0 0.0
  %1619 = vmatprep.subr.mxu0 0.0
  %1620 = vmatpush1.msra.mxu0 0.0
  %1621 = vmatprep.subr.mxu0 0.0
  %1622 = vmatpush1.msra.mxu0 0.0
  %1623 = vmatprep.subr.mxu0 0.0
  %1624 = vmatpush1.msra.mxu0 0.0
  %1625 = vmatprep.subr.mxu0 0.0
  %1626 = vmatpush1.msra.mxu0 0.0
  %1627 = vmatprep.subr.mxu0 0.0
  %1628 = vmatpush1.msra.mxu0 0.0
  %1629 = vmatprep.subr.mxu0 0.0
  %1630 = vmatpush1.msra.mxu0 0.0
  %1631 = vmatprep.subr.mxu0 0.0
  %1632 = vmatpush1.msra.mxu0 0.0
  %1633 = vmatprep.subr.mxu0 0.0
  %1634 = vmatpush1.msra.mxu0 0.0
  %1635 = vmatprep.subr.mxu0 0.0
  %1636 = vmatpush1.msra.mxu0 0.0
  %1637 = vmatprep.subr.mxu0 0.0
  %1638 = vmatpush1.msra.mxu0 0.0
  %1639 = vmatprep.subr.mxu0 0.0
  %1640 = vmatpush1.msra.mxu0 0.0
  %1641 = vmatprep.subr.mxu0 0.0
  %1642 = vmatpush1.msra.mxu0 0.0
  %1643 = vmatprep.mubr.f32.mxu0 0.0
  %1644 = vmatmul.mubr.f32.gmra.mrb[0].mxu0 %v1506
  %v1645 = vpop.f32.mrb[0].mxu0
  %v1646 = vadd.f32 0.0, %v1645
  %v1647 = vpop.f32.mrb[0].mxu0
  %v1648 = vadd.f32 0.0, %v1647
  %1649 = vdwg.mxu0
  %1650 = vmatprep.subr.mxu0 %v1167
  %1651 = vmatpush1.msra.mxu0 %v1166
  %1652 = vmatprep.subr.mxu0 %v1186
  %1653 = vmatpush1.msra.mxu0 %v1185
  %1654 = vmatprep.subr.mxu0 %v1205
  %1655 = vmatpush1.msra.mxu0 %v1204
  %1656 = vmatprep.subr.mxu0 %v1224
  %1657 = vmatpush1.msra.mxu0 %v1223
  %1658 = vmatprep.subr.mxu0 %v1243
  %1659 = vmatpush1.msra.mxu0 %v1242
  %1660 = vmatprep.subr.mxu0 %v1262
  %1661 = vmatpush1.msra.mxu0 %v1261
  %1662 = vmatprep.subr.mxu0 %v1281
  %1663 = vmatpush1.msra.mxu0 %v1280
  %1664 = vmatprep.subr.mxu0 %v1300
  %1665 = vmatpush1.msra.mxu0 %v1299
  %1666 = vmatprep.subr.mxu0 %v1319
  %1667 = vmatpush1.msra.mxu0 %v1318
  %1668 = vmatprep.subr.mxu0 0.0
  %1669 = vmatpush1.msra.mxu0 0.0
  %1670 = vmatprep.subr.mxu0 0.0
  %1671 = vmatpush1.msra.mxu0 0.0
  %1672 = vmatprep.subr.mxu0 0.0
  %1673 = vmatpush1.msra.mxu0 0.0
  %1674 = vmatprep.subr.mxu0 0.0
  %1675 = vmatpush1.msra.mxu0 0.0
  %1676 = vmatprep.subr.mxu0 0.0
  %1677 = vmatpush1.msra.mxu0 0.0
  %1678 = vmatprep.subr.mxu0 0.0
  %1679 = vmatpush1.msra.mxu0 0.0
  %1680 = vmatprep.subr.mxu0 0.0
  %1681 = vmatpush1.msra.mxu0 0.0
  %1682 = vmatprep.subr.mxu0 0.0
  %1683 = vmatpush1.msra.mxu0 0.0
  %1684 = vmatprep.subr.mxu0 0.0
  %1685 = vmatpush1.msra.mxu0 0.0
  %1686 = vmatprep.subr.mxu0 0.0
  %1687 = vmatpush1.msra.mxu0 0.0
  %1688 = vmatprep.subr.mxu0 0.0
  %1689 = vmatpush1.msra.mxu0 0.0
  %1690 = vmatprep.subr.mxu0 0.0
  %1691 = vmatpush1.msra.mxu0 0.0
  %1692 = vmatprep.subr.mxu0 0.0
  %1693 = vmatpush1.msra.mxu0 0.0
  %1694 = vmatprep.subr.mxu0 0.0
  %1695 = vmatpush1.msra.mxu0 0.0
  %1696 = vmatprep.subr.mxu0 0.0
  %1697 = vmatpush1.msra.mxu0 0.0
  %1698 = vmatprep.subr.mxu0 0.0
  %1699 = vmatpush1.msra.mxu0 0.0
  %1700 = vmatprep.subr.mxu0 0.0
  %1701 = vmatpush1.msra.mxu0 0.0
  %1702 = vmatprep.subr.mxu0 0.0
  %1703 = vmatpush1.msra.mxu0 0.0
  %1704 = vmatprep.subr.mxu0 0.0
  %1705 = vmatpush1.msra.mxu0 0.0
  %1706 = vmatprep.subr.mxu0 0.0
  %1707 = vmatpush1.msra.mxu0 0.0
  %1708 = vmatprep.subr.mxu0 0.0
  %1709 = vmatpush1.msra.mxu0 0.0
  %1710 = vmatprep.subr.mxu0 0.0
  %1711 = vmatpush1.msra.mxu0 0.0
  %1712 = vmatprep.subr.mxu0 0.0
  %1713 = vmatpush1.msra.mxu0 0.0
  %1714 = vmatprep.mubr.f32.mxu0 0.0
  %1715 = vmatmul.mubr.f32.gmra.mrb[0].mxu0 %v1506
  %v1716 = vpop.f32.mrb[0].mxu0
  %v1717 = vadd.f32 0.0, %v1716
  %v1718 = vpop.f32.mrb[0].mxu0
  %v1719 = vadd.f32 0.0, %v1718
  %1720 = vdwg.mxu0
  %1721 = vmatprep.subr.mxu0 %v1169
  %1722 = vmatpush1.msra.mxu0 %v1168
  %1723 = vmatprep.subr.mxu0 %v1188
  %1724 = vmatpush1.msra.mxu0 %v1187
  %1725 = vmatprep.subr.mxu0 %v1207
  %1726 = vmatpush1.msra.mxu0 %v1206
  %1727 = vmatprep.subr.mxu0 %v1226
  %1728 = vmatpush1.msra.mxu0 %v1225
  %1729 = vmatprep.subr.mxu0 %v1245
  %1730 = vmatpush1.msra.mxu0 %v1244
  %1731 = vmatprep.subr.mxu0 %v1264
  %1732 = vmatpush1.msra.mxu0 %v1263
  %1733 = vmatprep.subr.mxu0 %v1283
  %1734 = vmatpush1.msra.mxu0 %v1282
  %1735 = vmatprep.subr.mxu0 %v1302
  %1736 = vmatpush1.msra.mxu0 %v1301
  %1737 = vmatprep.subr.mxu0 %v1321
  %1738 = vmatpush1.msra.mxu0 %v1320
  %1739 = vmatprep.subr.mxu0 0.0
  %1740 = vmatpush1.msra.mxu0 0.0
  %1741 = vmatprep.subr.mxu0 0.0
  %1742 = vmatpush1.msra.mxu0 0.0
  %1743 = vmatprep.subr.mxu0 0.0
  %1744 = vmatpush1.msra.mxu0 0.0
  %1745 = vmatprep.subr.mxu0 0.0
  %1746 = vmatpush1.msra.mxu0 0.0
  %1747 = vmatprep.subr.mxu0 0.0
  %1748 = vmatpush1.msra.mxu0 0.0
  %1749 = vmatprep.subr.mxu0 0.0
  %1750 = vmatpush1.msra.mxu0 0.0
  %1751 = vmatprep.subr.mxu0 0.0
  %1752 = vmatpush1.msra.mxu0 0.0
  %1753 = vmatprep.subr.mxu0 0.0
  %1754 = vmatpush1.msra.mxu0 0.0
  %1755 = vmatprep.subr.mxu0 0.0
  %1756 = vmatpush1.msra.mxu0 0.0
  %1757 = vmatprep.subr.mxu0 0.0
  %1758 = vmatpush1.msra.mxu0 0.0
  %1759 = vmatprep.subr.mxu0 0.0
  %1760 = vmatpush1.msra.mxu0 0.0
  %1761 = vmatprep.subr.mxu0 0.0
  %1762 = vmatpush1.msra.mxu0 0.0
  %1763 = vmatprep.subr.mxu0 0.0
  %1764 = vmatpush1.msra.mxu0 0.0
  %1765 = vmatprep.subr.mxu0 0.0
  %1766 = vmatpush1.msra.mxu0 0.0
  %1767 = vmatprep.subr.mxu0 0.0
  %1768 = vmatpush1.msra.mxu0 0.0
  %1769 = vmatprep.subr.mxu0 0.0
  %1770 = vmatpush1.msra.mxu0 0.0
  %1771 = vmatprep.subr.mxu0 0.0
  %1772 = vmatpush1.msra.mxu0 0.0
  %1773 = vmatprep.subr.mxu0 0.0
  %1774 = vmatpush1.msra.mxu0 0.0
  %1775 = vmatprep.subr.mxu0 0.0
  %1776 = vmatpush1.msra.mxu0 0.0
  %1777 = vmatprep.subr.mxu0 0.0
  %1778 = vmatpush1.msra.mxu0 0.0
  %1779 = vmatprep.subr.mxu0 0.0
  %1780 = vmatpush1.msra.mxu0 0.0
  %1781 = vmatprep.subr.mxu0 0.0
  %1782 = vmatpush1.msra.mxu0 0.0
  %1783 = vmatprep.subr.mxu0 0.0
  %1784 = vmatpush1.msra.mxu0 0.0
  %1785 = vmatprep.mubr.f32.mxu0 0.0
  %1786 = vmatmul.mubr.f32.gmra.mrb[0].mxu0 %v1506
  %v1787 = vpop.f32.mrb[0].mxu0
  %v1788 = vadd.f32 0.0, %v1787
  %v1789 = vpop.f32.mrb[0].mxu0
  %v1790 = vadd.f32 0.0, %v1789
  %1791 = vdwg.mxu0
  %1792 = vmatprep.subr.mxu0 %v1171
  %1793 = vmatpush1.msra.mxu0 %v1170
  %1794 = vmatprep.subr.mxu0 %v1190
  %1795 = vmatpush1.msra.mxu0 %v1189
  %1796 = vmatprep.subr.mxu0 %v1209
  %1797 = vmatpush1.msra.mxu0 %v1208
  %1798 = vmatprep.subr.mxu0 %v1228
  %1799 = vmatpush1.msra.mxu0 %v1227
  %1800 = vmatprep.subr.mxu0 %v1247
  %1801 = vmatpush1.msra.mxu0 %v1246
  %1802 = vmatprep.subr.mxu0 %v1266
  %1803 = vmatpush1.msra.mxu0 %v1265
  %1804 = vmatprep.subr.mxu0 %v1285
  %1805 = vmatpush1.msra.mxu0 %v1284
  %1806 = vmatprep.subr.mxu0 %v1304
  %1807 = vmatpush1.msra.mxu0 %v1303
  %1808 = vmatprep.subr.mxu0 %v1323
  %1809 = vmatpush1.msra.mxu0 %v1322
  %1810 = vmatprep.subr.mxu0 0.0
  %1811 = vmatpush1.msra.mxu0 0.0
  %1812 = vmatprep.subr.mxu0 0.0
  %1813 = vmatpush1.msra.mxu0 0.0
  %1814 = vmatprep.subr.mxu0 0.0
  %1815 = vmatpush1.msra.mxu0 0.0
  %1816 = vmatprep.subr.mxu0 0.0
  %1817 = vmatpush1.msra.mxu0 0.0
  %1818 = vmatprep.subr.mxu0 0.0
  %1819 = vmatpush1.msra.mxu0 0.0
  %1820 = vmatprep.subr.mxu0 0.0
  %1821 = vmatpush1.msra.mxu0 0.0
  %1822 = vmatprep.subr.mxu0 0.0
  %1823 = vmatpush1.msra.mxu0 0.0
  %1824 = vmatprep.subr.mxu0 0.0
  %1825 = vmatpush1.msra.mxu0 0.0
  %1826 = vmatprep.subr.mxu0 0.0
  %1827 = vmatpush1.msra.mxu0 0.0
  %1828 = vmatprep.subr.mxu0 0.0
  %1829 = vmatpush1.msra.mxu0 0.0
  %1830 = vmatprep.subr.mxu0 0.0
  %1831 = vmatpush1.msra.mxu0 0.0
  %1832 = vmatprep.subr.mxu0 0.0
  %1833 = vmatpush1.msra.mxu0 0.0
  %1834 = vmatprep.subr.mxu0 0.0
  %1835 = vmatpush1.msra.mxu0 0.0
  %1836 = vmatprep.subr.mxu0 0.0
  %1837 = vmatpush1.msra.mxu0 0.0
  %1838 = vmatprep.subr.mxu0 0.0
  %1839 = vmatpush1.msra.mxu0 0.0
  %1840 = vmatprep.subr.mxu0 0.0
  %1841 = vmatpush1.msra.mxu0 0.0
  %1842 = vmatprep.subr.mxu0 0.0
  %1843 = vmatpush1.msra.mxu0 0.0
  %1844 = vmatprep.subr.mxu0 0.0
  %1845 = vmatpush1.msra.mxu0 0.0
  %1846 = vmatprep.subr.mxu0 0.0
  %1847 = vmatpush1.msra.mxu0 0.0
  %1848 = vmatprep.subr.mxu0 0.0
  %1849 = vmatpush1.msra.mxu0 0.0
  %1850 = vmatprep.subr.mxu0 0.0
  %1851 = vmatpush1.msra.mxu0 0.0
  %1852 = vmatprep.subr.mxu0 0.0
  %1853 = vmatpush1.msra.mxu0 0.0
  %1854 = vmatprep.subr.mxu0 0.0
  %1855 = vmatpush1.msra.mxu0 0.0
  %1856 = vmatprep.mubr.f32.mxu0 0.0
  %1857 = vmatmul.mubr.f32.gmra.mrb[0].mxu0 %v1506
  %v1858 = vpop.f32.mrb[0].mxu0
  %v1859 = vadd.f32 0.0, %v1858
  %v1860 = vpop.f32.mrb[0].mxu0
  %v1861 = vadd.f32 0.0, %v1860
  %1862 = vdwg.mxu0
  %1863 = vmatprep.subr.mxu0 %v1173
  %1864 = vmatpush1.msra.mxu0 %v1172
  %1865 = vmatprep.subr.mxu0 %v1192
  %1866 = vmatpush1.msra.mxu0 %v1191
  %1867 = vmatprep.subr.mxu0 %v1211
  %1868 = vmatpush1.msra.mxu0 %v1210
  %1869 = vmatprep.subr.mxu0 %v1230
  %1870 = vmatpush1.msra.mxu0 %v1229
  %1871 = vmatprep.subr.mxu0 %v1249
  %1872 = vmatpush1.msra.mxu0 %v1248
  %1873 = vmatprep.subr.mxu0 %v1268
  %1874 = vmatpush1.msra.mxu0 %v1267
  %1875 = vmatprep.subr.mxu0 %v1287
  %1876 = vmatpush1.msra.mxu0 %v1286
  %1877 = vmatprep.subr.mxu0 %v1306
  %1878 = vmatpush1.msra.mxu0 %v1305
  %1879 = vmatprep.subr.mxu0 %v1325
  %1880 = vmatpush1.msra.mxu0 %v1324
  %1881 = vmatprep.subr.mxu0 0.0
  %1882 = vmatpush1.msra.mxu0 0.0
  %1883 = vmatprep.subr.mxu0 0.0
  %1884 = vmatpush1.msra.mxu0 0.0
  %1885 = vmatprep.subr.mxu0 0.0
  %1886 = vmatpush1.msra.mxu0 0.0
  %1887 = vmatprep.subr.mxu0 0.0
  %1888 = vmatpush1.msra.mxu0 0.0
  %1889 = vmatprep.subr.mxu0 0.0
  %1890 = vmatpush1.msra.mxu0 0.0
  %1891 = vmatprep.subr.mxu0 0.0
  %1892 = vmatpush1.msra.mxu0 0.0
  %1893 = vmatprep.subr.mxu0 0.0
  %1894 = vmatpush1.msra.mxu0 0.0
  %1895 = vmatprep.subr.mxu0 0.0
  %1896 = vmatpush1.msra.mxu0 0.0
  %1897 = vmatprep.subr.mxu0 0.0
  %1898 = vmatpush1.msra.mxu0 0.0
  %1899 = vmatprep.subr.mxu0 0.0
  %1900 = vmatpush1.msra.mxu0 0.0
  %1901 = vmatprep.subr.mxu0 0.0
  %1902 = vmatpush1.msra.mxu0 0.0
  %1903 = vmatprep.subr.mxu0 0.0
  %1904 = vmatpush1.msra.mxu0 0.0
  %1905 = vmatprep.subr.mxu0 0.0
  %1906 = vmatpush1.msra.mxu0 0.0
  %1907 = vmatprep.subr.mxu0 0.0
  %1908 = vmatpush1.msra.mxu0 0.0
  %1909 = vmatprep.subr.mxu0 0.0
  %1910 = vmatpush1.msra.mxu0 0.0
  %1911 = vmatprep.subr.mxu0 0.0
  %1912 = vmatpush1.msra.mxu0 0.0
  %1913 = vmatprep.subr.mxu0 0.0
  %1914 = vmatpush1.msra.mxu0 0.0
  %1915 = vmatprep.subr.mxu0 0.0
  %1916 = vmatpush1.msra.mxu0 0.0
  %1917 = vmatprep.subr.mxu0 0.0
  %1918 = vmatpush1.msra.mxu0 0.0
  %1919 = vmatprep.subr.mxu0 0.0
  %1920 = vmatpush1.msra.mxu0 0.0
  %1921 = vmatprep.subr.mxu0 0.0
  %1922 = vmatpush1.msra.mxu0 0.0
  %1923 = vmatprep.subr.mxu0 0.0
  %1924 = vmatpush1.msra.mxu0 0.0
  %1925 = vmatprep.subr.mxu0 0.0
  %1926 = vmatpush1.msra.mxu0 0.0
  %1927 = vmatprep.mubr.f32.mxu0 0.0
  %1928 = vmatmul.mubr.f32.gmra.mrb[0].mxu0 %v1506
  %v1929 = vpop.f32.mrb[0].mxu0
  %v1930 = vadd.f32 0.0, %v1929
  %v1931 = vpop.f32.mrb[0].mxu0
  %v1932 = vadd.f32 0.0, %v1931
  %1933 = vdwg.mxu0
  %1934 = vmatprep.subr.mxu0 %v1175
  %1935 = vmatpush1.msra.mxu0 %v1174
  %1936 = vmatprep.subr.mxu0 %v1194
  %1937 = vmatpush1.msra.mxu0 %v1193
  %1938 = vmatprep.subr.mxu0 %v1213
  %1939 = vmatpush1.msra.mxu0 %v1212
  %1940 = vmatprep.subr.mxu0 %v1232
  %1941 = vmatpush1.msra.mxu0 %v1231
  %1942 = vmatprep.subr.mxu0 %v1251
  %1943 = vmatpush1.msra.mxu0 %v1250
  %1944 = vmatprep.subr.mxu0 %v1270
  %1945 = vmatpush1.msra.mxu0 %v1269
  %1946 = vmatprep.subr.mxu0 %v1289
  %1947 = vmatpush1.msra.mxu0 %v1288
  %1948 = vmatprep.subr.mxu0 %v1308
  %1949 = vmatpush1.msra.mxu0 %v1307
  %1950 = vmatprep.subr.mxu0 %v1327
  %1951 = vmatpush1.msra.mxu0 %v1326
  %1952 = vmatprep.subr.mxu0 0.0
  %1953 = vmatpush1.msra.mxu0 0.0
  %1954 = vmatprep.subr.mxu0 0.0
  %1955 = vmatpush1.msra.mxu0 0.0
  %1956 = vmatprep.subr.mxu0 0.0
  %1957 = vmatpush1.msra.mxu0 0.0
  %1958 = vmatprep.subr.mxu0 0.0
  %1959 = vmatpush1.msra.mxu0 0.0
  %1960 = vmatprep.subr.mxu0 0.0
  %1961 = vmatpush1.msra.mxu0 0.0
  %1962 = vmatprep.subr.mxu0 0.0
  %1963 = vmatpush1.msra.mxu0 0.0
  %1964 = vmatprep.subr.mxu0 0.0
  %1965 = vmatpush1.msra.mxu0 0.0
  %1966 = vmatprep.subr.mxu0 0.0
  %1967 = vmatpush1.msra.mxu0 0.0
  %1968 = vmatprep.subr.mxu0 0.0
  %1969 = vmatpush1.msra.mxu0 0.0
  %1970 = vmatprep.subr.mxu0 0.0
  %1971 = vmatpush1.msra.mxu0 0.0
  %1972 = vmatprep.subr.mxu0 0.0
  %1973 = vmatpush1.msra.mxu0 0.0
  %1974 = vmatprep.subr.mxu0 0.0
  %1975 = vmatpush1.msra.mxu0 0.0
  %1976 = vmatprep.subr.mxu0 0.0
  %1977 = vmatpush1.msra.mxu0 0.0
  %1978 = vmatprep.subr.mxu0 0.0
  %1979 = vmatpush1.msra.mxu0 0.0
  %1980 = vmatprep.subr.mxu0 0.0
  %1981 = vmatpush1.msra.mxu0 0.0
  %1982 = vmatprep.subr.mxu0 0.0
  %1983 = vmatpush1.msra.mxu0 0.0
  %1984 = vmatprep.subr.mxu0 0.0
  %1985 = vmatpush1.msra.mxu0 0.0
  %1986 = vmatprep.subr.mxu0 0.0
  %1987 = vmatpush1.msra.mxu0 0.0
  %1988 = vmatprep.subr.mxu0 0.0
  %1989 = vmatpush1.msra.mxu0 0.0
  %1990 = vmatprep.subr.mxu0 0.0
  %1991 = vmatpush1.msra.mxu0 0.0
  %1992 = vmatprep.subr.mxu0 0.0
  %1993 = vmatpush1.msra.mxu0 0.0
  %1994 = vmatprep.subr.mxu0 0.0
  %1995 = vmatpush1.msra.mxu0 0.0
  %1996 = vmatprep.subr.mxu0 0.0
  %1997 = vmatpush1.msra.mxu0 0.0
  %1998 = vmatprep.mubr.f32.mxu0 0.0
  %1999 = vmatmul.mubr.f32.gmra.mrb[0].mxu0 %v1506
  %v2000 = vpop.f32.mrb[0].mxu0
  %v2001 = vadd.f32 0.0, %v2000
  %v2002 = vpop.f32.mrb[0].mxu0
  %v2003 = vadd.f32 0.0, %v2002
  %2004 = vdwg.mxu0
  %2005 = vmatprep.subr.mxu0 %v1177
  %2006 = vmatpush1.msra.mxu0 %v1176
  %2007 = vmatprep.subr.mxu0 %v1196
  %2008 = vmatpush1.msra.mxu0 %v1195
  %2009 = vmatprep.subr.mxu0 %v1215
  %2010 = vmatpush1.msra.mxu0 %v1214
  %2011 = vmatprep.subr.mxu0 %v1234
  %2012 = vmatpush1.msra.mxu0 %v1233
  %2013 = vmatprep.subr.mxu0 %v1253
  %2014 = vmatpush1.msra.mxu0 %v1252
  %2015 = vmatprep.subr.mxu0 %v1272
  %2016 = vmatpush1.msra.mxu0 %v1271
  %2017 = vmatprep.subr.mxu0 %v1291
  %2018 = vmatpush1.msra.mxu0 %v1290
  %2019 = vmatprep.subr.mxu0 %v1310
  %2020 = vmatpush1.msra.mxu0 %v1309
  %2021 = vmatprep.subr.mxu0 %v1329
  %2022 = vmatpush1.msra.mxu0 %v1328
  %2023 = vmatprep.subr.mxu0 0.0
  %2024 = vmatpush1.msra.mxu0 0.0
  %2025 = vmatprep.subr.mxu0 0.0
  %2026 = vmatpush1.msra.mxu0 0.0
  %2027 = vmatprep.subr.mxu0 0.0
  %2028 = vmatpush1.msra.mxu0 0.0
  %2029 = vmatprep.subr.mxu0 0.0
  %2030 = vmatpush1.msra.mxu0 0.0
  %2031 = vmatprep.subr.mxu0 0.0
  %2032 = vmatpush1.msra.mxu0 0.0
  %2033 = vmatprep.subr.mxu0 0.0
  %2034 = vmatpush1.msra.mxu0 0.0
  %2035 = vmatprep.subr.mxu0 0.0
  %2036 = vmatpush1.msra.mxu0 0.0
  %2037 = vmatprep.subr.mxu0 0.0
  %2038 = vmatpush1.msra.mxu0 0.0
  %2039 = vmatprep.subr.mxu0 0.0
  %2040 = vmatpush1.msra.mxu0 0.0
  %2041 = vmatprep.subr.mxu0 0.0
  %2042 = vmatpush1.msra.mxu0 0.0
  %2043 = vmatprep.subr.mxu0 0.0
  %2044 = vmatpush1.msra.mxu0 0.0
  %2045 = vmatprep.subr.mxu0 0.0
  %2046 = vmatpush1.msra.mxu0 0.0
  %2047 = vmatprep.subr.mxu0 0.0
  %2048 = vmatpush1.msra.mxu0 0.0
  %2049 = vmatprep.subr.mxu0 0.0
  %2050 = vmatpush1.msra.mxu0 0.0
  %2051 = vmatprep.subr.mxu0 0.0
  %2052 = vmatpush1.msra.mxu0 0.0
  %2053 = vmatprep.subr.mxu0 0.0
  %2054 = vmatpush1.msra.mxu0 0.0
  %2055 = vmatprep.subr.mxu0 0.0
  %2056 = vmatpush1.msra.mxu0 0.0
  %2057 = vmatprep.subr.mxu0 0.0
  %2058 = vmatpush1.msra.mxu0 0.0
  %2059 = vmatprep.subr.mxu0 0.0
  %2060 = vmatpush1.msra.mxu0 0.0
  %2061 = vmatprep.subr.mxu0 0.0
  %2062 = vmatpush1.msra.mxu0 0.0
  %2063 = vmatprep.subr.mxu0 0.0
  %2064 = vmatpush1.msra.mxu0 0.0
  %2065 = vmatprep.subr.mxu0 0.0
  %2066 = vmatpush1.msra.mxu0 0.0
  %2067 = vmatprep.subr.mxu0 0.0
  %2068 = vmatpush1.msra.mxu0 0.0
  %2069 = vmatprep.mubr.f32.mxu0 0.0
  %2070 = vmatmul.mubr.f32.gmra.mrb[0].mxu0 %v1506
  %v2071 = vpop.f32.mrb[0].mxu0
  %v2072 = vadd.f32 0.0, %v2071
  %v2073 = vpop.f32.mrb[0].mxu0
  %v2074 = vadd.f32 0.0, %v2073
  %2075 = vdwg.mxu0
  %2076 = vmatprep.subr.mxu0 %v1179
  %2077 = vmatpush1.msra.mxu0 %v1178
  %2078 = vmatprep.subr.mxu0 %v1198
  %2079 = vmatpush1.msra.mxu0 %v1197
  %2080 = vmatprep.subr.mxu0 %v1217
  %2081 = vmatpush1.msra.mxu0 %v1216
  %2082 = vmatprep.subr.mxu0 %v1236
  %2083 = vmatpush1.msra.mxu0 %v1235
  %2084 = vmatprep.subr.mxu0 %v1255
  %2085 = vmatpush1.msra.mxu0 %v1254
  %2086 = vmatprep.subr.mxu0 %v1274
  %2087 = vmatpush1.msra.mxu0 %v1273
  %2088 = vmatprep.subr.mxu0 %v1293
  %2089 = vmatpush1.msra.mxu0 %v1292
  %2090 = vmatprep.subr.mxu0 %v1312
  %2091 = vmatpush1.msra.mxu0 %v1311
  %2092 = vmatprep.subr.mxu0 %v1331
  %2093 = vmatpush1.msra.mxu0 %v1330
  %2094 = vmatprep.subr.mxu0 0.0
  %2095 = vmatpush1.msra.mxu0 0.0
  %2096 = vmatprep.subr.mxu0 0.0
  %2097 = vmatpush1.msra.mxu0 0.0
  %2098 = vmatprep.subr.mxu0 0.0
  %2099 = vmatpush1.msra.mxu0 0.0
  %2100 = vmatprep.subr.mxu0 0.0
  %2101 = vmatpush1.msra.mxu0 0.0
  %2102 = vmatprep.subr.mxu0 0.0
  %2103 = vmatpush1.msra.mxu0 0.0
  %2104 = vmatprep.subr.mxu0 0.0
  %2105 = vmatpush1.msra.mxu0 0.0
  %2106 = vmatprep.subr.mxu0 0.0
  %2107 = vmatpush1.msra.mxu0 0.0
  %2108 = vmatprep.subr.mxu0 0.0
  %2109 = vmatpush1.msra.mxu0 0.0
  %2110 = vmatprep.subr.mxu0 0.0
  %2111 = vmatpush1.msra.mxu0 0.0
  %2112 = vmatprep.subr.mxu0 0.0
  %2113 = vmatpush1.msra.mxu0 0.0
  %2114 = vmatprep.subr.mxu0 0.0
  %2115 = vmatpush1.msra.mxu0 0.0
  %2116 = vmatprep.subr.mxu0 0.0
  %2117 = vmatpush1.msra.mxu0 0.0
  %2118 = vmatprep.subr.mxu0 0.0
  %2119 = vmatpush1.msra.mxu0 0.0
  %2120 = vmatprep.subr.mxu0 0.0
  %2121 = vmatpush1.msra.mxu0 0.0
  %2122 = vmatprep.subr.mxu0 0.0
  %2123 = vmatpush1.msra.mxu0 0.0
  %2124 = vmatprep.subr.mxu0 0.0
  %2125 = vmatpush1.msra.mxu0 0.0
  %2126 = vmatprep.subr.mxu0 0.0
  %2127 = vmatpush1.msra.mxu0 0.0
  %2128 = vmatprep.subr.mxu0 0.0
  %2129 = vmatpush1.msra.mxu0 0.0
  %2130 = vmatprep.subr.mxu0 0.0
  %2131 = vmatpush1.msra.mxu0 0.0
  %2132 = vmatprep.subr.mxu0 0.0
  %2133 = vmatpush1.msra.mxu0 0.0
  %2134 = vmatprep.subr.mxu0 0.0
  %2135 = vmatpush1.msra.mxu0 0.0
  %2136 = vmatprep.subr.mxu0 0.0
  %2137 = vmatpush1.msra.mxu0 0.0
  %2138 = vmatprep.subr.mxu0 0.0
  %2139 = vmatpush1.msra.mxu0 0.0
  %2140 = vmatprep.mubr.f32.mxu0 0.0
  %2141 = vmatmul.mubr.f32.gmra.mrb[0].mxu0 %v1506
  %v2142 = vpop.f32.mrb[0].mxu0
  %v2143 = vadd.f32 0.0, %v2142
  %v2144 = vpop.f32.mrb[0].mxu0
  %v2145 = vadd.f32 0.0, %v2144
  %2146 = vdwg.mxu0
  %2147 = vmatprep.subr.mxu0 0.0
  %2148 = vmatpush1.msra.mxu0 %v1180
  %2149 = vmatprep.subr.mxu0 0.0
  %2150 = vmatpush1.msra.mxu0 %v1199
  %2151 = vmatprep.subr.mxu0 0.0
  %2152 = vmatpush1.msra.mxu0 %v1218
  %2153 = vmatprep.subr.mxu0 0.0
  %2154 = vmatpush1.msra.mxu0 %v1237
  %2155 = vmatprep.subr.mxu0 0.0
  %2156 = vmatpush1.msra.mxu0 %v1256
  %2157 = vmatprep.subr.mxu0 0.0
  %2158 = vmatpush1.msra.mxu0 %v1275
  %2159 = vmatprep.subr.mxu0 0.0
  %2160 = vmatpush1.msra.mxu0 %v1294
  %2161 = vmatprep.subr.mxu0 0.0
  %2162 = vmatpush1.msra.mxu0 %v1313
  %2163 = vmatprep.subr.mxu0 0.0
  %2164 = vmatpush1.msra.mxu0 %v1332
  %2165 = vmatprep.subr.mxu0 0.0
  %2166 = vmatpush1.msra.mxu0 0.0
  %2167 = vmatprep.subr.mxu0 0.0
  %2168 = vmatpush1.msra.mxu0 0.0
  %2169 = vmatprep.subr.mxu0 0.0
  %2170 = vmatpush1.msra.mxu0 0.0
  %2171 = vmatprep.subr.mxu0 0.0
  %2172 = vmatpush1.msra.mxu0 0.0
  %2173 = vmatprep.subr.mxu0 0.0
  %2174 = vmatpush1.msra.mxu0 0.0
  %2175 = vmatprep.subr.mxu0 0.0
  %2176 = vmatpush1.msra.mxu0 0.0
  %2177 = vmatprep.subr.mxu0 0.0
  %2178 = vmatpush1.msra.mxu0 0.0
  %2179 = vmatprep.subr.mxu0 0.0
  %2180 = vmatpush1.msra.mxu0 0.0
  %2181 = vmatprep.subr.mxu0 0.0
  %2182 = vmatpush1.msra.mxu0 0.0
  %2183 = vmatprep.subr.mxu0 0.0
  %2184 = vmatpush1.msra.mxu0 0.0
  %2185 = vmatprep.subr.mxu0 0.0
  %2186 = vmatpush1.msra.mxu0 0.0
  %2187 = vmatprep.subr.mxu0 0.0
  %2188 = vmatpush1.msra.mxu0 0.0
  %2189 = vmatprep.subr.mxu0 0.0
  %2190 = vmatpush1.msra.mxu0 0.0
  %2191 = vmatprep.subr.mxu0 0.0
  %2192 = vmatpush1.msra.mxu0 0.0
  %2193 = vmatprep.subr.mxu0 0.0
  %2194 = vmatpush1.msra.mxu0 0.0
  %2195 = vmatprep.subr.mxu0 0.0
  %2196 = vmatpush1.msra.mxu0 0.0
  %2197 = vmatprep.subr.mxu0 0.0
  %2198 = vmatpush1.msra.mxu0 0.0
  %2199 = vmatprep.subr.mxu0 0.0
  %2200 = vmatpush1.msra.mxu0 0.0
  %2201 = vmatprep.subr.mxu0 0.0
  %2202 = vmatpush1.msra.mxu0 0.0
  %2203 = vmatprep.subr.mxu0 0.0
  %2204 = vmatpush1.msra.mxu0 0.0
  %2205 = vmatprep.subr.mxu0 0.0
  %2206 = vmatpush1.msra.mxu0 0.0
  %2207 = vmatprep.subr.mxu0 0.0
  %2208 = vmatpush1.msra.mxu0 0.0
  %2209 = vmatprep.subr.mxu0 0.0
  %2210 = vmatpush1.msra.mxu0 0.0
  %2211 = vmatprep.mubr.f32.mxu0 0.0
  %2212 = vmatmul.mubr.f32.gmra.mrb[0].mxu0 %v1506
  %v2213 = vpop.f32.mrb[0].mxu0
  %v2214 = vadd.f32 0.0, %v2213
  %v2215 = vpop.f32.mrb[0].mxu0
  %2216 = vdwg.mxu0
  %2217 = vrot.lane.b32.xlu0 %v51, 88
  %v2218 = vpop.permute.xlu0 %2217
  %2219 = vrot.lane.b32.xlu0 %v55, 88
  %v2220 = vpop.permute.xlu0 %2219
  %2221 = vrot.lane.b32.xlu0 %v59, 88
  %v2222 = vpop.permute.xlu0 %2221
  %2223 = vrot.lane.b32.xlu0 %v63, 88
  %v2224 = vpop.permute.xlu0 %2223
  %2225 = vrot.lane.b32.xlu0 %v67, 88
  %v2226 = vpop.permute.xlu0 %2225
  %2227 = vrot.lane.b32.xlu0 %v71, 88
  %v2228 = vpop.permute.xlu0 %2227
  %2229 = vrot.lane.b32.xlu0 %v75, 88
  %v2230 = vpop.permute.xlu0 %2229
  %2231 = vrot.lane.b32.xlu0 %v79, 88
  %v2232 = vpop.permute.xlu0 %2231
  %2233 = vrot.lane.b32.xlu0 %v83, 88
  %v2234 = vpop.permute.xlu0 %2233
  %2235 = vrot.lane.b32.xlu0 %v87, 88
  %v2236 = vpop.permute.xlu0 %2235
  %2237 = vrot.lane.b32.xlu0 %v91, 88
  %v2238 = vpop.permute.xlu0 %2237
  %2239 = vrot.lane.b32.xlu0 %v95, 88
  %v2240 = vpop.permute.xlu0 %2239
  %2241 = vrot.lane.b32.xlu0 %v99, 88
  %v2242 = vpop.permute.xlu0 %2241
  %2243 = vrot.lane.b32.xlu0 %v103, 88
  %v2244 = vpop.permute.xlu0 %2243
  %2245 = vrot.lane.b32.xlu0 %v107, 88
  %v2246 = vpop.permute.xlu0 %2245
  %2247 = vrot.lane.b32.xlu0 %v111, 88
  %v2248 = vpop.permute.xlu0 %2247
  %2249 = vrot.lane.b32.xlu0 %v115, 88
  %v2250 = vpop.permute.xlu0 %2249
  %2251 = vrot.lane.b32.xlu0 %v119, 88
  %v2252 = vpop.permute.xlu0 %2251
  %2253 = vrot.lane.b32.xlu0 %v123, 88
  %v2254 = vpop.permute.xlu0 %2253
  %2255 = vrot.lane.b32.xlu0 %v127, 88
  %v2256 = vpop.permute.xlu0 %2255
  %vm2257 = vcmask 719872
  %v2258 = vsel %vm2257, %v2218, %v2220
  %v2259 = vsel %vm2257, %v2220, %v2222
  %v2260 = vsel %vm2257, %v2222, %v2224
  %v2261 = vsel %vm2257, %v2224, %v2226
  %v2262 = vsel %vm2257, %v2226, %v2228
  %v2263 = vsel %vm2257, %v2228, %v2230
  %v2264 = vsel %vm2257, %v2230, %v2232
  %v2265 = vsel %vm2257, %v2232, %v2234
  %v2266 = vsel %vm2257, %v2234, %v2236
  %v2267 = vsel %vm2257, %v2236, %v2238
  %v2268 = vsel %vm2257, %v2238, %v2240
  %v2269 = vsel %vm2257, %v2240, %v2242
  %v2270 = vsel %vm2257, %v2242, %v2244
  %v2271 = vsel %vm2257, %v2244, %v2246
  %v2272 = vsel %vm2257, %v2246, %v2248
  %v2273 = vsel %vm2257, %v2248, %v2250
  %v2274 = vsel %vm2257, %v2250, %v2252
  %v2275 = vsel %vm2257, %v2252, %v2254
  %v2276 = vsel %vm2257, %v2254, %v2256
  %v2296 = vmul.f32 %v1575, %v2258
  %v2297 = vmul.f32 %v1577, %v2259
  %v2298 = vmul.f32 %v1646, %v2260
  %v2299 = vmul.f32 %v1648, %v2261
  %v2300 = vmul.f32 %v1717, %v2262
  %v2301 = vmul.f32 %v1719, %v2263
  %v2302 = vmul.f32 %v1788, %v2264
  %v2303 = vmul.f32 %v1790, %v2265
  %v2304 = vmul.f32 %v1859, %v2266
  %v2305 = vmul.f32 %v1861, %v2267
  %v2306 = vmul.f32 %v1930, %v2268
  %v2307 = vmul.f32 %v1932, %v2269
  %v2308 = vmul.f32 %v2001, %v2270
  %v2309 = vmul.f32 %v2003, %v2271
  %v2310 = vmul.f32 %v2072, %v2272
  %v2311 = vmul.f32 %v2074, %v2273
  %v2312 = vmul.f32 %v2143, %v2274
  %v2313 = vmul.f32 %v2145, %v2275
  %v2314 = vmul.f32 %v2214, %v2276
  %v2315 = vadd.f32 %v2296, %v2297
  %v2316 = vadd.f32 %v2315, %v2298
  %v2317 = vadd.f32 %v2316, %v2299
  %v2318 = vadd.f32 %v2317, %v2300
  %v2319 = vadd.f32 %v2318, %v2301
  %v2320 = vadd.f32 %v2319, %v2302
  %v2321 = vadd.f32 %v2320, %v2303
  %v2322 = vadd.f32 %v2321, %v2304
  %v2323 = vadd.f32 %v2322, %v2305
  %v2324 = vadd.f32 %v2323, %v2306
  %v2325 = vadd.f32 %v2324, %v2307
  %v2326 = vadd.f32 %v2325, %v2308
  %v2327 = vadd.f32 %v2326, %v2309
  %v2328 = vadd.f32 %v2327, %v2310
  %v2329 = vadd.f32 %v2328, %v2311
  %v2330 = vadd.f32 %v2329, %v2312
  %v2331 = vadd.f32 %v2330, %v2313
  %v2332 = vadd.f32 %v2331, %v2314
  %2333 = vadd.xlane.f32.xlu0 %v2332
  %v2334 = vpop.xlane.xlu0 %2333
  %v2335 = vmul.f32 %v2334, 0.00048828125
  %v2336 = vsub.f32 %v1575, %v2335
  %v2337 = vsub.f32 %v1577, %v2335
  %v2338 = vsub.f32 %v1646, %v2335
  %v2339 = vsub.f32 %v1648, %v2335
  %v2340 = vsub.f32 %v1717, %v2335
  %v2341 = vsub.f32 %v1719, %v2335
  %v2342 = vsub.f32 %v1788, %v2335
  %v2343 = vsub.f32 %v1790, %v2335
  %v2344 = vsub.f32 %v1859, %v2335
  %v2345 = vsub.f32 %v1861, %v2335
  %v2346 = vsub.f32 %v1930, %v2335
  %v2347 = vsub.f32 %v1932, %v2335
  %v2348 = vsub.f32 %v2001, %v2335
  %v2349 = vsub.f32 %v2003, %v2335
  %v2350 = vsub.f32 %v2072, %v2335
  %v2351 = vsub.f32 %v2074, %v2335
  %v2352 = vsub.f32 %v2143, %v2335
  %v2353 = vsub.f32 %v2145, %v2335
  %v2354 = vsub.f32 %v2214, %v2335
  %v2355 = vmul.f32 %v2336, %v2258
  %v2356 = vmul.f32 %v2337, %v2259
  %v2357 = vmul.f32 %v2338, %v2260
  %v2358 = vmul.f32 %v2339, %v2261
  %v2359 = vmul.f32 %v2340, %v2262
  %v2360 = vmul.f32 %v2341, %v2263
  %v2361 = vmul.f32 %v2342, %v2264
  %v2362 = vmul.f32 %v2343, %v2265
  %v2363 = vmul.f32 %v2344, %v2266
  %v2364 = vmul.f32 %v2345, %v2267
  %v2365 = vmul.f32 %v2346, %v2268
  %v2366 = vmul.f32 %v2347, %v2269
  %v2367 = vmul.f32 %v2348, %v2270
  %v2368 = vmul.f32 %v2349, %v2271
  %v2369 = vmul.f32 %v2350, %v2272
  %v2370 = vmul.f32 %v2351, %v2273
  %v2371 = vmul.f32 %v2352, %v2274
  %v2372 = vmul.f32 %v2353, %v2275
  %v2373 = vmul.f32 %v2354, %v2276
  %v2374 = vmul.f32 %v2355, %v2355
  %v2375 = vmul.f32 %v2356, %v2356
  %v2376 = vmul.f32 %v2357, %v2357
  %v2377 = vmul.f32 %v2358, %v2358
  %v2378 = vmul.f32 %v2359, %v2359
  %v2379 = vmul.f32 %v2360, %v2360
  %v2380 = vmul.f32 %v2361, %v2361
  %v2381 = vmul.f32 %v2362, %v2362
  %v2382 = vmul.f32 %v2363, %v2363
  %v2383 = vmul.f32 %v2364, %v2364
  %v2384 = vmul.f32 %v2365, %v2365
  %v2385 = vmul.f32 %v2366, %v2366
  %v2386 = vmul.f32 %v2367, %v2367
  %v2387 = vmul.f32 %v2368, %v2368
  %v2388 = vmul.f32 %v2369, %v2369
  %v2389 = vmul.f32 %v2370, %v2370
  %v2390 = vmul.f32 %v2371, %v2371
  %v2391 = vmul.f32 %v2372, %v2372
  %v2392 = vmul.f32 %v2373, %v2373
  %v2393 = vadd.f32 %v2374, %v2375
  %v2394 = vadd.f32 %v2393, %v2376
  %v2395 = vadd.f32 %v2394, %v2377
  %v2396 = vadd.f32 %v2395, %v2378
  %v2397 = vadd.f32 %v2396, %v2379
  %v2398 = vadd.f32 %v2397, %v2380
  %v2399 = vadd.f32 %v2398, %v2381
  %v2400 = vadd.f32 %v2399, %v2382
  %v2401 = vadd.f32 %v2400, %v2383
  %v2402 = vadd.f32 %v2401, %v2384
  %v2403 = vadd.f32 %v2402, %v2385
  %v2404 = vadd.f32 %v2403, %v2386
  %v2405 = vadd.f32 %v2404, %v2387
  %v2406 = vadd.f32 %v2405, %v2388
  %v2407 = vadd.f32 %v2406, %v2389
  %v2408 = vadd.f32 %v2407, %v2390
  %v2409 = vadd.f32 %v2408, %v2391
  %v2410 = vadd.f32 %v2409, %v2392
  %2411 = vadd.xlane.f32.xlu0 %v2410
  %v2412 = vpop.xlane.xlu0 %2411
  %v2413 = vmul.f32 %v2412, 0.00048828125
  %v2414 = vadd.f32 %v2413, 1e-05
  %v2415 = vrsqrt.pop %v2414
  %v2416 = vmul.f32 %v44, %v2415
  %2418 = vset.pattern.permute.xlu0 1
  %2419 = vperm.xlu0 %2418, %v2416
  %v2420 = vpop.permute.xlu0 %2419
  %v2422 = vmul.f32 %v2336, %v2420
  %v2423 = vmul.f32 %v2337, %v2420
  %v2424 = vmul.f32 %v2338, %v2420
  %v2425 = vmul.f32 %v2339, %v2420
  %v2426 = vmul.f32 %v2340, %v2420
  %v2427 = vmul.f32 %v2341, %v2420
  %v2428 = vmul.f32 %v2342, %v2420
  %v2429 = vmul.f32 %v2343, %v2420
  %v2430 = vmul.f32 %v2344, %v2420
  %v2431 = vmul.f32 %v2345, %v2420
  %v2432 = vmul.f32 %v2346, %v2420
  %v2433 = vmul.f32 %v2347, %v2420
  %v2434 = vmul.f32 %v2348, %v2420
  %v2435 = vmul.f32 %v2349, %v2420
  %v2436 = vmul.f32 %v2350, %v2420
  %v2437 = vmul.f32 %v2351, %v2420
  %v2438 = vmul.f32 %v2352, %v2420
  %v2439 = vmul.f32 %v2353, %v2420
  %v2440 = vmul.f32 %v2354, %v2420
  %2442 = vset.pattern.permute.xlu0 2
  %2443 = vperm.xlu0 %2442, %v44
  %v2444 = vpop.permute.xlu0 %2443
  %v2446 = vadd.f32 %v2422, %v2444
  %v2447 = vadd.f32 %v2423, %v2444
  %v2448 = vadd.f32 %v2424, %v2444
  %v2449 = vadd.f32 %v2425, %v2444
  %v2450 = vadd.f32 %v2426, %v2444
  %v2451 = vadd.f32 %v2427, %v2444
  %v2452 = vadd.f32 %v2428, %v2444
  %v2453 = vadd.f32 %v2429, %v2444
  %v2454 = vadd.f32 %v2430, %v2444
  %v2455 = vadd.f32 %v2431, %v2444
  %v2456 = vadd.f32 %v2432, %v2444
  %v2457 = vadd.f32 %v2433, %v2444
  %v2458 = vadd.f32 %v2434, %v2444
  %v2459 = vadd.f32 %v2435, %v2444
  %v2460 = vadd.f32 %v2436, %v2444
  %v2461 = vadd.f32 %v2437, %v2444
  %v2462 = vadd.f32 %v2438, %v2444
  %v2463 = vadd.f32 %v2439, %v2444
  %v2464 = vadd.f32 %v2440, %v2444
  %vm2465 = vcmp.ge.f32.partialorder %v2446, 0.0
  %vm2466 = vcmp.ge.f32.partialorder %v2447, 0.0
  %vm2467 = vcmp.ge.f32.partialorder %v2448, 0.0
  %vm2468 = vcmp.ge.f32.partialorder %v2449, 0.0
  %vm2469 = vcmp.ge.f32.partialorder %v2450, 0.0
  %vm2470 = vcmp.ge.f32.partialorder %v2451, 0.0
  %vm2471 = vcmp.ge.f32.partialorder %v2452, 0.0
  %vm2472 = vcmp.ge.f32.partialorder %v2453, 0.0
  %vm2473 = vcmp.ge.f32.partialorder %v2454, 0.0
  %vm2474 = vcmp.ge.f32.partialorder %v2455, 0.0
  %vm2475 = vcmp.ge.f32.partialorder %v2456, 0.0
  %vm2476 = vcmp.ge.f32.partialorder %v2457, 0.0
  %vm2477 = vcmp.ge.f32.partialorder %v2458, 0.0
  %vm2478 = vcmp.ge.f32.partialorder %v2459, 0.0
  %vm2479 = vcmp.ge.f32.partialorder %v2460, 0.0
  %vm2480 = vcmp.ge.f32.partialorder %v2461, 0.0
  %vm2481 = vcmp.ge.f32.partialorder %v2462, 0.0
  %vm2482 = vcmp.ge.f32.partialorder %v2463, 0.0
  %vm2483 = vcmp.ge.f32.partialorder %v2464, 0.0
  %v2484 = vmul.f32 %v2446, 0.2
  %v2485 = vmul.f32 %v2447, 0.2
  %v2486 = vmul.f32 %v2448, 0.2
  %v2487 = vmul.f32 %v2449, 0.2
  %v2488 = vmul.f32 %v2450, 0.2
  %v2489 = vmul.f32 %v2451, 0.2
  %v2490 = vmul.f32 %v2452, 0.2
  %v2491 = vmul.f32 %v2453, 0.2
  %v2492 = vmul.f32 %v2454, 0.2
  %v2493 = vmul.f32 %v2455, 0.2
  %v2494 = vmul.f32 %v2456, 0.2
  %v2495 = vmul.f32 %v2457, 0.2
  %v2496 = vmul.f32 %v2458, 0.2
  %v2497 = vmul.f32 %v2459, 0.2
  %v2498 = vmul.f32 %v2460, 0.2
  %v2499 = vmul.f32 %v2461, 0.2
  %v2500 = vmul.f32 %v2462, 0.2
  %v2501 = vmul.f32 %v2463, 0.2
  %v2502 = vmul.f32 %v2464, 0.2
  %v2503 = vsel %vm2465, %v2446, %v2484
  %v2504 = vsel %vm2466, %v2447, %v2485
  %v2505 = vsel %vm2467, %v2448, %v2486
  %v2506 = vsel %vm2468, %v2449, %v2487
  %v2507 = vsel %vm2469, %v2450, %v2488
  %v2508 = vsel %vm2470, %v2451, %v2489
  %v2509 = vsel %vm2471, %v2452, %v2490
  %v2510 = vsel %vm2472, %v2453, %v2491
  %v2511 = vsel %vm2473, %v2454, %v2492
  %v2512 = vsel %vm2474, %v2455, %v2493
  %v2513 = vsel %vm2475, %v2456, %v2494
  %v2514 = vsel %vm2476, %v2457, %v2495
  %v2515 = vsel %vm2477, %v2458, %v2496
  %v2516 = vsel %vm2478, %v2459, %v2497
  %v2517 = vsel %vm2479, %v2460, %v2498
  %v2518 = vsel %vm2480, %v2461, %v2499
  %v2519 = vsel %vm2481, %v2462, %v2500
  %v2520 = vsel %vm2482, %v2463, %v2501
  %v2521 = vsel %vm2483, %v2464, %v2502
  %2522 = vrot.lane.b32.xlu0 %v800, 56
  %v2523 = vpop.permute.xlu0 %2522
  %vm2524 = vcmask 64512
  %v2525 = vsel %vm2524, %v2523, 0
  %2527 = vmatprep.subr.mxu0 %v2504
  %2528 = vmatpush1.msra.mxu0 %v2503
  %2529 = vmatprep.subr.mxu0 0.0
  %2530 = vmatpush1.msra.mxu0 0.0
  %2531 = vmatprep.subr.mxu0 0.0
  %2532 = vmatpush1.msra.mxu0 0.0
  %2533 = vmatprep.subr.mxu0 0.0
  %2534 = vmatpush1.msra.mxu0 0.0
  %2535 = vmatprep.subr.mxu0 0.0
  %2536 = vmatpush1.msra.mxu0 0.0
  %2537 = vmatprep.subr.mxu0 0.0
  %2538 = vmatpush1.msra.mxu0 0.0
  %2539 = vmatprep.subr.mxu0 0.0
  %2540 = vmatpush1.msra.mxu0 0.0
  %2541 = vmatprep.subr.mxu0 0.0
  %2542 = vmatpush1.msra.mxu0 0.0
  %2543 = vmatprep.subr.mxu0 0.0
  %2544 = vmatpush1.msra.mxu0 0.0
  %2545 = vmatprep.subr.mxu0 0.0
  %2546 = vmatpush1.msra.mxu0 0.0
  %2547 = vmatprep.subr.mxu0 0.0
  %2548 = vmatpush1.msra.mxu0 0.0
  %2549 = vmatprep.subr.mxu0 0.0
  %2550 = vmatpush1.msra.mxu0 0.0
  %2551 = vmatprep.subr.mxu0 0.0
  %2552 = vmatpush1.msra.mxu0 0.0
  %2553 = vmatprep.subr.mxu0 0.0
  %2554 = vmatpush1.msra.mxu0 0.0
  %2555 = vmatprep.subr.mxu0 0.0
  %2556 = vmatpush1.msra.mxu0 0.0
  %2557 = vmatprep.subr.mxu0 0.0
  %2558 = vmatpush1.msra.mxu0 0.0
  %2559 = vmatprep.subr.mxu0 0.0
  %2560 = vmatpush1.msra.mxu0 0.0
  %2561 = vmatprep.subr.mxu0 0.0
  %2562 = vmatpush1.msra.mxu0 0.0
  %2563 = vmatprep.subr.mxu0 0.0
  %2564 = vmatpush1.msra.mxu0 0.0
  %2565 = vmatprep.subr.mxu0 0.0
  %2566 = vmatpush1.msra.mxu0 0.0
  %2567 = vmatprep.subr.mxu0 0.0
  %2568 = vmatpush1.msra.mxu0 0.0
  %2569 = vmatprep.subr.mxu0 0.0
  %2570 = vmatpush1.msra.mxu0 0.0
  %2571 = vmatprep.subr.mxu0 0.0
  %2572 = vmatpush1.msra.mxu0 0.0
  %2573 = vmatprep.subr.mxu0 0.0
  %2574 = vmatpush1.msra.mxu0 0.0
  %2575 = vmatprep.subr.mxu0 0.0
  %2576 = vmatpush1.msra.mxu0 0.0
  %2577 = vmatprep.subr.mxu0 0.0
  %2578 = vmatpush1.msra.mxu0 0.0
  %2579 = vmatprep.subr.mxu0 0.0
  %2580 = vmatpush1.msra.mxu0 0.0
  %2581 = vmatprep.subr.mxu0 0.0
  %2582 = vmatpush1.msra.mxu0 0.0
  %2583 = vmatprep.subr.mxu0 0.0
  %2584 = vmatpush1.msra.mxu0 0.0
  %2585 = vmatprep.subr.mxu0 0.0
  %2586 = vmatpush1.msra.mxu0 0.0
  %2587 = vmatprep.subr.mxu0 0.0
  %2588 = vmatpush1.msra.mxu0 0.0
  %2589 = vmatprep.subr.mxu0 0.0
  %2590 = vmatpush1.msra.mxu0 0.0
  %2591 = vmatprep.mubr.f32.mxu0 0.0
  %2592 = vmatmul.mubr.f32.gmra.mrb[0].mxu0 %v2525
  %v2593 = vpop.f32.mrb[0].mxu0
  %v2594 = vadd.f32 0.0, %v2593
  %v2595 = vpop.f32.mrb[0].mxu0
  %v2596 = vadd.f32 0.0, %v2595
  %2597 = vdwg.mxu0
  %2598 = vmatprep.subr.mxu0 %v2506
  %2599 = vmatpush1.msra.mxu0 %v2505
  %2600 = vmatprep.subr.mxu0 0.0
  %2601 = vmatpush1.msra.mxu0 0.0
  %2602 = vmatprep.subr.mxu0 0.0
  %2603 = vmatpush1.msra.mxu0 0.0
  %2604 = vmatprep.subr.mxu0 0.0
  %2605 = vmatpush1.msra.mxu0 0.0
  %2606 = vmatprep.subr.mxu0 0.0
  %2607 = vmatpush1.msra.mxu0 0.0
  %2608 = vmatprep.subr.mxu0 0.0
  %2609 = vmatpush1.msra.mxu0 0.0
  %2610 = vmatprep.subr.mxu0 0.0
  %2611 = vmatpush1.msra.mxu0 0.0
  %2612 = vmatprep.subr.mxu0 0.0
  %2613 = vmatpush1.msra.mxu0 0.0
  %2614 = vmatprep.subr.mxu0 0.0
  %2615 = vmatpush1.msra.mxu0 0.0
  %2616 = vmatprep.subr.mxu0 0.0
  %2617 = vmatpush1.msra.mxu0 0.0
  %2618 = vmatprep.subr.mxu0 0.0
  %2619 = vmatpush1.msra.mxu0 0.0
  %2620 = vmatprep.subr.mxu0 0.0
  %2621 = vmatpush1.msra.mxu0 0.0
  %2622 = vmatprep.subr.mxu0 0.0
  %2623 = vmatpush1.msra.mxu0 0.0
  %2624 = vmatprep.subr.mxu0 0.0
  %2625 = vmatpush1.msra.mxu0 0.0
  %2626 = vmatprep.subr.mxu0 0.0
  %2627 = vmatpush1.msra.mxu0 0.0
  %2628 = vmatprep.subr.mxu0 0.0
  %2629 = vmatpush1.msra.mxu0 0.0
  %2630 = vmatprep.subr.mxu0 0.0
  %2631 = vmatpush1.msra.mxu0 0.0
  %2632 = vmatprep.subr.mxu0 0.0
  %2633 = vmatpush1.msra.mxu0 0.0
  %2634 = vmatprep.subr.mxu0 0.0
  %2635 = vmatpush1.msra.mxu0 0.0
  %2636 = vmatprep.subr.mxu0 0.0
  %2637 = vmatpush1.msra.mxu0 0.0
  %2638 = vmatprep.subr.mxu0 0.0
  %2639 = vmatpush1.msra.mxu0 0.0
  %2640 = vmatprep.subr.mxu0 0.0
  %2641 = vmatpush1.msra.mxu0 0.0
  %2642 = vmatprep.subr.mxu0 0.0
  %2643 = vmatpush1.msra.mxu0 0.0
  %2644 = vmatprep.subr.mxu0 0.0
  %2645 = vmatpush1.msra.mxu0 0.0
  %2646 = vmatprep.subr.mxu0 0.0
  %2647 = vmatpush1.msra.mxu0 0.0
  %2648 = vmatprep.subr.mxu0 0.0
  %2649 = vmatpush1.msra.mxu0 0.0
  %2650 = vmatprep.subr.mxu0 0.0
  %2651 = vmatpush1.msra.mxu0 0.0
  %2652 = vmatprep.subr.mxu0 0.0
  %2653 = vmatpush1.msra.mxu0 0.0
  %2654 = vmatprep.subr.mxu0 0.0
  %2655 = vmatpush1.msra.mxu0 0.0
  %2656 = vmatprep.subr.mxu0 0.0
  %2657 = vmatpush1.msra.mxu0 0.0
  %2658 = vmatprep.subr.mxu0 0.0
  %2659 = vmatpush1.msra.mxu0 0.0
  %2660 = vmatprep.subr.mxu0 0.0
  %2661 = vmatpush1.msra.mxu0 0.0
  %2662 = vmatprep.mubr.f32.mxu0 0.0
  %2663 = vmatmul.mubr.f32.gmra.mrb[0].mxu0 %v2525
  %v2664 = vpop.f32.mrb[0].mxu0
  %v2665 = vadd.f32 0.0, %v2664
  %v2666 = vpop.f32.mrb[0].mxu0
  %v2667 = vadd.f32 0.0, %v2666
  %2668 = vdwg.mxu0
  %2669 = vmatprep.subr.mxu0 %v2508
  %2670 = vmatpush1.msra.mxu0 %v2507
  %2671 = vmatprep.subr.mxu0 0.0
  %2672 = vmatpush1.msra.mxu0 0.0
  %2673 = vmatprep.subr.mxu0 0.0
  %2674 = vmatpush1.msra.mxu0 0.0
  %2675 = vmatprep.subr.mxu0 0.0
  %2676 = vmatpush1.msra.mxu0 0.0
  %2677 = vmatprep.subr.mxu0 0.0
  %2678 = vmatpush1.msra.mxu0 0.0
  %2679 = vmatprep.subr.mxu0 0.0
  %2680 = vmatpush1.msra.mxu0 0.0
  %2681 = vmatprep.subr.mxu0 0.0
  %2682 = vmatpush1.msra.mxu0 0.0
  %2683 = vmatprep.subr.mxu0 0.0
  %2684 = vmatpush1.msra.mxu0 0.0
  %2685 = vmatprep.subr.mxu0 0.0
  %2686 = vmatpush1.msra.mxu0 0.0
  %2687 = vmatprep.subr.mxu0 0.0
  %2688 = vmatpush1.msra.mxu0 0.0
  %2689 = vmatprep.subr.mxu0 0.0
  %2690 = vmatpush1.msra.mxu0 0.0
  %2691 = vmatprep.subr.mxu0 0.0
  %2692 = vmatpush1.msra.mxu0 0.0
  %2693 = vmatprep.subr.mxu0 0.0
  %2694 = vmatpush1.msra.mxu0 0.0
  %2695 = vmatprep.subr.mxu0 0.0
  %2696 = vmatpush1.msra.mxu0 0.0
  %2697 = vmatprep.subr.mxu0 0.0
  %2698 = vmatpush1.msra.mxu0 0.0
  %2699 = vmatprep.subr.mxu0 0.0
  %2700 = vmatpush1.msra.mxu0 0.0
  %2701 = vmatprep.subr.mxu0 0.0
  %2702 = vmatpush1.msra.mxu0 0.0
  %2703 = vmatprep.subr.mxu0 0.0
  %2704 = vmatpush1.msra.mxu0 0.0
  %2705 = vmatprep.subr.mxu0 0.0
  %2706 = vmatpush1.msra.mxu0 0.0
  %2707 = vmatprep.subr.mxu0 0.0
  %2708 = vmatpush1.msra.mxu0 0.0
  %2709 = vmatprep.subr.mxu0 0.0
  %2710 = vmatpush1.msra.mxu0 0.0
  %2711 = vmatprep.subr.mxu0 0.0
  %2712 = vmatpush1.msra.mxu0 0.0
  %2713 = vmatprep.subr.mxu0 0.0
  %2714 = vmatpush1.msra.mxu0 0.0
  %2715 = vmatprep.subr.mxu0 0.0
  %2716 = vmatpush1.msra.mxu0 0.0
  %2717 = vmatprep.subr.mxu0 0.0
  %2718 = vmatpush1.msra.mxu0 0.0
  %2719 = vmatprep.subr.mxu0 0.0
  %2720 = vmatpush1.msra.mxu0 0.0
  %2721 = vmatprep.subr.mxu0 0.0
  %2722 = vmatpush1.msra.mxu0 0.0
  %2723 = vmatprep.subr.mxu0 0.0
  %2724 = vmatpush1.msra.mxu0 0.0
  %2725 = vmatprep.subr.mxu0 0.0
  %2726 = vmatpush1.msra.mxu0 0.0
  %2727 = vmatprep.subr.mxu0 0.0
  %2728 = vmatpush1.msra.mxu0 0.0
  %2729 = vmatprep.subr.mxu0 0.0
  %2730 = vmatpush1.msra.mxu0 0.0
  %2731 = vmatprep.subr.mxu0 0.0
  %2732 = vmatpush1.msra.mxu0 0.0
  %2733 = vmatprep.mubr.f32.mxu0 0.0
  %2734 = vmatmul.mubr.f32.gmra.mrb[0].mxu0 %v2525
  %v2735 = vpop.f32.mrb[0].mxu0
  %v2736 = vadd.f32 0.0, %v2735
  %v2737 = vpop.f32.mrb[0].mxu0
  %v2738 = vadd.f32 0.0, %v2737
  %2739 = vdwg.mxu0
  %2740 = vmatprep.subr.mxu0 %v2510
  %2741 = vmatpush1.msra.mxu0 %v2509
  %2742 = vmatprep.subr.mxu0 0.0
  %2743 = vmatpush1.msra.mxu0 0.0
  %2744 = vmatprep.subr.mxu0 0.0
  %2745 = vmatpush1.msra.mxu0 0.0
  %2746 = vmatprep.subr.mxu0 0.0
  %2747 = vmatpush1.msra.mxu0 0.0
  %2748 = vmatprep.subr.mxu0 0.0
  %2749 = vmatpush1.msra.mxu0 0.0
  %2750 = vmatprep.subr.mxu0 0.0
  %2751 = vmatpush1.msra.mxu0 0.0
  %2752 = vmatprep.subr.mxu0 0.0
  %2753 = vmatpush1.msra.mxu0 0.0
  %2754 = vmatprep.subr.mxu0 0.0
  %2755 = vmatpush1.msra.mxu0 0.0
  %2756 = vmatprep.subr.mxu0 0.0
  %2757 = vmatpush1.msra.mxu0 0.0
  %2758 = vmatprep.subr.mxu0 0.0
  %2759 = vmatpush1.msra.mxu0 0.0
  %2760 = vmatprep.subr.mxu0 0.0
  %2761 = vmatpush1.msra.mxu0 0.0
  %2762 = vmatprep.subr.mxu0 0.0
  %2763 = vmatpush1.msra.mxu0 0.0
  %2764 = vmatprep.subr.mxu0 0.0
  %2765 = vmatpush1.msra.mxu0 0.0
  %2766 = vmatprep.subr.mxu0 0.0
  %2767 = vmatpush1.msra.mxu0 0.0
  %2768 = vmatprep.subr.mxu0 0.0
  %2769 = vmatpush1.msra.mxu0 0.0
  %2770 = vmatprep.subr.mxu0 0.0
  %2771 = vmatpush1.msra.mxu0 0.0
  %2772 = vmatprep.subr.mxu0 0.0
  %2773 = vmatpush1.msra.mxu0 0.0
  %2774 = vmatprep.subr.mxu0 0.0
  %2775 = vmatpush1.msra.mxu0 0.0
  %2776 = vmatprep.subr.mxu0 0.0
  %2777 = vmatpush1.msra.mxu0 0.0
  %2778 = vmatprep.subr.mxu0 0.0
  %2779 = vmatpush1.msra.mxu0 0.0
  %2780 = vmatprep.subr.mxu0 0.0
  %2781 = vmatpush1.msra.mxu0 0.0
  %2782 = vmatprep.subr.mxu0 0.0
  %2783 = vmatpush1.msra.mxu0 0.0
  %2784 = vmatprep.subr.mxu0 0.0
  %2785 = vmatpush1.msra.mxu0 0.0
  %2786 = vmatprep.subr.mxu0 0.0
  %2787 = vmatpush1.msra.mxu0 0.0
  %2788 = vmatprep.subr.mxu0 0.0
  %2789 = vmatpush1.msra.mxu0 0.0
  %2790 = vmatprep.subr.mxu0 0.0
  %2791 = vmatpush1.msra.mxu0 0.0
  %2792 = vmatprep.subr.mxu0 0.0
  %2793 = vmatpush1.msra.mxu0 0.0
  %2794 = vmatprep.subr.mxu0 0.0
  %2795 = vmatpush1.msra.mxu0 0.0
  %2796 = vmatprep.subr.mxu0 0.0
  %2797 = vmatpush1.msra.mxu0 0.0
  %2798 = vmatprep.subr.mxu0 0.0
  %2799 = vmatpush1.msra.mxu0 0.0
  %2800 = vmatprep.subr.mxu0 0.0
  %2801 = vmatpush1.msra.mxu0 0.0
  %2802 = vmatprep.subr.mxu0 0.0
  %2803 = vmatpush1.msra.mxu0 0.0
  %2804 = vmatprep.mubr.f32.mxu0 0.0
  %2805 = vmatmul.mubr.f32.gmra.mrb[0].mxu0 %v2525
  %v2806 = vpop.f32.mrb[0].mxu0
  %v2807 = vadd.f32 0.0, %v2806
  %v2808 = vpop.f32.mrb[0].mxu0
  %v2809 = vadd.f32 0.0, %v2808
  %2810 = vdwg.mxu0
  %2811 = vmatprep.subr.mxu0 %v2512
  %2812 = vmatpush1.msra.mxu0 %v2511
  %2813 = vmatprep.subr.mxu0 0.0
  %2814 = vmatpush1.msra.mxu0 0.0
  %2815 = vmatprep.subr.mxu0 0.0
  %2816 = vmatpush1.msra.mxu0 0.0
  %2817 = vmatprep.subr.mxu0 0.0
  %2818 = vmatpush1.msra.mxu0 0.0
  %2819 = vmatprep.subr.mxu0 0.0
  %2820 = vmatpush1.msra.mxu0 0.0
  %2821 = vmatprep.subr.mxu0 0.0
  %2822 = vmatpush1.msra.mxu0 0.0
  %2823 = vmatprep.subr.mxu0 0.0
  %2824 = vmatpush1.msra.mxu0 0.0
  %2825 = vmatprep.subr.mxu0 0.0
  %2826 = vmatpush1.msra.mxu0 0.0
  %2827 = vmatprep.subr.mxu0 0.0
  %2828 = vmatpush1.msra.mxu0 0.0
  %2829 = vmatprep.subr.mxu0 0.0
  %2830 = vmatpush1.msra.mxu0 0.0
  %2831 = vmatprep.subr.mxu0 0.0
  %2832 = vmatpush1.msra.mxu0 0.0
  %2833 = vmatprep.subr.mxu0 0.0
  %2834 = vmatpush1.msra.mxu0 0.0
  %2835 = vmatprep.subr.mxu0 0.0
  %2836 = vmatpush1.msra.mxu0 0.0
  %2837 = vmatprep.subr.mxu0 0.0
  %2838 = vmatpush1.msra.mxu0 0.0
  %2839 = vmatprep.subr.mxu0 0.0
  %2840 = vmatpush1.msra.mxu0 0.0
  %2841 = vmatprep.subr.mxu0 0.0
  %2842 = vmatpush1.msra.mxu0 0.0
  %2843 = vmatprep.subr.mxu0 0.0
  %2844 = vmatpush1.msra.mxu0 0.0
  %2845 = vmatprep.subr.mxu0 0.0
  %2846 = vmatpush1.msra.mxu0 0.0
  %2847 = vmatprep.subr.mxu0 0.0
  %2848 = vmatpush1.msra.mxu0 0.0
  %2849 = vmatprep.subr.mxu0 0.0
  %2850 = vmatpush1.msra.mxu0 0.0
  %2851 = vmatprep.subr.mxu0 0.0
  %2852 = vmatpush1.msra.mxu0 0.0
  %2853 = vmatprep.subr.mxu0 0.0
  %2854 = vmatpush1.msra.mxu0 0.0
  %2855 = vmatprep.subr.mxu0 0.0
  %2856 = vmatpush1.msra.mxu0 0.0
  %2857 = vmatprep.subr.mxu0 0.0
  %2858 = vmatpush1.msra.mxu0 0.0
  %2859 = vmatprep.subr.mxu0 0.0
  %2860 = vmatpush1.msra.mxu0 0.0
  %2861 = vmatprep.subr.mxu0 0.0
  %2862 = vmatpush1.msra.mxu0 0.0
  %2863 = vmatprep.subr.mxu0 0.0
  %2864 = vmatpush1.msra.mxu0 0.0
  %2865 = vmatprep.subr.mxu0 0.0
  %2866 = vmatpush1.msra.mxu0 0.0
  %2867 = vmatprep.subr.mxu0 0.0
  %2868 = vmatpush1.msra.mxu0 0.0
  %2869 = vmatprep.subr.mxu0 0.0
  %2870 = vmatpush1.msra.mxu0 0.0
  %2871 = vmatprep.subr.mxu0 0.0
  %2872 = vmatpush1.msra.mxu0 0.0
  %2873 = vmatprep.subr.mxu0 0.0
  %2874 = vmatpush1.msra.mxu0 0.0
  %2875 = vmatprep.mubr.f32.mxu0 0.0
  %2876 = vmatmul.mubr.f32.gmra.mrb[0].mxu0 %v2525
  %v2877 = vpop.f32.mrb[0].mxu0
  %v2878 = vadd.f32 0.0, %v2877
  %v2879 = vpop.f32.mrb[0].mxu0
  %v2880 = vadd.f32 0.0, %v2879
  %2881 = vdwg.mxu0
  %2882 = vmatprep.subr.mxu0 %v2514
  %2883 = vmatpush1.msra.mxu0 %v2513
  %2884 = vmatprep.subr.mxu0 0.0
  %2885 = vmatpush1.msra.mxu0 0.0
  %2886 = vmatprep.subr.mxu0 0.0
  %2887 = vmatpush1.msra.mxu0 0.0
  %2888 = vmatprep.subr.mxu0 0.0
  %2889 = vmatpush1.msra.mxu0 0.0
  %2890 = vmatprep.subr.mxu0 0.0
  %2891 = vmatpush1.msra.mxu0 0.0
  %2892 = vmatprep.subr.mxu0 0.0
  %2893 = vmatpush1.msra.mxu0 0.0
  %2894 = vmatprep.subr.mxu0 0.0
  %2895 = vmatpush1.msra.mxu0 0.0
  %2896 = vmatprep.subr.mxu0 0.0
  %2897 = vmatpush1.msra.mxu0 0.0
  %2898 = vmatprep.subr.mxu0 0.0
  %2899 = vmatpush1.msra.mxu0 0.0
  %2900 = vmatprep.subr.mxu0 0.0
  %2901 = vmatpush1.msra.mxu0 0.0
  %2902 = vmatprep.subr.mxu0 0.0
  %2903 = vmatpush1.msra.mxu0 0.0
  %2904 = vmatprep.subr.mxu0 0.0
  %2905 = vmatpush1.msra.mxu0 0.0
  %2906 = vmatprep.subr.mxu0 0.0
  %2907 = vmatpush1.msra.mxu0 0.0
  %2908 = vmatprep.subr.mxu0 0.0
  %2909 = vmatpush1.msra.mxu0 0.0
  %2910 = vmatprep.subr.mxu0 0.0
  %2911 = vmatpush1.msra.mxu0 0.0
  %2912 = vmatprep.subr.mxu0 0.0
  %2913 = vmatpush1.msra.mxu0 0.0
  %2914 = vmatprep.subr.mxu0 0.0
  %2915 = vmatpush1.msra.mxu0 0.0
  %2916 = vmatprep.subr.mxu0 0.0
  %2917 = vmatpush1.msra.mxu0 0.0
  %2918 = vmatprep.subr.mxu0 0.0
  %2919 = vmatpush1.msra.mxu0 0.0
  %2920 = vmatprep.subr.mxu0 0.0
  %2921 = vmatpush1.msra.mxu0 0.0
  %2922 = vmatprep.subr.mxu0 0.0
  %2923 = vmatpush1.msra.mxu0 0.0
  %2924 = vmatprep.subr.mxu0 0.0
  %2925 = vmatpush1.msra.mxu0 0.0
  %2926 = vmatprep.subr.mxu0 0.0
  %2927 = vmatpush1.msra.mxu0 0.0
  %2928 = vmatprep.subr.mxu0 0.0
  %2929 = vmatpush1.msra.mxu0 0.0
  %2930 = vmatprep.subr.mxu0 0.0
  %2931 = vmatpush1.msra.mxu0 0.0
  %2932 = vmatprep.subr.mxu0 0.0
  %2933 = vmatpush1.msra.mxu0 0.0
  %2934 = vmatprep.subr.mxu0 0.0
  %2935 = vmatpush1.msra.mxu0 0.0
  %2936 = vmatprep.subr.mxu0 0.0
  %2937 = vmatpush1.msra.mxu0 0.0
  %2938 = vmatprep.subr.mxu0 0.0
  %2939 = vmatpush1.msra.mxu0 0.0
  %2940 = vmatprep.subr.mxu0 0.0
  %2941 = vmatpush1.msra.mxu0 0.0
  %2942 = vmatprep.subr.mxu0 0.0
  %2943 = vmatpush1.msra.mxu0 0.0
  %2944 = vmatprep.subr.mxu0 0.0
  %2945 = vmatpush1.msra.mxu0 0.0
  %2946 = vmatprep.mubr.f32.mxu0 0.0
  %2947 = vmatmul.mubr.f32.gmra.mrb[0].mxu0 %v2525
  %v2948 = vpop.f32.mrb[0].mxu0
  %v2949 = vadd.f32 0.0, %v2948
  %v2950 = vpop.f32.mrb[0].mxu0
  %v2951 = vadd.f32 0.0, %v2950
  %2952 = vdwg.mxu0
  %2953 = vmatprep.subr.mxu0 %v2516
  %2954 = vmatpush1.msra.mxu0 %v2515
  %2955 = vmatprep.subr.mxu0 0.0
  %2956 = vmatpush1.msra.mxu0 0.0
  %2957 = vmatprep.subr.mxu0 0.0
  %2958 = vmatpush1.msra.mxu0 0.0
  %2959 = vmatprep.subr.mxu0 0.0
  %2960 = vmatpush1.msra.mxu0 0.0
  %2961 = vmatprep.subr.mxu0 0.0
  %2962 = vmatpush1.msra.mxu0 0.0
  %2963 = vmatprep.subr.mxu0 0.0
  %2964 = vmatpush1.msra.mxu0 0.0
  %2965 = vmatprep.subr.mxu0 0.0
  %2966 = vmatpush1.msra.mxu0 0.0
  %2967 = vmatprep.subr.mxu0 0.0
  %2968 = vmatpush1.msra.mxu0 0.0
  %2969 = vmatprep.subr.mxu0 0.0
  %2970 = vmatpush1.msra.mxu0 0.0
  %2971 = vmatprep.subr.mxu0 0.0
  %2972 = vmatpush1.msra.mxu0 0.0
  %2973 = vmatprep.subr.mxu0 0.0
  %2974 = vmatpush1.msra.mxu0 0.0
  %2975 = vmatprep.subr.mxu0 0.0
  %2976 = vmatpush1.msra.mxu0 0.0
  %2977 = vmatprep.subr.mxu0 0.0
  %2978 = vmatpush1.msra.mxu0 0.0
  %2979 = vmatprep.subr.mxu0 0.0
  %2980 = vmatpush1.msra.mxu0 0.0
  %2981 = vmatprep.subr.mxu0 0.0
  %2982 = vmatpush1.msra.mxu0 0.0
  %2983 = vmatprep.subr.mxu0 0.0
  %2984 = vmatpush1.msra.mxu0 0.0
  %2985 = vmatprep.subr.mxu0 0.0
  %2986 = vmatpush1.msra.mxu0 0.0
  %2987 = vmatprep.subr.mxu0 0.0
  %2988 = vmatpush1.msra.mxu0 0.0
  %2989 = vmatprep.subr.mxu0 0.0
  %2990 = vmatpush1.msra.mxu0 0.0
  %2991 = vmatprep.subr.mxu0 0.0
  %2992 = vmatpush1.msra.mxu0 0.0
  %2993 = vmatprep.subr.mxu0 0.0
  %2994 = vmatpush1.msra.mxu0 0.0
  %2995 = vmatprep.subr.mxu0 0.0
  %2996 = vmatpush1.msra.mxu0 0.0
  %2997 = vmatprep.subr.mxu0 0.0
  %2998 = vmatpush1.msra.mxu0 0.0
  %2999 = vmatprep.subr.mxu0 0.0
  %3000 = vmatpush1.msra.mxu0 0.0
  %3001 = vmatprep.subr.mxu0 0.0
  %3002 = vmatpush1.msra.mxu0 0.0
  %3003 = vmatprep.subr.mxu0 0.0
  %3004 = vmatpush1.msra.mxu0 0.0
  %3005 = vmatprep.subr.mxu0 0.0
  %3006 = vmatpush1.msra.mxu0 0.0
  %3007 = vmatprep.subr.mxu0 0.0
  %3008 = vmatpush1.msra.mxu0 0.0
  %3009 = vmatprep.subr.mxu0 0.0
  %3010 = vmatpush1.msra.mxu0 0.0
  %3011 = vmatprep.subr.mxu0 0.0
  %3012 = vmatpush1.msra.mxu0 0.0
  %3013 = vmatprep.subr.mxu0 0.0
  %3014 = vmatpush1.msra.mxu0 0.0
  %3015 = vmatprep.subr.mxu0 0.0
  %3016 = vmatpush1.msra.mxu0 0.0
  %3017 = vmatprep.mubr.f32.mxu0 0.0
  %3018 = vmatmul.mubr.f32.gmra.mrb[0].mxu0 %v2525
  %v3019 = vpop.f32.mrb[0].mxu0
  %v3020 = vadd.f32 0.0, %v3019
  %v3021 = vpop.f32.mrb[0].mxu0
  %v3022 = vadd.f32 0.0, %v3021
  %3023 = vdwg.mxu0
  %3024 = vmatprep.subr.mxu0 %v2518
  %3025 = vmatpush1.msra.mxu0 %v2517
  %3026 = vmatprep.subr.mxu0 0.0
  %3027 = vmatpush1.msra.mxu0 0.0
  %3028 = vmatprep.subr.mxu0 0.0
  %3029 = vmatpush1.msra.mxu0 0.0
  %3030 = vmatprep.subr.mxu0 0.0
  %3031 = vmatpush1.msra.mxu0 0.0
  %3032 = vmatprep.subr.mxu0 0.0
  %3033 = vmatpush1.msra.mxu0 0.0
  %3034 = vmatprep.subr.mxu0 0.0
  %3035 = vmatpush1.msra.mxu0 0.0
  %3036 = vmatprep.subr.mxu0 0.0
  %3037 = vmatpush1.msra.mxu0 0.0
  %3038 = vmatprep.subr.mxu0 0.0
  %3039 = vmatpush1.msra.mxu0 0.0
  %3040 = vmatprep.subr.mxu0 0.0
  %3041 = vmatpush1.msra.mxu0 0.0
  %3042 = vmatprep.subr.mxu0 0.0
  %3043 = vmatpush1.msra.mxu0 0.0
  %3044 = vmatprep.subr.mxu0 0.0
  %3045 = vmatpush1.msra.mxu0 0.0
  %3046 = vmatprep.subr.mxu0 0.0
  %3047 = vmatpush1.msra.mxu0 0.0
  %3048 = vmatprep.subr.mxu0 0.0
  %3049 = vmatpush1.msra.mxu0 0.0
  %3050 = vmatprep.subr.mxu0 0.0
  %3051 = vmatpush1.msra.mxu0 0.0
  %3052 = vmatprep.subr.mxu0 0.0
  %3053 = vmatpush1.msra.mxu0 0.0
  %3054 = vmatprep.subr.mxu0 0.0
  %3055 = vmatpush1.msra.mxu0 0.0
  %3056 = vmatprep.subr.mxu0 0.0
  %3057 = vmatpush1.msra.mxu0 0.0
  %3058 = vmatprep.subr.mxu0 0.0
  %3059 = vmatpush1.msra.mxu0 0.0
  %3060 = vmatprep.subr.mxu0 0.0
  %3061 = vmatpush1.msra.mxu0 0.0
  %3062 = vmatprep.subr.mxu0 0.0
  %3063 = vmatpush1.msra.mxu0 0.0
  %3064 = vmatprep.subr.mxu0 0.0
  %3065 = vmatpush1.msra.mxu0 0.0
  %3066 = vmatprep.subr.mxu0 0.0
  %3067 = vmatpush1.msra.mxu0 0.0
  %3068 = vmatprep.subr.mxu0 0.0
  %3069 = vmatpush1.msra.mxu0 0.0
  %3070 = vmatprep.subr.mxu0 0.0
  %3071 = vmatpush1.msra.mxu0 0.0
  %3072 = vmatprep.subr.mxu0 0.0
  %3073 = vmatpush1.msra.mxu0 0.0
  %3074 = vmatprep.subr.mxu0 0.0
  %3075 = vmatpush1.msra.mxu0 0.0
  %3076 = vmatprep.subr.mxu0 0.0
  %3077 = vmatpush1.msra.mxu0 0.0
  %3078 = vmatprep.subr.mxu0 0.0
  %3079 = vmatpush1.msra.mxu0 0.0
  %3080 = vmatprep.subr.mxu0 0.0
  %3081 = vmatpush1.msra.mxu0 0.0
  %3082 = vmatprep.subr.mxu0 0.0
  %3083 = vmatpush1.msra.mxu0 0.0
  %3084 = vmatprep.subr.mxu0 0.0
  %3085 = vmatpush1.msra.mxu0 0.0
  %3086 = vmatprep.subr.mxu0 0.0
  %3087 = vmatpush1.msra.mxu0 0.0
  %3088 = vmatprep.mubr.f32.mxu0 0.0
  %3089 = vmatmul.mubr.f32.gmra.mrb[0].mxu0 %v2525
  %v3090 = vpop.f32.mrb[0].mxu0
  %v3091 = vadd.f32 0.0, %v3090
  %v3092 = vpop.f32.mrb[0].mxu0
  %v3093 = vadd.f32 0.0, %v3092
  %3094 = vdwg.mxu0
  %3095 = vmatprep.subr.mxu0 %v2520
  %3096 = vmatpush1.msra.mxu0 %v2519
  %3097 = vmatprep.subr.mxu0 0.0
  %3098 = vmatpush1.msra.mxu0 0.0
  %3099 = vmatprep.subr.mxu0 0.0
  %3100 = vmatpush1.msra.mxu0 0.0
  %3101 = vmatprep.subr.mxu0 0.0
  %3102 = vmatpush1.msra.mxu0 0.0
  %3103 = vmatprep.subr.mxu0 0.0
  %3104 = vmatpush1.msra.mxu0 0.0
  %3105 = vmatprep.subr.mxu0 0.0
  %3106 = vmatpush1.msra.mxu0 0.0
  %3107 = vmatprep.subr.mxu0 0.0
  %3108 = vmatpush1.msra.mxu0 0.0
  %3109 = vmatprep.subr.mxu0 0.0
  %3110 = vmatpush1.msra.mxu0 0.0
  %3111 = vmatprep.subr.mxu0 0.0
  %3112 = vmatpush1.msra.mxu0 0.0
  %3113 = vmatprep.subr.mxu0 0.0
  %3114 = vmatpush1.msra.mxu0 0.0
  %3115 = vmatprep.subr.mxu0 0.0
  %3116 = vmatpush1.msra.mxu0 0.0
  %3117 = vmatprep.subr.mxu0 0.0
  %3118 = vmatpush1.msra.mxu0 0.0
  %3119 = vmatprep.subr.mxu0 0.0
  %3120 = vmatpush1.msra.mxu0 0.0
  %3121 = vmatprep.subr.mxu0 0.0
  %3122 = vmatpush1.msra.mxu0 0.0
  %3123 = vmatprep.subr.mxu0 0.0
  %3124 = vmatpush1.msra.mxu0 0.0
  %3125 = vmatprep.subr.mxu0 0.0
  %3126 = vmatpush1.msra.mxu0 0.0
  %3127 = vmatprep.subr.mxu0 0.0
  %3128 = vmatpush1.msra.mxu0 0.0
  %3129 = vmatprep.subr.mxu0 0.0
  %3130 = vmatpush1.msra.mxu0 0.0
  %3131 = vmatprep.subr.mxu0 0.0
  %3132 = vmatpush1.msra.mxu0 0.0
  %3133 = vmatprep.subr.mxu0 0.0
  %3134 = vmatpush1.msra.mxu0 0.0
  %3135 = vmatprep.subr.mxu0 0.0
  %3136 = vmatpush1.msra.mxu0 0.0
  %3137 = vmatprep.subr.mxu0 0.0
  %3138 = vmatpush1.msra.mxu0 0.0
  %3139 = vmatprep.subr.mxu0 0.0
  %3140 = vmatpush1.msra.mxu0 0.0
  %3141 = vmatprep.subr.mxu0 0.0
  %3142 = vmatpush1.msra.mxu0 0.0
  %3143 = vmatprep.subr.mxu0 0.0
  %3144 = vmatpush1.msra.mxu0 0.0
  %3145 = vmatprep.subr.mxu0 0.0
  %3146 = vmatpush1.msra.mxu0 0.0
  %3147 = vmatprep.subr.mxu0 0.0
  %3148 = vmatpush1.msra.mxu0 0.0
  %3149 = vmatprep.subr.mxu0 0.0
  %3150 = vmatpush1.msra.mxu0 0.0
  %3151 = vmatprep.subr.mxu0 0.0
  %3152 = vmatpush1.msra.mxu0 0.0
  %3153 = vmatprep.subr.mxu0 0.0
  %3154 = vmatpush1.msra.mxu0 0.0
  %3155 = vmatprep.subr.mxu0 0.0
  %3156 = vmatpush1.msra.mxu0 0.0
  %3157 = vmatprep.subr.mxu0 0.0
  %3158 = vmatpush1.msra.mxu0 0.0
  %3159 = vmatprep.mubr.f32.mxu0 0.0
  %3160 = vmatmul.mubr.f32.gmra.mrb[0].mxu0 %v2525
  %v3161 = vpop.f32.mrb[0].mxu0
  %v3162 = vadd.f32 0.0, %v3161
  %v3163 = vpop.f32.mrb[0].mxu0
  %v3164 = vadd.f32 0.0, %v3163
  %3165 = vdwg.mxu0
  %3166 = vmatprep.subr.mxu0 0.0
  %3167 = vmatpush1.msra.mxu0 %v2521
  %3168 = vmatprep.subr.mxu0 0.0
  %3169 = vmatpush1.msra.mxu0 0.0
  %3170 = vmatprep.subr.mxu0 0.0
  %3171 = vmatpush1.msra.mxu0 0.0
  %3172 = vmatprep.subr.mxu0 0.0
  %3173 = vmatpush1.msra.mxu0 0.0
  %3174 = vmatprep.subr.mxu0 0.0
  %3175 = vmatpush1.msra.mxu0 0.0
  %3176 = vmatprep.subr.mxu0 0.0
  %3177 = vmatpush1.msra.mxu0 0.0
  %3178 = vmatprep.subr.mxu0 0.0
  %3179 = vmatpush1.msra.mxu0 0.0
  %3180 = vmatprep.subr.mxu0 0.0
  %3181 = vmatpush1.msra.mxu0 0.0
  %3182 = vmatprep.subr.mxu0 0.0
  %3183 = vmatpush1.msra.mxu0 0.0
  %3184 = vmatprep.subr.mxu0 0.0
  %3185 = vmatpush1.msra.mxu0 0.0
  %3186 = vmatprep.subr.mxu0 0.0
  %3187 = vmatpush1.msra.mxu0 0.0
  %3188 = vmatprep.subr.mxu0 0.0
  %3189 = vmatpush1.msra.mxu0 0.0
  %3190 = vmatprep.subr.mxu0 0.0
  %3191 = vmatpush1.msra.mxu0 0.0
  %3192 = vmatprep.subr.mxu0 0.0
  %3193 = vmatpush1.msra.mxu0 0.0
  %3194 = vmatprep.subr.mxu0 0.0
  %3195 = vmatpush1.msra.mxu0 0.0
  %3196 = vmatprep.subr.mxu0 0.0
  %3197 = vmatpush1.msra.mxu0 0.0
  %3198 = vmatprep.subr.mxu0 0.0
  %3199 = vmatpush1.msra.mxu0 0.0
  %3200 = vmatprep.subr.mxu0 0.0
  %3201 = vmatpush1.msra.mxu0 0.0
  %3202 = vmatprep.subr.mxu0 0.0
  %3203 = vmatpush1.msra.mxu0 0.0
  %3204 = vmatprep.subr.mxu0 0.0
  %3205 = vmatpush1.msra.mxu0 0.0
  %3206 = vmatprep.subr.mxu0 0.0
  %3207 = vmatpush1.msra.mxu0 0.0
  %3208 = vmatprep.subr.mxu0 0.0
  %3209 = vmatpush1.msra.mxu0 0.0
  %3210 = vmatprep.subr.mxu0 0.0
  %3211 = vmatpush1.msra.mxu0 0.0
  %3212 = vmatprep.subr.mxu0 0.0
  %3213 = vmatpush1.msra.mxu0 0.0
  %3214 = vmatprep.subr.mxu0 0.0
  %3215 = vmatpush1.msra.mxu0 0.0
  %3216 = vmatprep.subr.mxu0 0.0
  %3217 = vmatpush1.msra.mxu0 0.0
  %3218 = vmatprep.subr.mxu0 0.0
  %3219 = vmatpush1.msra.mxu0 0.0
  %3220 = vmatprep.subr.mxu0 0.0
  %3221 = vmatpush1.msra.mxu0 0.0
  %3222 = vmatprep.subr.mxu0 0.0
  %3223 = vmatpush1.msra.mxu0 0.0
  %3224 = vmatprep.subr.mxu0 0.0
  %3225 = vmatpush1.msra.mxu0 0.0
  %3226 = vmatprep.subr.mxu0 0.0
  %3227 = vmatpush1.msra.mxu0 0.0
  %3228 = vmatprep.subr.mxu0 0.0
  %3229 = vmatpush1.msra.mxu0 0.0
  %3230 = vmatprep.mubr.f32.mxu0 0.0
  %3231 = vmatmul.mubr.f32.gmra.mrb[0].mxu0 %v2525
  %v3232 = vpop.f32.mrb[0].mxu0
  %v3233 = vadd.f32 0.0, %v3232
  %v3234 = vpop.f32.mrb[0].mxu0
  %3235 = vdwg.mxu0
  %v3236 = vmul.f32 %v2594, %v2258
  %v3237 = vmul.f32 %v2596, %v2259
  %v3238 = vmul.f32 %v2665, %v2260
  %v3239 = vmul.f32 %v2667, %v2261
  %v3240 = vmul.f32 %v2736, %v2262
  %v3241 = vmul.f32 %v2738, %v2263
  %v3242 = vmul.f32 %v2807, %v2264
  %v3243 = vmul.f32 %v2809, %v2265
  %v3244 = vmul.f32 %v2878, %v2266
  %v3245 = vmul.f32 %v2880, %v2267
  %v3246 = vmul.f32 %v2949, %v2268
  %v3247 = vmul.f32 %v2951, %v2269
  %v3248 = vmul.f32 %v3020, %v2270
  %v3249 = vmul.f32 %v3022, %v2271
  %v3250 = vmul.f32 %v3091, %v2272
  %v3251 = vmul.f32 %v3093, %v2273
  %v3252 = vmul.f32 %v3162, %v2274
  %v3253 = vmul.f32 %v3164, %v2275
  %v3254 = vmul.f32 %v3233, %v2276
  %v3255 = vadd.f32 %v3236, %v3237
  %v3256 = vadd.f32 %v3255, %v3238
  %v3257 = vadd.f32 %v3256, %v3239
  %v3258 = vadd.f32 %v3257, %v3240
  %v3259 = vadd.f32 %v3258, %v3241
  %v3260 = vadd.f32 %v3259, %v3242
  %v3261 = vadd.f32 %v3260, %v3243
  %v3262 = vadd.f32 %v3261, %v3244
  %v3263 = vadd.f32 %v3262, %v3245
  %v3264 = vadd.f32 %v3263, %v3246
  %v3265 = vadd.f32 %v3264, %v3247
  %v3266 = vadd.f32 %v3265, %v3248
  %v3267 = vadd.f32 %v3266, %v3249
  %v3268 = vadd.f32 %v3267, %v3250
  %v3269 = vadd.f32 %v3268, %v3251
  %v3270 = vadd.f32 %v3269, %v3252
  %v3271 = vadd.f32 %v3270, %v3253
  %v3272 = vadd.f32 %v3271, %v3254
  %3273 = vadd.xlane.f32.xlu0 %v3272
  %v3274 = vpop.xlane.xlu0 %3273
  %v3275 = vmul.f32 %v3274, 0.00048828125
  %v3276 = vsub.f32 %v2594, %v3275
  %v3277 = vsub.f32 %v2596, %v3275
  %v3278 = vsub.f32 %v2665, %v3275
  %v3279 = vsub.f32 %v2667, %v3275
  %v3280 = vsub.f32 %v2736, %v3275
  %v3281 = vsub.f32 %v2738, %v3275
  %v3282 = vsub.f32 %v2807, %v3275
  %v3283 = vsub.f32 %v2809, %v3275
  %v3284 = vsub.f32 %v2878, %v3275
  %v3285 = vsub.f32 %v2880, %v3275
  %v3286 = vsub.f32 %v2949, %v3275
  %v3287 = vsub.f32 %v2951, %v3275
  %v3288 = vsub.f32 %v3020, %v3275
  %v3289 = vsub.f32 %v3022, %v3275
  %v3290 = vsub.f32 %v3091, %v3275
  %v3291 = vsub.f32 %v3093, %v3275
  %v3292 = vsub.f32 %v3162, %v3275
  %v3293 = vsub.f32 %v3164, %v3275
  %v3294 = vsub.f32 %v3233, %v3275
  %v3295 = vmul.f32 %v3276, %v2258
  %v3296 = vmul.f32 %v3277, %v2259
  %v3297 = vmul.f32 %v3278, %v2260
  %v3298 = vmul.f32 %v3279, %v2261
  %v3299 = vmul.f32 %v3280, %v2262
  %v3300 = vmul.f32 %v3281, %v2263
  %v3301 = vmul.f32 %v3282, %v2264
  %v3302 = vmul.f32 %v3283, %v2265
  %v3303 = vmul.f32 %v3284, %v2266
  %v3304 = vmul.f32 %v3285, %v2267
  %v3305 = vmul.f32 %v3286, %v2268
  %v3306 = vmul.f32 %v3287, %v2269
  %v3307 = vmul.f32 %v3288, %v2270
  %v3308 = vmul.f32 %v3289, %v2271
  %v3309 = vmul.f32 %v3290, %v2272
  %v3310 = vmul.f32 %v3291, %v2273
  %v3311 = vmul.f32 %v3292, %v2274
  %v3312 = vmul.f32 %v3293, %v2275
  %v3313 = vmul.f32 %v3294, %v2276
  %v3314 = vmul.f32 %v3295, %v3295
  %v3315 = vmul.f32 %v3296, %v3296
  %v3316 = vmul.f32 %v3297, %v3297
  %v3317 = vmul.f32 %v3298, %v3298
  %v3318 = vmul.f32 %v3299, %v3299
  %v3319 = vmul.f32 %v3300, %v3300
  %v3320 = vmul.f32 %v3301, %v3301
  %v3321 = vmul.f32 %v3302, %v3302
  %v3322 = vmul.f32 %v3303, %v3303
  %v3323 = vmul.f32 %v3304, %v3304
  %v3324 = vmul.f32 %v3305, %v3305
  %v3325 = vmul.f32 %v3306, %v3306
  %v3326 = vmul.f32 %v3307, %v3307
  %v3327 = vmul.f32 %v3308, %v3308
  %v3328 = vmul.f32 %v3309, %v3309
  %v3329 = vmul.f32 %v3310, %v3310
  %v3330 = vmul.f32 %v3311, %v3311
  %v3331 = vmul.f32 %v3312, %v3312
  %v3332 = vmul.f32 %v3313, %v3313
  %v3333 = vadd.f32 %v3314, %v3315
  %v3334 = vadd.f32 %v3333, %v3316
  %v3335 = vadd.f32 %v3334, %v3317
  %v3336 = vadd.f32 %v3335, %v3318
  %v3337 = vadd.f32 %v3336, %v3319
  %v3338 = vadd.f32 %v3337, %v3320
  %v3339 = vadd.f32 %v3338, %v3321
  %v3340 = vadd.f32 %v3339, %v3322
  %v3341 = vadd.f32 %v3340, %v3323
  %v3342 = vadd.f32 %v3341, %v3324
  %v3343 = vadd.f32 %v3342, %v3325
  %v3344 = vadd.f32 %v3343, %v3326
  %v3345 = vadd.f32 %v3344, %v3327
  %v3346 = vadd.f32 %v3345, %v3328
  %v3347 = vadd.f32 %v3346, %v3329
  %v3348 = vadd.f32 %v3347, %v3330
  %v3349 = vadd.f32 %v3348, %v3331
  %v3350 = vadd.f32 %v3349, %v3332
  %3351 = vadd.xlane.f32.xlu0 %v3350
  %v3352 = vpop.xlane.xlu0 %3351
  %v3353 = vmul.f32 %v3352, 0.00048828125
  %v3354 = vadd.f32 %v3353, 1e-05
  %v3355 = vrsqrt.pop %v3354
  %v3356 = vmul.f32 %v44, %v3355
  %3358 = vset.pattern.permute.xlu0 3
  %3359 = vperm.xlu0 %3358, %v3356
  %v3360 = vpop.permute.xlu0 %3359
  %v3362 = vmul.f32 %v3276, %v3360
  %v3363 = vmul.f32 %v3277, %v3360
  %v3364 = vmul.f32 %v3278, %v3360
  %v3365 = vmul.f32 %v3279, %v3360
  %v3366 = vmul.f32 %v3280, %v3360
  %v3367 = vmul.f32 %v3281, %v3360
  %v3368 = vmul.f32 %v3282, %v3360
  %v3369 = vmul.f32 %v3283, %v3360
  %v3370 = vmul.f32 %v3284, %v3360
  %v3371 = vmul.f32 %v3285, %v3360
  %v3372 = vmul.f32 %v3286, %v3360
  %v3373 = vmul.f32 %v3287, %v3360
  %v3374 = vmul.f32 %v3288, %v3360
  %v3375 = vmul.f32 %v3289, %v3360
  %v3376 = vmul.f32 %v3290, %v3360
  %v3377 = vmul.f32 %v3291, %v3360
  %v3378 = vmul.f32 %v3292, %v3360
  %v3379 = vmul.f32 %v3293, %v3360
  %v3380 = vmul.f32 %v3294, %v3360
  %3381 = vset.pattern.permute.xlu0 4
  %3382 = vperm.xlu0 %3381, %v44
  %v3383 = vpop.permute.xlu0 %3382
  %v3385 = vadd.f32 %v3362, %v3383
  %v3386 = vadd.f32 %v3363, %v3383
  %v3387 = vadd.f32 %v3364, %v3383
  %v3388 = vadd.f32 %v3365, %v3383
  %v3389 = vadd.f32 %v3366, %v3383
  %v3390 = vadd.f32 %v3367, %v3383
  %v3391 = vadd.f32 %v3368, %v3383
  %v3392 = vadd.f32 %v3369, %v3383
  %v3393 = vadd.f32 %v3370, %v3383
  %v3394 = vadd.f32 %v3371, %v3383
  %v3395 = vadd.f32 %v3372, %v3383
  %v3396 = vadd.f32 %v3373, %v3383
  %v3397 = vadd.f32 %v3374, %v3383
  %v3398 = vadd.f32 %v3375, %v3383
  %v3399 = vadd.f32 %v3376, %v3383
  %v3400 = vadd.f32 %v3377, %v3383
  %v3401 = vadd.f32 %v3378, %v3383
  %v3402 = vadd.f32 %v3379, %v3383
  %v3403 = vadd.f32 %v3380, %v3383
  %vm3404 = vcmp.ge.f32.partialorder %v3385, 0.0
  %vm3405 = vcmp.ge.f32.partialorder %v3386, 0.0
  %vm3406 = vcmp.ge.f32.partialorder %v3387, 0.0
  %vm3407 = vcmp.ge.f32.partialorder %v3388, 0.0
  %vm3408 = vcmp.ge.f32.partialorder %v3389, 0.0
  %vm3409 = vcmp.ge.f32.partialorder %v3390, 0.0
  %vm3410 = vcmp.ge.f32.partialorder %v3391, 0.0
  %vm3411 = vcmp.ge.f32.partialorder %v3392, 0.0
  %vm3412 = vcmp.ge.f32.partialorder %v3393, 0.0
  %vm3413 = vcmp.ge.f32.partialorder %v3394, 0.0
  %vm3414 = vcmp.ge.f32.partialorder %v3395, 0.0
  %vm3415 = vcmp.ge.f32.partialorder %v3396, 0.0
  %vm3416 = vcmp.ge.f32.partialorder %v3397, 0.0
  %vm3417 = vcmp.ge.f32.partialorder %v3398, 0.0
  %vm3418 = vcmp.ge.f32.partialorder %v3399, 0.0
  %vm3419 = vcmp.ge.f32.partialorder %v3400, 0.0
  %vm3420 = vcmp.ge.f32.partialorder %v3401, 0.0
  %vm3421 = vcmp.ge.f32.partialorder %v3402, 0.0
  %vm3422 = vcmp.ge.f32.partialorder %v3403, 0.0
  %v3423 = vmul.f32 %v3385, 0.2
  %v3424 = vmul.f32 %v3386, 0.2
  %v3425 = vmul.f32 %v3387, 0.2
  %v3426 = vmul.f32 %v3388, 0.2
  %v3427 = vmul.f32 %v3389, 0.2
  %v3428 = vmul.f32 %v3390, 0.2
  %v3429 = vmul.f32 %v3391, 0.2
  %v3430 = vmul.f32 %v3392, 0.2
  %v3431 = vmul.f32 %v3393, 0.2
  %v3432 = vmul.f32 %v3394, 0.2
  %v3433 = vmul.f32 %v3395, 0.2
  %v3434 = vmul.f32 %v3396, 0.2
  %v3435 = vmul.f32 %v3397, 0.2
  %v3436 = vmul.f32 %v3398, 0.2
  %v3437 = vmul.f32 %v3399, 0.2
  %v3438 = vmul.f32 %v3400, 0.2
  %v3439 = vmul.f32 %v3401, 0.2
  %v3440 = vmul.f32 %v3402, 0.2
  %v3441 = vmul.f32 %v3403, 0.2
  %v3442 = vsel %vm3404, %v3385, %v3423
  %v3443 = vsel %vm3405, %v3386, %v3424
  %v3444 = vsel %vm3406, %v3387, %v3425
  %v3445 = vsel %vm3407, %v3388, %v3426
  %v3446 = vsel %vm3408, %v3389, %v3427
  %v3447 = vsel %vm3409, %v3390, %v3428
  %v3448 = vsel %vm3410, %v3391, %v3429
  %v3449 = vsel %vm3411, %v3392, %v3430
  %v3450 = vsel %vm3412, %v3393, %v3431
  %v3451 = vsel %vm3413, %v3394, %v3432
  %v3452 = vsel %vm3414, %v3395, %v3433
  %v3453 = vsel %vm3415, %v3396, %v3434
  %v3454 = vsel %vm3416, %v3397, %v3435
  %v3455 = vsel %vm3417, %v3398, %v3436
  %v3456 = vsel %vm3418, %v3399, %v3437
  %v3457 = vsel %vm3419, %v3400, %v3438
  %v3458 = vsel %vm3420, %v3401, %v3439
  %v3459 = vsel %vm3421, %v3402, %v3440
  %v3460 = vsel %vm3422, %v3403, %v3441
  %3461 = vst [vmem:[%s3] sm:$0xff] %v3442
  %3462 = vst [vmem:[%s3 + $0x8] sm:$0xff] %v3443
  %3463 = vst [vmem:[%s3 + $0x10] sm:$0xff] %v3444
  %3464 = vst [vmem:[%s3 + $0x18] sm:$0xff] %v3445
  %3465 = vst [vmem:[%s3 + $0x20] sm:$0xff] %v3446
  %3466 = vst [vmem:[%s3 + $0x28] sm:$0xff] %v3447
  %3467 = vst [vmem:[%s3 + $0x30] sm:$0xff] %v3448
  %3468 = vst [vmem:[%s3 + $0x38] sm:$0xff] %v3449
  %3469 = vst [vmem:[%s3 + $0x40] sm:$0xff] %v3450
  %3470 = vst [vmem:[%s3 + $0x48] sm:$0xff] %v3451
  %3471 = vst [vmem:[%s3 + $0x50] sm:$0xff] %v3452
  %3472 = vst [vmem:[%s3 + $0x58] sm:$0xff] %v3453
  %3473 = vst [vmem:[%s3 + $0x60] sm:$0xff] %v3454
  %3474 = vst [vmem:[%s3 + $0x68] sm:$0xff] %v3455
  %3475 = vst [vmem:[%s3 + $0x70] sm:$0xff] %v3456
  %3476 = vst [vmem:[%s3 + $0x78] sm:$0xff] %v3457
  %3477 = vst [vmem:[%s3 + $0x80] sm:$0xff] %v3458
  %3478 = vst [vmem:[%s3 + $0x88] sm:$0xff] %v3459
  %3479 = vst [vmem:[%s3 + $0x90] sm:$0xff] %v3460
  // Predicated region
  $region14: #{decoder_block_forward.1} parent=0 // pred_check
    _
  $region15: #{decoder_block_forward.1} parent=0 // pred_check_branch
    %3481 = sbr.rel (0) target = $region17
  $region16: #{decoder_block_forward.1} parent=0 // pred_region
    _
  $region17: #{decoder_block_forward.1} parent=0 // pred_fallthru
    _
  // Predicated region
  $region18: #{decoder_block_forward.1} parent=0 // pred_check
    _
  $region19: #{decoder_block_forward.1} parent=0 // pred_check_branch
    %3483 = sbr.rel (0) target = $region21
  $region20: #{decoder_block_forward.1} parent=0 // pred_region
    _
  $region21: #{decoder_block_forward.1} parent=0 // pred_fallthru
    _

</llo_original>
